<compile_context>
chip_gen: v5e
topology: v5e:2x2
jax: 0.10.0
libtpu: 0.0.40
codegen_flags: <defaults>
</compile_context>

<pallas_src>
import jax
import jax.numpy as jnp
from jax.experimental import pallas as pl
from jax.experimental.pallas import tpu as pltpu

# ----------------------------- config (small) -------------------------------
B = 2                  # batch
C = 3                  # input channels (ViT expects RGB)
IMG = 32               # image height/width
P = 16                 # patch size (dino-vitb16)
E = 32                 # embedding dim (stand-in for 768)
H = 2                  # attention heads
DH = E // H            # head dim
MLP = 4 * E            # MLP intermediate dim
L = 2                  # transformer layers (stand-in for 12)
HIDDEN = 16            # fc1 hidden_dim (stand-in for 512)
NUM_CLASSES = 4
GH = IMG // P
NP = GH * GH           # number of patches (4)
S = NP + 1             # real sequence length (CLS + patches) = 5
S_PAD = 8              # sequence padded to one sublane tile
CPP = C * P * P        # flattened patch size (768)
LN_EPS = 1e-12         # HF ViT layer_norm_eps
ATTN_SCALE = 1.0 / (DH ** 0.5)
SQRT1_2 = 0.7071067811865476


# --------------------------- in-kernel helpers -------------------------------
def _ln(x, g, b, eps=LN_EPS):
    mu = jnp.mean(x, axis=-1, keepdims=True)
    xc = x - mu
    var = jnp.mean(xc * xc, axis=-1, keepdims=True)
    return xc * jax.lax.rsqrt(var + eps) * g + b


def _gelu(x):
    # exact (erf) GELU, matching HF ViT default hidden_act="gelu"
    return 0.5 * x * (1.0 + jax.lax.erf(x * jnp.float32(SQRT1_2)))


# ------------------------------ fused kernel ---------------------------------
def _fused_model_kernel(
    label_ref, xpatch_ref,
    tok_bias_ref, patch_w_ref,
    ln1_g_ref, ln1_b_ref, wq_ref, bq_ref, wk_ref, bk_ref, wv_ref, bv_ref,
    wo_ref, bo_ref, ln2_g_ref, ln2_b_ref, w1_ref, b1_ref, w2_ref, b2_ref,
    lnf_g_ref, lnf_b_ref, fc1_w_ref, fc1_b_ref, fc2_w_ref, fc2_b_ref,
    logits_ref, loss_ref,
):
    f32 = jnp.float32
    bf16 = jnp.bfloat16

    # ---- token embedding: pre-padded patch slab @ patch_w + fused cls/pos/bias slab ----
    # xpatch row 0 is the (zero) CLS slot, rows 1..NP are patches, rows NP+1.. are pad.
    x = jnp.dot(xpatch_ref[...].astype(bf16), patch_w_ref[...],
                preferred_element_type=f32) + tok_bias_ref[...]            # (S_PAD, E)

    # additive key-padding mask: pad key columns get a huge negative score
    key_iota = jax.lax.broadcasted_iota(jnp.int32, (1, S_PAD), 1)
    neg_mask = jnp.where(key_iota < S, f32(0.0), f32(-1e30))               # (1, S_PAD)

    for l in range(L):
        # ---- self-attention (pre-LN), per-head weights, lane-offset-0 everywhere ----
        h = _ln(x, ln1_g_ref[l], ln1_b_ref[l]).astype(bf16)                # (S_PAD, E)
        wq_l, bq_l = wq_ref[l], bq_ref[l]
        wk_l, bk_l = wk_ref[l], bk_ref[l]
        wv_l, bv_l = wv_ref[l], bv_ref[l]
        wo_l = wo_ref[l]
        attn_out = bo_ref[l]                                               # (1, E) broadcasts
        for hh in range(H):
            q = (jnp.dot(h, wq_l[hh], preferred_element_type=f32)
                 + bq_l[hh]) * f32(ATTN_SCALE)                             # (S_PAD, DH)
            k = jnp.dot(h, wk_l[hh], preferred_element_type=f32) + bk_l[hh]
            v = jnp.dot(h, wv_l[hh], preferred_element_type=f32) + bv_l[hh]
            s = jax.lax.dot_general(q.astype(bf16), k.astype(bf16),
                                    (((1,), (1,)), ((), ())),
                                    preferred_element_type=f32) + neg_mask  # (S_PAD, S_PAD)
            m = jnp.max(s, axis=-1, keepdims=True)
            p = jnp.exp(s - m)
            p = p * pl.reciprocal(jnp.sum(p, axis=-1, keepdims=True), approx=True)
            ctx = jnp.dot(p.astype(bf16), v.astype(bf16),
                          preferred_element_type=f32)                      # (S_PAD, DH)
            # head "concat" expressed as a sum of per-head output projections
            attn_out = attn_out + jnp.dot(ctx.astype(bf16), wo_l[hh],
                                          preferred_element_type=f32)      # (S_PAD, E)
        x = x + attn_out

        # ---- MLP (pre-LN) ----
        h2 = _ln(x, ln2_g_ref[l], ln2_b_ref[l]).astype(bf16)
        m1 = jnp.dot(h2, w1_ref[l], preferred_element_type=f32) + b1_ref[l]
        x = x + jnp.dot(_gelu(m1).astype(bf16), w2_ref[l],
                        preferred_element_type=f32) + b2_ref[l]

    # ---- final LayerNorm + CLS token head (fc1 -> relu -> fc2) ----
    xf = _ln(x, lnf_g_ref[...], lnf_b_ref[...])
    cls_row = xf[0:1, :].astype(bf16)                                      # CLS is row 0
    hid = jnp.dot(cls_row, fc1_w_ref[...], preferred_element_type=f32) + fc1_b_ref[...]
    hid = jnp.maximum(hid, f32(0.0)).astype(bf16)
    logits = jnp.dot(hid, fc2_w_ref[...], preferred_element_type=f32) + fc2_b_ref[...]
    logits_ref[...] = logits.astype(logits_ref.dtype)                      # (1, NC)

    # ---- per-sample cross-entropy contribution (host sums and divides by B) ----
    lbl = label_ref[...]                                                   # (1, 1) int32
    iota = jax.lax.broadcasted_iota(jnp.int32, (1, NUM_CLASSES), 1)
    onehot = (iota == lbl).astype(f32)
    mmax = jnp.max(logits, axis=-1, keepdims=True)
    lse = jnp.log(jnp.sum(jnp.exp(logits - mmax), axis=-1, keepdims=True)) + mmax
    tgt = jnp.sum(onehot * logits, axis=-1, keepdims=True)
    loss_ref[...] = (lse - tgt).astype(loss_ref.dtype)


# ------------------------------ host wrapper ---------------------------------
def _const_spec(arr):
    nd = arr.ndim
    return pl.BlockSpec(arr.shape, lambda b, _z=(0,) * nd: _z)


_WEIGHT_ORDER = ("tok_bias", "patch_w",
                 "ln1_g", "ln1_b", "wq", "bq", "wk", "bk", "wv", "bv",
                 "wo", "bo", "ln2_g", "ln2_b", "w1", "b1", "w2", "b2",
                 "lnf_g", "lnf_b", "fc1_w", "fc1_b", "fc2_w", "fc2_b")


@jax.jit
def model_forward(pixel_values, label, params):
    # Host glue: NCHW -> (B, NP, C*P*P) patch flatten, then pad the token axis
    # to S_PAD=8 sublanes (row 0 = CLS slot, rows 1..NP = patches, rest = pad).
    x = pixel_values.reshape(B, C, GH, P, GH, P)
    x = jnp.transpose(x, (0, 2, 4, 1, 3, 5)).reshape(B, NP, CPP)
    x = jnp.pad(x, ((0, 0), (1, S_PAD - 1 - NP), (0, 0)))                  # (B, S_PAD, CPP)
    labels3 = label.reshape(B, 1, 1).astype(jnp.int32)

    weights = tuple(params[k] for k in _WEIGHT_ORDER)
    in_specs = ([pl.BlockSpec((None, 1, 1), lambda b: (b, 0, 0)),          # label
                 pl.BlockSpec((None, S_PAD, CPP), lambda b: (b, 0, 0))]    # patches
                + [_const_spec(w) for w in weights])                       # resident weights
    out_specs = (pl.BlockSpec((None, 1, NUM_CLASSES), lambda b: (b, 0, 0)),
                 pl.BlockSpec((None, 1, 1), lambda b: (b, 0, 0)))

    logits3, loss_parts = pl.pallas_call(
        _fused_model_kernel,
        out_shape=(jax.ShapeDtypeStruct((B, 1, NUM_CLASSES), jnp.float32),
                   jax.ShapeDtypeStruct((B, 1, 1), jnp.float32)),
        grid=(B,),
        in_specs=in_specs,
        out_specs=out_specs,
        compiler_params=pltpu.CompilerParams(
            dimension_semantics=("parallel",)),   # v7x: batch split across the 2 TCs
    )(labels3, x, *weights)

    logits = logits3.reshape(B, NUM_CLASSES)
    loss = jnp.sum(loss_parts) * jnp.float32(1.0 / B)   # CrossEntropy mean reduction
    return logits, loss


# ------------------------------ parameter init -------------------------------
def init_params(key):
    keys = iter(jax.random.split(key, 32))
    bf = jnp.bfloat16

    def nrm(shape, std=0.02, dtype=jnp.float32):
        return (std * jax.random.normal(next(keys), shape)).astype(dtype)

    zeros = lambda s: jnp.zeros(s, jnp.float32)
    ones = lambda s: jnp.ones(s, jnp.float32)

    cls_token = nrm((1, E))
    pos_embed = nrm((S, E))
    patch_b = zeros((1, E))
    patch_w = nrm((E, C, P, P)).reshape(E, CPP).T          # conv-as-matmul, (CPP, E)

    # Pre-fused per-token additive slab: row0 = CLS + pos0, rows1..NP = conv_bias + pos,
    # pad rows = 0.  Broadcast over the batch inside the kernel.
    tok_bias = jnp.zeros((S_PAD, E), jnp.float32)
    tok_bias = tok_bias.at[0:1, :].set(cls_token + pos_embed[0:1, :])
    tok_bias = tok_bias.at[1:1 + NP, :].set(patch_b + pos_embed[1:1 + NP, :])

    params = {
        "tok_bias": tok_bias,
        "patch_w": patch_w.astype(bf),
        "ln1_g": jnp.ones((L, 1, E), jnp.float32),
        "ln1_b": zeros((L, 1, E)),
        "wq": nrm((L, H, E, DH), dtype=bf),
        "bq": zeros((L, H, 1, DH)),
        "wk": nrm((L, H, E, DH), dtype=bf),
        "bk": zeros((L, H, 1, DH)),
        "wv": nrm((L, H, E, DH), dtype=bf),
        "bv": zeros((L, H, 1, DH)),
        "wo": nrm((L, H, DH, E), dtype=bf),
        "bo": zeros((L, 1, E)),
        "ln2_g": jnp.ones((L, 1, E), jnp.float32),
        "ln2_b": zeros((L, 1, E)),
        "w1": nrm((L, E, MLP), dtype=bf),
        "b1": zeros((L, 1, MLP)),
        "w2": nrm((L, MLP, E), dtype=bf),
        "b2": zeros((L, 1, E)),
        "lnf_g": ones((1, E)),
        "lnf_b": zeros((1, E)),
        "fc1_w": nrm((E, HIDDEN), dtype=bf),
        "fc1_b": zeros((1, HIDDEN)),
        "fc2_w": nrm((HIDDEN, NUM_CLASSES), dtype=bf),
        "fc2_b": zeros((1, NUM_CLASSES)),
    }
    return params


# ----------------------------------- main ------------------------------------
if __name__ == "__main__":
    key = jax.random.PRNGKey(0)
    k_img, k_lbl, k_par = jax.random.split(key, 3)

    image_pixel_values = jax.random.normal(k_img, (B, C, IMG, IMG), jnp.float32)
    label = jax.random.randint(k_lbl, (B,), 0, NUM_CLASSES, dtype=jnp.int32)
    params = init_params(k_par)

    pred, loss = model_forward(image_pixel_values, label, params)
    jax.block_until_ready((pred, loss))

    assert pred.shape == (B, NUM_CLASSES)
    assert loss.shape == ()
    assert bool(jnp.isfinite(loss)) and bool(jnp.all(jnp.isfinite(pred)))
    print("KERNEL_OK")
</pallas_src>

<mosaic_0001>
module attributes {stable_mosaic.version = 11 : i64} {
  func.func @_fused_model_kernel(%arg0: i32, %arg1: memref<1x1x1xi32, #tpu.memory_space<vmem>>, %arg2: memref<1x8x768xf32, #tpu.memory_space<vmem>>, %arg3: memref<8x32xf32, #tpu.memory_space<vmem>>, %arg4: memref<768x32xbf16, #tpu.memory_space<vmem>>, %arg5: memref<2x1x32xf32, #tpu.memory_space<vmem>>, %arg6: memref<2x1x32xf32, #tpu.memory_space<vmem>>, %arg7: memref<2x2x32x16xbf16, #tpu.memory_space<vmem>>, %arg8: memref<2x2x1x16xf32, #tpu.memory_space<vmem>>, %arg9: memref<2x2x32x16xbf16, #tpu.memory_space<vmem>>, %arg10: memref<2x2x1x16xf32, #tpu.memory_space<vmem>>, %arg11: memref<2x2x32x16xbf16, #tpu.memory_space<vmem>>, %arg12: memref<2x2x1x16xf32, #tpu.memory_space<vmem>>, %arg13: memref<2x2x16x32xbf16, #tpu.memory_space<vmem>>, %arg14: memref<2x1x32xf32, #tpu.memory_space<vmem>>, %arg15: memref<2x1x32xf32, #tpu.memory_space<vmem>>, %arg16: memref<2x1x32xf32, #tpu.memory_space<vmem>>, %arg17: memref<2x32x128xbf16, #tpu.memory_space<vmem>>, %arg18: memref<2x1x128xf32, #tpu.memory_space<vmem>>, %arg19: memref<2x128x32xbf16, #tpu.memory_space<vmem>>, %arg20: memref<2x1x32xf32, #tpu.memory_space<vmem>>, %arg21: memref<1x32xf32, #tpu.memory_space<vmem>>, %arg22: memref<1x32xf32, #tpu.memory_space<vmem>>, %arg23: memref<32x16xbf16, #tpu.memory_space<vmem>>, %arg24: memref<1x16xf32, #tpu.memory_space<vmem>>, %arg25: memref<16x4xbf16, #tpu.memory_space<vmem>>, %arg26: memref<1x4xf32, #tpu.memory_space<vmem>>, %arg27: memref<1x1x4xf32, #tpu.memory_space<vmem>>, %arg28: memref<1x1x1xf32, #tpu.memory_space<vmem>>) attributes {dimension_semantics = [#tpu.dimension_semantics<parallel>], iteration_bounds = array<i64: 2>, scalar_prefetch = 0 : i64, scratch_operands = 0 : i64, tpu.core_type = #tpu.core_type<tc>, window_params = [{transform_indices = @transform_0, window_bounds = array<i64: 1, 1, 1>}, {transform_indices = @transform_1, window_bounds = array<i64: 1, 8, 768>}, {pipeline_mode = #tpu.pipeline_mode<synchronous>, transform_indices = @transform_2, window_bounds = array<i64: 8, 32>}, {pipeline_mode = #tpu.pipeline_mode<synchronous>, transform_indices = @transform_3, window_bounds = array<i64: 768, 32>}, {pipeline_mode = #tpu.pipeline_mode<synchronous>, transform_indices = @transform_4, window_bounds = array<i64: 2, 1, 32>}, {pipeline_mode = #tpu.pipeline_mode<synchronous>, transform_indices = @transform_5, window_bounds = array<i64: 2, 1, 32>}, {pipeline_mode = #tpu.pipeline_mode<synchronous>, transform_indices = @transform_6, window_bounds = array<i64: 2, 2, 32, 16>}, {pipeline_mode = #tpu.pipeline_mode<synchronous>, transform_indices = @transform_7, window_bounds = array<i64: 2, 2, 1, 16>}, {pipeline_mode = #tpu.pipeline_mode<synchronous>, transform_indices = @transform_8, window_bounds = array<i64: 2, 2, 32, 16>}, {pipeline_mode = #tpu.pipeline_mode<synchronous>, transform_indices = @transform_9, window_bounds = array<i64: 2, 2, 1, 16>}, {pipeline_mode = #tpu.pipeline_mode<synchronous>, transform_indices = @transform_10, window_bounds = array<i64: 2, 2, 32, 16>}, {pipeline_mode = #tpu.pipeline_mode<synchronous>, transform_indices = @transform_11, window_bounds = array<i64: 2, 2, 1, 16>}, {pipeline_mode = #tpu.pipeline_mode<synchronous>, transform_indices = @transform_12, window_bounds = array<i64: 2, 2, 16, 32>}, {pipeline_mode = #tpu.pipeline_mode<synchronous>, transform_indices = @transform_13, window_bounds = array<i64: 2, 1, 32>}, {pipeline_mode = #tpu.pipeline_mode<synchronous>, transform_indices = @transform_14, window_bounds = array<i64: 2, 1, 32>}, {pipeline_mode = #tpu.pipeline_mode<synchronous>, transform_indices = @transform_15, window_bounds = array<i64: 2, 1, 32>}, {pipeline_mode = #tpu.pipeline_mode<synchronous>, transform_indices = @transform_16, window_bounds = array<i64: 2, 32, 128>}, {pipeline_mode = #tpu.pipeline_mode<synchronous>, transform_indices = @transform_17, window_bounds = array<i64: 2, 1, 128>}, {pipeline_mode = #tpu.pipeline_mode<synchronous>, transform_indices = @transform_18, window_bounds = array<i64: 2, 128, 32>}, {pipeline_mode = #tpu.pipeline_mode<synchronous>, transform_indices = @transform_19, window_bounds = array<i64: 2, 1, 32>}, {pipeline_mode = #tpu.pipeline_mode<synchronous>, transform_indices = @transform_20, window_bounds = array<i64: 1, 32>}, {pipeline_mode = #tpu.pipeline_mode<synchronous>, transform_indices = @transform_21, window_bounds = array<i64: 1, 32>}, {pipeline_mode = #tpu.pipeline_mode<synchronous>, transform_indices = @transform_22, window_bounds = array<i64: 32, 16>}, {pipeline_mode = #tpu.pipeline_mode<synchronous>, transform_indices = @transform_23, window_bounds = array<i64: 1, 16>}, {pipeline_mode = #tpu.pipeline_mode<synchronous>, transform_indices = @transform_24, window_bounds = array<i64: 16, 4>}, {pipeline_mode = #tpu.pipeline_mode<synchronous>, transform_indices = @transform_25, window_bounds = array<i64: 1, 4>}, {transform_indices = @transform_26, window_bounds = array<i64: 1, 1, 4>}, {transform_indices = @transform_27, window_bounds = array<i64: 1, 1, 1>}]} {
    %c0 = arith.constant 0 : index
    %c0_0 = arith.constant 0 : index
    %c0_1 = arith.constant 0 : index
    %0 = vector.load %arg2[%c0, %c0_0, %c0_1] : memref<1x8x768xf32, #tpu.memory_space<vmem>>, vector<1x8x768xf32>
    %1 = vector.shape_cast %0 : vector<1x8x768xf32> to vector<8x768xf32>
    %2 = arith.truncf %1 : vector<8x768xf32> to vector<8x768xbf16>
    %c0_2 = arith.constant 0 : index
    %c0_3 = arith.constant 0 : index
    %3 = vector.load %arg4[%c0_2, %c0_3] : memref<768x32xbf16, #tpu.memory_space<vmem>>, vector<768x32xbf16>
    %cst = arith.constant dense<0.000000e+00> : vector<8x32xf32>
    %4 = tpu.matmul %2, %3, %cst {dimension_numbers = #tpu.dot_dimension_numbers<[1], [0], [0], [1], [0, 0, 1, 1], [], []>} : vector<8x768xbf16>, vector<768x32xbf16>, vector<8x32xf32> -> vector<8x32xf32>
    %c0_4 = arith.constant 0 : index
    %c0_5 = arith.constant 0 : index
    %5 = vector.load %arg3[%c0_4, %c0_5] : memref<8x32xf32, #tpu.memory_space<vmem>>, vector<8x32xf32>
    %6 = arith.addf %4, %5 : vector<8x32xf32>
    %7 = tpu.iota {dimensions = array<i32: 1>} : vector<1x8xi32>
    %c5_i32 = arith.constant 5 : i32
    %8 = vector.broadcast %c5_i32 : i32 to vector<1x8xi32>
    %9 = arith.cmpi slt, %7, %8 : vector<1x8xi32>
    %cst_6 = arith.constant 0.000000e+00 : f32
    %cst_7 = arith.constant -1.000000e+30 : f32
    %10 = vector.broadcast %cst_6 : f32 to vector<1x8xf32>
    %11 = vector.broadcast %cst_7 : f32 to vector<1x8xf32>
    %12 = arith.select %9, %10, %11 : vector<1x8xi1>, vector<1x8xf32>
    %c0_8 = arith.constant 0 : index
    %c0_9 = arith.constant 0 : index
    %c0_10 = arith.constant 0 : index
    %13 = vector.load %arg5[%c0_8, %c0_9, %c0_10] : memref<2x1x32xf32, #tpu.memory_space<vmem>>, vector<1x1x32xf32>
    %14 = vector.shape_cast %13 : vector<1x1x32xf32> to vector<1x32xf32>
    %c0_11 = arith.constant 0 : index
    %c0_12 = arith.constant 0 : index
    %c0_13 = arith.constant 0 : index
    %15 = vector.load %arg6[%c0_11, %c0_12, %c0_13] : memref<2x1x32xf32, #tpu.memory_space<vmem>>, vector<1x1x32xf32>
    %16 = vector.shape_cast %15 : vector<1x1x32xf32> to vector<1x32xf32>
    %cst_14 = arith.constant dense<0.000000e+00> : vector<8xf32>
    %17 = vector.multi_reduction <add>, %6, %cst_14 [1] : vector<8x32xf32> to vector<8xf32>
    %18 = vector.shape_cast %17 : vector<8xf32> to vector<8x1xf32>
    %cst_15 = arith.constant 3.200000e+01 : f32
    %19 = vector.broadcast %cst_15 : f32 to vector<8x1xf32>
    %20 = arith.divf %18, %19 : vector<8x1xf32>
    %21 = vector.broadcast %20 : vector<8x1xf32> to vector<8x32xf32>
    %22 = arith.subf %6, %21 : vector<8x32xf32>
    %23 = arith.mulf %22, %22 : vector<8x32xf32>
    %cst_16 = arith.constant dense<0.000000e+00> : vector<8xf32>
    %24 = vector.multi_reduction <add>, %23, %cst_16 [1] : vector<8x32xf32> to vector<8xf32>
    %25 = vector.shape_cast %24 : vector<8xf32> to vector<8x1xf32>
    %cst_17 = arith.constant 3.200000e+01 : f32
    %26 = vector.broadcast %cst_17 : f32 to vector<8x1xf32>
    %27 = arith.divf %25, %26 : vector<8x1xf32>
    %cst_18 = arith.constant 9.99999996E-13 : f32
    %28 = vector.broadcast %cst_18 : f32 to vector<8x1xf32>
    %29 = arith.addf %27, %28 : vector<8x1xf32>
    %30 = math.rsqrt %29 : vector<8x1xf32>
    %31 = vector.broadcast %30 : vector<8x1xf32> to vector<8x32xf32>
    %32 = arith.mulf %22, %31 : vector<8x32xf32>
    %33 = vector.broadcast %14 : vector<1x32xf32> to vector<8x32xf32>
    %34 = arith.mulf %32, %33 : vector<8x32xf32>
    %35 = vector.broadcast %16 : vector<1x32xf32> to vector<8x32xf32>
    %36 = arith.addf %34, %35 : vector<8x32xf32>
    %37 = arith.truncf %36 : vector<8x32xf32> to vector<8x32xbf16>
    %c0_19 = arith.constant 0 : index
    %c0_20 = arith.constant 0 : index
    %c0_21 = arith.constant 0 : index
    %c0_22 = arith.constant 0 : index
    %38 = vector.load %arg7[%c0_19, %c0_20, %c0_21, %c0_22] : memref<2x2x32x16xbf16, #tpu.memory_space<vmem>>, vector<1x2x32x16xbf16>
    %39 = vector.shape_cast %38 : vector<1x2x32x16xbf16> to vector<2x32x16xbf16>
    %c0_23 = arith.constant 0 : index
    %c0_24 = arith.constant 0 : index
    %c0_25 = arith.constant 0 : index
    %c0_26 = arith.constant 0 : index
    %40 = vector.load %arg8[%c0_23, %c0_24, %c0_25, %c0_26] : memref<2x2x1x16xf32, #tpu.memory_space<vmem>>, vector<1x2x1x16xf32>
    %41 = vector.shape_cast %40 : vector<1x2x1x16xf32> to vector<2x1x16xf32>
    %c0_27 = arith.constant 0 : index
    %c0_28 = arith.constant 0 : index
    %c0_29 = arith.constant 0 : index
    %c0_30 = arith.constant 0 : index
    %42 = vector.load %arg9[%c0_27, %c0_28, %c0_29, %c0_30] : memref<2x2x32x16xbf16, #tpu.memory_space<vmem>>, vector<1x2x32x16xbf16>
    %43 = vector.shape_cast %42 : vector<1x2x32x16xbf16> to vector<2x32x16xbf16>
    %c0_31 = arith.constant 0 : index
    %c0_32 = arith.constant 0 : index
    %c0_33 = arith.constant 0 : index
    %c0_34 = arith.constant 0 : index
    %44 = vector.load %arg10[%c0_31, %c0_32, %c0_33, %c0_34] : memref<2x2x1x16xf32, #tpu.memory_space<vmem>>, vector<1x2x1x16xf32>
    %45 = vector.shape_cast %44 : vector<1x2x1x16xf32> to vector<2x1x16xf32>
    %c0_35 = arith.constant 0 : index
    %c0_36 = arith.constant 0 : index
    %c0_37 = arith.constant 0 : index
    %c0_38 = arith.constant 0 : index
    %46 = vector.load %arg11[%c0_35, %c0_36, %c0_37, %c0_38] : memref<2x2x32x16xbf16, #tpu.memory_space<vmem>>, vector<1x2x32x16xbf16>
    %47 = vector.shape_cast %46 : vector<1x2x32x16xbf16> to vector<2x32x16xbf16>
    %c0_39 = arith.constant 0 : index
    %c0_40 = arith.constant 0 : index
    %c0_41 = arith.constant 0 : index
    %c0_42 = arith.constant 0 : index
    %48 = vector.load %arg12[%c0_39, %c0_40, %c0_41, %c0_42] : memref<2x2x1x16xf32, #tpu.memory_space<vmem>>, vector<1x2x1x16xf32>
    %49 = vector.shape_cast %48 : vector<1x2x1x16xf32> to vector<2x1x16xf32>
    %c0_43 = arith.constant 0 : index
    %c0_44 = arith.constant 0 : index
    %c0_45 = arith.constant 0 : index
    %c0_46 = arith.constant 0 : index
    %50 = vector.load %arg13[%c0_43, %c0_44, %c0_45, %c0_46] : memref<2x2x16x32xbf16, #tpu.memory_space<vmem>>, vector<1x2x16x32xbf16>
    %51 = vector.shape_cast %50 : vector<1x2x16x32xbf16> to vector<2x16x32xbf16>
    %c0_47 = arith.constant 0 : index
    %c0_48 = arith.constant 0 : index
    %c0_49 = arith.constant 0 : index
    %52 = vector.load %arg14[%c0_47, %c0_48, %c0_49] : memref<2x1x32xf32, #tpu.memory_space<vmem>>, vector<1x1x32xf32>
    %53 = vector.shape_cast %52 : vector<1x1x32xf32> to vector<1x32xf32>
    %54 = vector.extract_strided_slice %39 {offsets = [0, 0, 0], sizes = [1, 32, 16], strides = [1, 1, 1]} : vector<2x32x16xbf16> to vector<1x32x16xbf16>
    %55 = vector.shape_cast %54 : vector<1x32x16xbf16> to vector<32x16xbf16>
    %cst_50 = arith.constant dense<0.000000e+00> : vector<8x16xf32>
    %56 = tpu.matmul %37, %55, %cst_50 {dimension_numbers = #tpu.dot_dimension_numbers<[1], [0], [0], [1], [0, 0, 1, 1], [], []>} : vector<8x32xbf16>, vector<32x16xbf16>, vector<8x16xf32> -> vector<8x16xf32>
    %57 = vector.extract_strided_slice %41 {offsets = [0, 0, 0], sizes = [1, 1, 16], strides = [1, 1, 1]} : vector<2x1x16xf32> to vector<1x1x16xf32>
    %58 = vector.shape_cast %57 : vector<1x1x16xf32> to vector<1x16xf32>
    %59 = vector.broadcast %58 : vector<1x16xf32> to vector<8x16xf32>
    %60 = arith.addf %56, %59 : vector<8x16xf32>
    %cst_51 = arith.constant 2.500000e-01 : f32
    %61 = vector.broadcast %cst_51 : f32 to vector<8x16xf32>
    %62 = arith.mulf %60, %61 : vector<8x16xf32>
    %63 = vector.extract_strided_slice %43 {offsets = [0, 0, 0], sizes = [1, 32, 16], strides = [1, 1, 1]} : vector<2x32x16xbf16> to vector<1x32x16xbf16>
    %64 = vector.shape_cast %63 : vector<1x32x16xbf16> to vector<32x16xbf16>
    %cst_52 = arith.constant dense<0.000000e+00> : vector<8x16xf32>
    %65 = tpu.matmul %37, %64, %cst_52 {dimension_numbers = #tpu.dot_dimension_numbers<[1], [0], [0], [1], [0, 0, 1, 1], [], []>} : vector<8x32xbf16>, vector<32x16xbf16>, vector<8x16xf32> -> vector<8x16xf32>
    %66 = vector.extract_strided_slice %45 {offsets = [0, 0, 0], sizes = [1, 1, 16], strides = [1, 1, 1]} : vector<2x1x16xf32> to vector<1x1x16xf32>
    %67 = vector.shape_cast %66 : vector<1x1x16xf32> to vector<1x16xf32>
    %68 = vector.broadcast %67 : vector<1x16xf32> to vector<8x16xf32>
    %69 = arith.addf %65, %68 : vector<8x16xf32>
    %70 = vector.extract_strided_slice %47 {offsets = [0, 0, 0], sizes = [1, 32, 16], strides = [1, 1, 1]} : vector<2x32x16xbf16> to vector<1x32x16xbf16>
    %71 = vector.shape_cast %70 : vector<1x32x16xbf16> to vector<32x16xbf16>
    %cst_53 = arith.constant dense<0.000000e+00> : vector<8x16xf32>
    %72 = tpu.matmul %37, %71, %cst_53 {dimension_numbers = #tpu.dot_dimension_numbers<[1], [0], [0], [1], [0, 0, 1, 1], [], []>} : vector<8x32xbf16>, vector<32x16xbf16>, vector<8x16xf32> -> vector<8x16xf32>
    %73 = vector.extract_strided_slice %49 {offsets = [0, 0, 0], sizes = [1, 1, 16], strides = [1, 1, 1]} : vector<2x1x16xf32> to vector<1x1x16xf32>
    %74 = vector.shape_cast %73 : vector<1x1x16xf32> to vector<1x16xf32>
    %75 = vector.broadcast %74 : vector<1x16xf32> to vector<8x16xf32>
    %76 = arith.addf %72, %75 : vector<8x16xf32>
    %77 = arith.truncf %62 : vector<8x16xf32> to vector<8x16xbf16>
    %78 = arith.truncf %69 : vector<8x16xf32> to vector<8x16xbf16>
    %cst_54 = arith.constant dense<0.000000e+00> : vector<8x8xf32>
    %79 = tpu.matmul %77, %78, %cst_54 {dimension_numbers = #tpu.dot_dimension_numbers<[1], [1], [0], [0], [0, 0, 1, 0], [], []>} : vector<8x16xbf16>, vector<8x16xbf16>, vector<8x8xf32> -> vector<8x8xf32>
    %80 = vector.broadcast %12 : vector<1x8xf32> to vector<8x8xf32>
    %81 = arith.addf %79, %80 : vector<8x8xf32>
    %cst_55 = arith.constant dense<0xFF800000> : vector<8xf32>
    %82 = vector.multi_reduction <maximumf>, %81, %cst_55 [1] : vector<8x8xf32> to vector<8xf32>
    %83 = vector.shape_cast %82 : vector<8xf32> to vector<8x1xf32>
    %84 = vector.broadcast %83 : vector<8x1xf32> to vector<8x8xf32>
    %85 = arith.subf %81, %84 : vector<8x8xf32>
    %86 = math.exp %85 : vector<8x8xf32>
    %cst_56 = arith.constant dense<0.000000e+00> : vector<8xf32>
    %87 = vector.multi_reduction <add>, %86, %cst_56 [1] : vector<8x8xf32> to vector<8xf32>
    %88 = vector.shape_cast %87 : vector<8xf32> to vector<8x1xf32>
    %89 = tpu.reciprocal %88 {approx = true} : vector<8x1xf32> -> vector<8x1xf32>
    %90 = vector.broadcast %89 : vector<8x1xf32> to vector<8x8xf32>
    %91 = arith.mulf %86, %90 : vector<8x8xf32>
    %92 = arith.truncf %91 : vector<8x8xf32> to vector<8x8xbf16>
    %93 = arith.truncf %76 : vector<8x16xf32> to vector<8x16xbf16>
    %cst_57 = arith.constant dense<0.000000e+00> : vector<8x16xf32>
    %94 = tpu.matmul %92, %93, %cst_57 {dimension_numbers = #tpu.dot_dimension_numbers<[1], [0], [0], [1], [0, 0, 1, 1], [], []>} : vector<8x8xbf16>, vector<8x16xbf16>, vector<8x16xf32> -> vector<8x16xf32>
    %95 = arith.truncf %94 : vector<8x16xf32> to vector<8x16xbf16>
    %96 = vector.extract_strided_slice %51 {offsets = [0, 0, 0], sizes = [1, 16, 32], strides = [1, 1, 1]} : vector<2x16x32xbf16> to vector<1x16x32xbf16>
    %97 = vector.shape_cast %96 : vector<1x16x32xbf16> to vector<16x32xbf16>
    %cst_58 = arith.constant dense<0.000000e+00> : vector<8x32xf32>
    %98 = tpu.matmul %95, %97, %cst_58 {dimension_numbers = #tpu.dot_dimension_numbers<[1], [0], [0], [1], [0, 0, 1, 1], [], []>} : vector<8x16xbf16>, vector<16x32xbf16>, vector<8x32xf32> -> vector<8x32xf32>
    %99 = vector.broadcast %53 : vector<1x32xf32> to vector<8x32xf32>
    %100 = arith.addf %99, %98 : vector<8x32xf32>
    %101 = vector.extract_strided_slice %39 {offsets = [1, 0, 0], sizes = [1, 32, 16], strides = [1, 1, 1]} : vector<2x32x16xbf16> to vector<1x32x16xbf16>
    %102 = vector.shape_cast %101 : vector<1x32x16xbf16> to vector<32x16xbf16>
    %cst_59 = arith.constant dense<0.000000e+00> : vector<8x16xf32>
    %103 = tpu.matmul %37, %102, %cst_59 {dimension_numbers = #tpu.dot_dimension_numbers<[1], [0], [0], [1], [0, 0, 1, 1], [], []>} : vector<8x32xbf16>, vector<32x16xbf16>, vector<8x16xf32> -> vector<8x16xf32>
    %104 = vector.extract_strided_slice %41 {offsets = [1, 0, 0], sizes = [1, 1, 16], strides = [1, 1, 1]} : vector<2x1x16xf32> to vector<1x1x16xf32>
    %105 = vector.shape_cast %104 : vector<1x1x16xf32> to vector<1x16xf32>
    %106 = vector.broadcast %105 : vector<1x16xf32> to vector<8x16xf32>
    %107 = arith.addf %103, %106 : vector<8x16xf32>
    %cst_60 = arith.constant 2.500000e-01 : f32
    %108 = vector.broadcast %cst_60 : f32 to vector<8x16xf32>
    %109 = arith.mulf %107, %108 : vector<8x16xf32>
    %110 = vector.extract_strided_slice %43 {offsets = [1, 0, 0], sizes = [1, 32, 16], strides = [1, 1, 1]} : vector<2x32x16xbf16> to vector<1x32x16xbf16>
    %111 = vector.shape_cast %110 : vector<1x32x16xbf16> to vector<32x16xbf16>
    %cst_61 = arith.constant dense<0.000000e+00> : vector<8x16xf32>
    %112 = tpu.matmul %37, %111, %cst_61 {dimension_numbers = #tpu.dot_dimension_numbers<[1], [0], [0], [1], [0, 0, 1, 1], [], []>} : vector<8x32xbf16>, vector<32x16xbf16>, vector<8x16xf32> -> vector<8x16xf32>
    %113 = vector.extract_strided_slice %45 {offsets = [1, 0, 0], sizes = [1, 1, 16], strides = [1, 1, 1]} : vector<2x1x16xf32> to vector<1x1x16xf32>
    %114 = vector.shape_cast %113 : vector<1x1x16xf32> to vector<1x16xf32>
    %115 = vector.broadcast %114 : vector<1x16xf32> to vector<8x16xf32>
    %116 = arith.addf %112, %115 : vector<8x16xf32>
    %117 = vector.extract_strided_slice %47 {offsets = [1, 0, 0], sizes = [1, 32, 16], strides = [1, 1, 1]} : vector<2x32x16xbf16> to vector<1x32x16xbf16>
    %118 = vector.shape_cast %117 : vector<1x32x16xbf16> to vector<32x16xbf16>
    %cst_62 = arith.constant dense<0.000000e+00> : vector<8x16xf32>
    %119 = tpu.matmul %37, %118, %cst_62 {dimension_numbers = #tpu.dot_dimension_numbers<[1], [0], [0], [1], [0, 0, 1, 1], [], []>} : vector<8x32xbf16>, vector<32x16xbf16>, vector<8x16xf32> -> vector<8x16xf32>
    %120 = vector.extract_strided_slice %49 {offsets = [1, 0, 0], sizes = [1, 1, 16], strides = [1, 1, 1]} : vector<2x1x16xf32> to vector<1x1x16xf32>
    %121 = vector.shape_cast %120 : vector<1x1x16xf32> to vector<1x16xf32>
    %122 = vector.broadcast %121 : vector<1x16xf32> to vector<8x16xf32>
    %123 = arith.addf %119, %122 : vector<8x16xf32>
    %124 = arith.truncf %109 : vector<8x16xf32> to vector<8x16xbf16>
    %125 = arith.truncf %116 : vector<8x16xf32> to vector<8x16xbf16>
    %cst_63 = arith.constant dense<0.000000e+00> : vector<8x8xf32>
    %126 = tpu.matmul %124, %125, %cst_63 {dimension_numbers = #tpu.dot_dimension_numbers<[1], [1], [0], [0], [0, 0, 1, 0], [], []>} : vector<8x16xbf16>, vector<8x16xbf16>, vector<8x8xf32> -> vector<8x8xf32>
    %127 = vector.broadcast %12 : vector<1x8xf32> to vector<8x8xf32>
    %128 = arith.addf %126, %127 : vector<8x8xf32>
    %cst_64 = arith.constant dense<0xFF800000> : vector<8xf32>
    %129 = vector.multi_reduction <maximumf>, %128, %cst_64 [1] : vector<8x8xf32> to vector<8xf32>
    %130 = vector.shape_cast %129 : vector<8xf32> to vector<8x1xf32>
    %131 = vector.broadcast %130 : vector<8x1xf32> to vector<8x8xf32>
    %132 = arith.subf %128, %131 : vector<8x8xf32>
    %133 = math.exp %132 : vector<8x8xf32>
    %cst_65 = arith.constant dense<0.000000e+00> : vector<8xf32>
    %134 = vector.multi_reduction <add>, %133, %cst_65 [1] : vector<8x8xf32> to vector<8xf32>
    %135 = vector.shape_cast %134 : vector<8xf32> to vector<8x1xf32>
    %136 = tpu.reciprocal %135 {approx = true} : vector<8x1xf32> -> vector<8x1xf32>
    %137 = vector.broadcast %136 : vector<8x1xf32> to vector<8x8xf32>
    %138 = arith.mulf %133, %137 : vector<8x8xf32>
    %139 = arith.truncf %138 : vector<8x8xf32> to vector<8x8xbf16>
    %140 = arith.truncf %123 : vector<8x16xf32> to vector<8x16xbf16>
    %cst_66 = arith.constant dense<0.000000e+00> : vector<8x16xf32>
    %141 = tpu.matmul %139, %140, %cst_66 {dimension_numbers = #tpu.dot_dimension_numbers<[1], [0], [0], [1], [0, 0, 1, 1], [], []>} : vector<8x8xbf16>, vector<8x16xbf16>, vector<8x16xf32> -> vector<8x16xf32>
    %142 = arith.truncf %141 : vector<8x16xf32> to vector<8x16xbf16>
    %143 = vector.extract_strided_slice %51 {offsets = [1, 0, 0], sizes = [1, 16, 32], strides = [1, 1, 1]} : vector<2x16x32xbf16> to vector<1x16x32xbf16>
    %144 = vector.shape_cast %143 : vector<1x16x32xbf16> to vector<16x32xbf16>
    %cst_67 = arith.constant dense<0.000000e+00> : vector<8x32xf32>
    %145 = tpu.matmul %142, %144, %cst_67 {dimension_numbers = #tpu.dot_dimension_numbers<[1], [0], [0], [1], [0, 0, 1, 1], [], []>} : vector<8x16xbf16>, vector<16x32xbf16>, vector<8x32xf32> -> vector<8x32xf32>
    %146 = arith.addf %100, %145 : vector<8x32xf32>
    %147 = arith.addf %6, %146 : vector<8x32xf32>
    %c0_68 = arith.constant 0 : index
    %c0_69 = arith.constant 0 : index
    %c0_70 = arith.constant 0 : index
    %148 = vector.load %arg15[%c0_68, %c0_69, %c0_70] : memref<2x1x32xf32, #tpu.memory_space<vmem>>, vector<1x1x32xf32>
    %149 = vector.shape_cast %148 : vector<1x1x32xf32> to vector<1x32xf32>
    %c0_71 = arith.constant 0 : index
    %c0_72 = arith.constant 0 : index
    %c0_73 = arith.constant 0 : index
    %150 = vector.load %arg16[%c0_71, %c0_72, %c0_73] : memref<2x1x32xf32, #tpu.memory_space<vmem>>, vector<1x1x32xf32>
    %151 = vector.shape_cast %150 : vector<1x1x32xf32> to vector<1x32xf32>
    %cst_74 = arith.constant dense<0.000000e+00> : vector<8xf32>
    %152 = vector.multi_reduction <add>, %147, %cst_74 [1] : vector<8x32xf32> to vector<8xf32>
    %153 = vector.shape_cast %152 : vector<8xf32> to vector<8x1xf32>
    %cst_75 = arith.constant 3.200000e+01 : f32
    %154 = vector.broadcast %cst_75 : f32 to vector<8x1xf32>
    %155 = arith.divf %153, %154 : vector<8x1xf32>
    %156 = vector.broadcast %155 : vector<8x1xf32> to vector<8x32xf32>
    %157 = arith.subf %147, %156 : vector<8x32xf32>
    %158 = arith.mulf %157, %157 : vector<8x32xf32>
    %cst_76 = arith.constant dense<0.000000e+00> : vector<8xf32>
    %159 = vector.multi_reduction <add>, %158, %cst_76 [1] : vector<8x32xf32> to vector<8xf32>
    %160 = vector.shape_cast %159 : vector<8xf32> to vector<8x1xf32>
    %cst_77 = arith.constant 3.200000e+01 : f32
    %161 = vector.broadcast %cst_77 : f32 to vector<8x1xf32>
    %162 = arith.divf %160, %161 : vector<8x1xf32>
    %cst_78 = arith.constant 9.99999996E-13 : f32
    %163 = vector.broadcast %cst_78 : f32 to vector<8x1xf32>
    %164 = arith.addf %162, %163 : vector<8x1xf32>
    %165 = math.rsqrt %164 : vector<8x1xf32>
    %166 = vector.broadcast %165 : vector<8x1xf32> to vector<8x32xf32>
    %167 = arith.mulf %157, %166 : vector<8x32xf32>
    %168 = vector.broadcast %149 : vector<1x32xf32> to vector<8x32xf32>
    %169 = arith.mulf %167, %168 : vector<8x32xf32>
    %170 = vector.broadcast %151 : vector<1x32xf32> to vector<8x32xf32>
    %171 = arith.addf %169, %170 : vector<8x32xf32>
    %172 = arith.truncf %171 : vector<8x32xf32> to vector<8x32xbf16>
    %c0_79 = arith.constant 0 : index
    %c0_80 = arith.constant 0 : index
    %c0_81 = arith.constant 0 : index
    %173 = vector.load %arg17[%c0_79, %c0_80, %c0_81] : memref<2x32x128xbf16, #tpu.memory_space<vmem>>, vector<1x32x128xbf16>
    %174 = vector.shape_cast %173 : vector<1x32x128xbf16> to vector<32x128xbf16>
    %cst_82 = arith.constant dense<0.000000e+00> : vector<8x128xf32>
    %175 = tpu.matmul %172, %174, %cst_82 {dimension_numbers = #tpu.dot_dimension_numbers<[1], [0], [0], [1], [0, 0, 1, 1], [], []>} : vector<8x32xbf16>, vector<32x128xbf16>, vector<8x128xf32> -> vector<8x128xf32>
    %c0_83 = arith.constant 0 : index
    %c0_84 = arith.constant 0 : index
    %c0_85 = arith.constant 0 : index
    %176 = vector.load %arg18[%c0_83, %c0_84, %c0_85] : memref<2x1x128xf32, #tpu.memory_space<vmem>>, vector<1x1x128xf32>
    %177 = vector.shape_cast %176 : vector<1x1x128xf32> to vector<1x128xf32>
    %178 = vector.broadcast %177 : vector<1x128xf32> to vector<8x128xf32>
    %179 = arith.addf %175, %178 : vector<8x128xf32>
    %cst_86 = arith.constant 5.000000e-01 : f32
    %180 = vector.broadcast %cst_86 : f32 to vector<8x128xf32>
    %181 = arith.mulf %180, %179 : vector<8x128xf32>
    %cst_87 = arith.constant 0.707106769 : f32
    %182 = vector.broadcast %cst_87 : f32 to vector<8x128xf32>
    %183 = arith.mulf %179, %182 : vector<8x128xf32>
    %184 = math.erf %183 : vector<8x128xf32>
    %cst_88 = arith.constant 1.000000e+00 : f32
    %185 = vector.broadcast %cst_88 : f32 to vector<8x128xf32>
    %186 = arith.addf %185, %184 : vector<8x128xf32>
    %187 = arith.mulf %181, %186 : vector<8x128xf32>
    %188 = arith.truncf %187 : vector<8x128xf32> to vector<8x128xbf16>
    %c0_89 = arith.constant 0 : index
    %c0_90 = arith.constant 0 : index
    %c0_91 = arith.constant 0 : index
    %189 = vector.load %arg19[%c0_89, %c0_90, %c0_91] : memref<2x128x32xbf16, #tpu.memory_space<vmem>>, vector<1x128x32xbf16>
    %190 = vector.shape_cast %189 : vector<1x128x32xbf16> to vector<128x32xbf16>
    %cst_92 = arith.constant dense<0.000000e+00> : vector<8x32xf32>
    %191 = tpu.matmul %188, %190, %cst_92 {dimension_numbers = #tpu.dot_dimension_numbers<[1], [0], [0], [1], [0, 0, 1, 1], [], []>} : vector<8x128xbf16>, vector<128x32xbf16>, vector<8x32xf32> -> vector<8x32xf32>
    %192 = arith.addf %147, %191 : vector<8x32xf32>
    %c0_93 = arith.constant 0 : index
    %c0_94 = arith.constant 0 : index
    %c0_95 = arith.constant 0 : index
    %193 = vector.load %arg20[%c0_93, %c0_94, %c0_95] : memref<2x1x32xf32, #tpu.memory_space<vmem>>, vector<1x1x32xf32>
    %194 = vector.shape_cast %193 : vector<1x1x32xf32> to vector<1x32xf32>
    %195 = vector.broadcast %194 : vector<1x32xf32> to vector<8x32xf32>
    %196 = arith.addf %192, %195 : vector<8x32xf32>
    %c1 = arith.constant 1 : index
    %c0_96 = arith.constant 0 : index
    %c0_97 = arith.constant 0 : index
    %197 = vector.load %arg5[%c1, %c0_96, %c0_97] : memref<2x1x32xf32, #tpu.memory_space<vmem>>, vector<1x1x32xf32>
    %198 = vector.shape_cast %197 : vector<1x1x32xf32> to vector<1x32xf32>
    %c1_98 = arith.constant 1 : index
    %c0_99 = arith.constant 0 : index
    %c0_100 = arith.constant 0 : index
    %199 = vector.load %arg6[%c1_98, %c0_99, %c0_100] : memref<2x1x32xf32, #tpu.memory_space<vmem>>, vector<1x1x32xf32>
    %200 = vector.shape_cast %199 : vector<1x1x32xf32> to vector<1x32xf32>
    %cst_101 = arith.constant dense<0.000000e+00> : vector<8xf32>
    %201 = vector.multi_reduction <add>, %196, %cst_101 [1] : vector<8x32xf32> to vector<8xf32>
    %202 = vector.shape_cast %201 : vector<8xf32> to vector<8x1xf32>
    %cst_102 = arith.constant 3.200000e+01 : f32
    %203 = vector.broadcast %cst_102 : f32 to vector<8x1xf32>
    %204 = arith.divf %202, %203 : vector<8x1xf32>
    %205 = vector.broadcast %204 : vector<8x1xf32> to vector<8x32xf32>
    %206 = arith.subf %196, %205 : vector<8x32xf32>
    %207 = arith.mulf %206, %206 : vector<8x32xf32>
    %cst_103 = arith.constant dense<0.000000e+00> : vector<8xf32>
    %208 = vector.multi_reduction <add>, %207, %cst_103 [1] : vector<8x32xf32> to vector<8xf32>
    %209 = vector.shape_cast %208 : vector<8xf32> to vector<8x1xf32>
    %cst_104 = arith.constant 3.200000e+01 : f32
    %210 = vector.broadcast %cst_104 : f32 to vector<8x1xf32>
    %211 = arith.divf %209, %210 : vector<8x1xf32>
    %cst_105 = arith.constant 9.99999996E-13 : f32
    %212 = vector.broadcast %cst_105 : f32 to vector<8x1xf32>
    %213 = arith.addf %211, %212 : vector<8x1xf32>
    %214 = math.rsqrt %213 : vector<8x1xf32>
    %215 = vector.broadcast %214 : vector<8x1xf32> to vector<8x32xf32>
    %216 = arith.mulf %206, %215 : vector<8x32xf32>
    %217 = vector.broadcast %198 : vector<1x32xf32> to vector<8x32xf32>
    %218 = arith.mulf %216, %217 : vector<8x32xf32>
    %219 = vector.broadcast %200 : vector<1x32xf32> to vector<8x32xf32>
    %220 = arith.addf %218, %219 : vector<8x32xf32>
    %221 = arith.truncf %220 : vector<8x32xf32> to vector<8x32xbf16>
    %c1_106 = arith.constant 1 : index
    %c0_107 = arith.constant 0 : index
    %c0_108 = arith.constant 0 : index
    %c0_109 = arith.constant 0 : index
    %222 = vector.load %arg7[%c1_106, %c0_107, %c0_108, %c0_109] : memref<2x2x32x16xbf16, #tpu.memory_space<vmem>>, vector<1x2x32x16xbf16>
    %223 = vector.shape_cast %222 : vector<1x2x32x16xbf16> to vector<2x32x16xbf16>
    %c1_110 = arith.constant 1 : index
    %c0_111 = arith.constant 0 : index
    %c0_112 = arith.constant 0 : index
    %c0_113 = arith.constant 0 : index
    %224 = vector.load %arg8[%c1_110, %c0_111, %c0_112, %c0_113] : memref<2x2x1x16xf32, #tpu.memory_space<vmem>>, vector<1x2x1x16xf32>
    %225 = vector.shape_cast %224 : vector<1x2x1x16xf32> to vector<2x1x16xf32>
    %c1_114 = arith.constant 1 : index
    %c0_115 = arith.constant 0 : index
    %c0_116 = arith.constant 0 : index
    %c0_117 = arith.constant 0 : index
    %226 = vector.load %arg9[%c1_114, %c0_115, %c0_116, %c0_117] : memref<2x2x32x16xbf16, #tpu.memory_space<vmem>>, vector<1x2x32x16xbf16>
    %227 = vector.shape_cast %226 : vector<1x2x32x16xbf16> to vector<2x32x16xbf16>
    %c1_118 = arith.constant 1 : index
    %c0_119 = arith.constant 0 : index
    %c0_120 = arith.constant 0 : index
    %c0_121 = arith.constant 0 : index
    %228 = vector.load %arg10[%c1_118, %c0_119, %c0_120, %c0_121] : memref<2x2x1x16xf32, #tpu.memory_space<vmem>>, vector<1x2x1x16xf32>
    %229 = vector.shape_cast %228 : vector<1x2x1x16xf32> to vector<2x1x16xf32>
    %c1_122 = arith.constant 1 : index
    %c0_123 = arith.constant 0 : index
    %c0_124 = arith.constant 0 : index
    %c0_125 = arith.constant 0 : index
    %230 = vector.load %arg11[%c1_122, %c0_123, %c0_124, %c0_125] : memref<2x2x32x16xbf16, #tpu.memory_space<vmem>>, vector<1x2x32x16xbf16>
    %231 = vector.shape_cast %230 : vector<1x2x32x16xbf16> to vector<2x32x16xbf16>
    %c1_126 = arith.constant 1 : index
    %c0_127 = arith.constant 0 : index
    %c0_128 = arith.constant 0 : index
    %c0_129 = arith.constant 0 : index
    %232 = vector.load %arg12[%c1_126, %c0_127, %c0_128, %c0_129] : memref<2x2x1x16xf32, #tpu.memory_space<vmem>>, vector<1x2x1x16xf32>
    %233 = vector.shape_cast %232 : vector<1x2x1x16xf32> to vector<2x1x16xf32>
    %c1_130 = arith.constant 1 : index
    %c0_131 = arith.constant 0 : index
    %c0_132 = arith.constant 0 : index
    %c0_133 = arith.constant 0 : index
    %234 = vector.load %arg13[%c1_130, %c0_131, %c0_132, %c0_133] : memref<2x2x16x32xbf16, #tpu.memory_space<vmem>>, vector<1x2x16x32xbf16>
    %235 = vector.shape_cast %234 : vector<1x2x16x32xbf16> to vector<2x16x32xbf16>
    %c1_134 = arith.constant 1 : index
    %c0_135 = arith.constant 0 : index
    %c0_136 = arith.constant 0 : index
    %236 = vector.load %arg14[%c1_134, %c0_135, %c0_136] : memref<2x1x32xf32, #tpu.memory_space<vmem>>, vector<1x1x32xf32>
    %237 = vector.shape_cast %236 : vector<1x1x32xf32> to vector<1x32xf32>
    %238 = vector.extract_strided_slice %223 {offsets = [0, 0, 0], sizes = [1, 32, 16], strides = [1, 1, 1]} : vector<2x32x16xbf16> to vector<1x32x16xbf16>
    %239 = vector.shape_cast %238 : vector<1x32x16xbf16> to vector<32x16xbf16>
    %cst_137 = arith.constant dense<0.000000e+00> : vector<8x16xf32>
    %240 = tpu.matmul %221, %239, %cst_137 {dimension_numbers = #tpu.dot_dimension_numbers<[1], [0], [0], [1], [0, 0, 1, 1], [], []>} : vector<8x32xbf16>, vector<32x16xbf16>, vector<8x16xf32> -> vector<8x16xf32>
    %241 = vector.extract_strided_slice %225 {offsets = [0, 0, 0], sizes = [1, 1, 16], strides = [1, 1, 1]} : vector<2x1x16xf32> to vector<1x1x16xf32>
    %242 = vector.shape_cast %241 : vector<1x1x16xf32> to vector<1x16xf32>
    %243 = vector.broadcast %242 : vector<1x16xf32> to vector<8x16xf32>
    %244 = arith.addf %240, %243 : vector<8x16xf32>
    %cst_138 = arith.constant 2.500000e-01 : f32
    %245 = vector.broadcast %cst_138 : f32 to vector<8x16xf32>
    %246 = arith.mulf %244, %245 : vector<8x16xf32>
    %247 = vector.extract_strided_slice %227 {offsets = [0, 0, 0], sizes = [1, 32, 16], strides = [1, 1, 1]} : vector<2x32x16xbf16> to vector<1x32x16xbf16>
    %248 = vector.shape_cast %247 : vector<1x32x16xbf16> to vector<32x16xbf16>
    %cst_139 = arith.constant dense<0.000000e+00> : vector<8x16xf32>
    %249 = tpu.matmul %221, %248, %cst_139 {dimension_numbers = #tpu.dot_dimension_numbers<[1], [0], [0], [1], [0, 0, 1, 1], [], []>} : vector<8x32xbf16>, vector<32x16xbf16>, vector<8x16xf32> -> vector<8x16xf32>
    %250 = vector.extract_strided_slice %229 {offsets = [0, 0, 0], sizes = [1, 1, 16], strides = [1, 1, 1]} : vector<2x1x16xf32> to vector<1x1x16xf32>
    %251 = vector.shape_cast %250 : vector<1x1x16xf32> to vector<1x16xf32>
    %252 = vector.broadcast %251 : vector<1x16xf32> to vector<8x16xf32>
    %253 = arith.addf %249, %252 : vector<8x16xf32>
    %254 = vector.extract_strided_slice %231 {offsets = [0, 0, 0], sizes = [1, 32, 16], strides = [1, 1, 1]} : vector<2x32x16xbf16> to vector<1x32x16xbf16>
    %255 = vector.shape_cast %254 : vector<1x32x16xbf16> to vector<32x16xbf16>
    %cst_140 = arith.constant dense<0.000000e+00> : vector<8x16xf32>
    %256 = tpu.matmul %221, %255, %cst_140 {dimension_numbers = #tpu.dot_dimension_numbers<[1], [0], [0], [1], [0, 0, 1, 1], [], []>} : vector<8x32xbf16>, vector<32x16xbf16>, vector<8x16xf32> -> vector<8x16xf32>
    %257 = vector.extract_strided_slice %233 {offsets = [0, 0, 0], sizes = [1, 1, 16], strides = [1, 1, 1]} : vector<2x1x16xf32> to vector<1x1x16xf32>
    %258 = vector.shape_cast %257 : vector<1x1x16xf32> to vector<1x16xf32>
    %259 = vector.broadcast %258 : vector<1x16xf32> to vector<8x16xf32>
    %260 = arith.addf %256, %259 : vector<8x16xf32>
    %261 = arith.truncf %246 : vector<8x16xf32> to vector<8x16xbf16>
    %262 = arith.truncf %253 : vector<8x16xf32> to vector<8x16xbf16>
    %cst_141 = arith.constant dense<0.000000e+00> : vector<8x8xf32>
    %263 = tpu.matmul %261, %262, %cst_141 {dimension_numbers = #tpu.dot_dimension_numbers<[1], [1], [0], [0], [0, 0, 1, 0], [], []>} : vector<8x16xbf16>, vector<8x16xbf16>, vector<8x8xf32> -> vector<8x8xf32>
    %264 = vector.broadcast %12 : vector<1x8xf32> to vector<8x8xf32>
    %265 = arith.addf %263, %264 : vector<8x8xf32>
    %cst_142 = arith.constant dense<0xFF800000> : vector<8xf32>
    %266 = vector.multi_reduction <maximumf>, %265, %cst_142 [1] : vector<8x8xf32> to vector<8xf32>
    %267 = vector.shape_cast %266 : vector<8xf32> to vector<8x1xf32>
    %268 = vector.broadcast %267 : vector<8x1xf32> to vector<8x8xf32>
    %269 = arith.subf %265, %268 : vector<8x8xf32>
    %270 = math.exp %269 : vector<8x8xf32>
    %cst_143 = arith.constant dense<0.000000e+00> : vector<8xf32>
    %271 = vector.multi_reduction <add>, %270, %cst_143 [1] : vector<8x8xf32> to vector<8xf32>
    %272 = vector.shape_cast %271 : vector<8xf32> to vector<8x1xf32>
    %273 = tpu.reciprocal %272 {approx = true} : vector<8x1xf32> -> vector<8x1xf32>
    %274 = vector.broadcast %273 : vector<8x1xf32> to vector<8x8xf32>
    %275 = arith.mulf %270, %274 : vector<8x8xf32>
    %276 = arith.truncf %275 : vector<8x8xf32> to vector<8x8xbf16>
    %277 = arith.truncf %260 : vector<8x16xf32> to vector<8x16xbf16>
    %cst_144 = arith.constant dense<0.000000e+00> : vector<8x16xf32>
    %278 = tpu.matmul %276, %277, %cst_144 {dimension_numbers = #tpu.dot_dimension_numbers<[1], [0], [0], [1], [0, 0, 1, 1], [], []>} : vector<8x8xbf16>, vector<8x16xbf16>, vector<8x16xf32> -> vector<8x16xf32>
    %279 = arith.truncf %278 : vector<8x16xf32> to vector<8x16xbf16>
    %280 = vector.extract_strided_slice %235 {offsets = [0, 0, 0], sizes = [1, 16, 32], strides = [1, 1, 1]} : vector<2x16x32xbf16> to vector<1x16x32xbf16>
    %281 = vector.shape_cast %280 : vector<1x16x32xbf16> to vector<16x32xbf16>
    %cst_145 = arith.constant dense<0.000000e+00> : vector<8x32xf32>
    %282 = tpu.matmul %279, %281, %cst_145 {dimension_numbers = #tpu.dot_dimension_numbers<[1], [0], [0], [1], [0, 0, 1, 1], [], []>} : vector<8x16xbf16>, vector<16x32xbf16>, vector<8x32xf32> -> vector<8x32xf32>
    %283 = vector.broadcast %237 : vector<1x32xf32> to vector<8x32xf32>
    %284 = arith.addf %283, %282 : vector<8x32xf32>
    %285 = vector.extract_strided_slice %223 {offsets = [1, 0, 0], sizes = [1, 32, 16], strides = [1, 1, 1]} : vector<2x32x16xbf16> to vector<1x32x16xbf16>
    %286 = vector.shape_cast %285 : vector<1x32x16xbf16> to vector<32x16xbf16>
    %cst_146 = arith.constant dense<0.000000e+00> : vector<8x16xf32>
    %287 = tpu.matmul %221, %286, %cst_146 {dimension_numbers = #tpu.dot_dimension_numbers<[1], [0], [0], [1], [0, 0, 1, 1], [], []>} : vector<8x32xbf16>, vector<32x16xbf16>, vector<8x16xf32> -> vector<8x16xf32>
    %288 = vector.extract_strided_slice %225 {offsets = [1, 0, 0], sizes = [1, 1, 16], strides = [1, 1, 1]} : vector<2x1x16xf32> to vector<1x1x16xf32>
    %289 = vector.shape_cast %288 : vector<1x1x16xf32> to vector<1x16xf32>
    %290 = vector.broadcast %289 : vector<1x16xf32> to vector<8x16xf32>
    %291 = arith.addf %287, %290 : vector<8x16xf32>
    %cst_147 = arith.constant 2.500000e-01 : f32
    %292 = vector.broadcast %cst_147 : f32 to vector<8x16xf32>
    %293 = arith.mulf %291, %292 : vector<8x16xf32>
    %294 = vector.extract_strided_slice %227 {offsets = [1, 0, 0], sizes = [1, 32, 16], strides = [1, 1, 1]} : vector<2x32x16xbf16> to vector<1x32x16xbf16>
    %295 = vector.shape_cast %294 : vector<1x32x16xbf16> to vector<32x16xbf16>
    %cst_148 = arith.constant dense<0.000000e+00> : vector<8x16xf32>
    %296 = tpu.matmul %221, %295, %cst_148 {dimension_numbers = #tpu.dot_dimension_numbers<[1], [0], [0], [1], [0, 0, 1, 1], [], []>} : vector<8x32xbf16>, vector<32x16xbf16>, vector<8x16xf32> -> vector<8x16xf32>
    %297 = vector.extract_strided_slice %229 {offsets = [1, 0, 0], sizes = [1, 1, 16], strides = [1, 1, 1]} : vector<2x1x16xf32> to vector<1x1x16xf32>
    %298 = vector.shape_cast %297 : vector<1x1x16xf32> to vector<1x16xf32>
    %299 = vector.broadcast %298 : vector<1x16xf32> to vector<8x16xf32>
    %300 = arith.addf %296, %299 : vector<8x16xf32>
    %301 = vector.extract_strided_slice %231 {offsets = [1, 0, 0], sizes = [1, 32, 16], strides = [1, 1, 1]} : vector<2x32x16xbf16> to vector<1x32x16xbf16>
    %302 = vector.shape_cast %301 : vector<1x32x16xbf16> to vector<32x16xbf16>
    %cst_149 = arith.constant dense<0.000000e+00> : vector<8x16xf32>
    %303 = tpu.matmul %221, %302, %cst_149 {dimension_numbers = #tpu.dot_dimension_numbers<[1], [0], [0], [1], [0, 0, 1, 1], [], []>} : vector<8x32xbf16>, vector<32x16xbf16>, vector<8x16xf32> -> vector<8x16xf32>
    %304 = vector.extract_strided_slice %233 {offsets = [1, 0, 0], sizes = [1, 1, 16], strides = [1, 1, 1]} : vector<2x1x16xf32> to vector<1x1x16xf32>
    %305 = vector.shape_cast %304 : vector<1x1x16xf32> to vector<1x16xf32>
    %306 = vector.broadcast %305 : vector<1x16xf32> to vector<8x16xf32>
    %307 = arith.addf %303, %306 : vector<8x16xf32>
    %308 = arith.truncf %293 : vector<8x16xf32> to vector<8x16xbf16>
    %309 = arith.truncf %300 : vector<8x16xf32> to vector<8x16xbf16>
    %cst_150 = arith.constant dense<0.000000e+00> : vector<8x8xf32>
    %310 = tpu.matmul %308, %309, %cst_150 {dimension_numbers = #tpu.dot_dimension_numbers<[1], [1], [0], [0], [0, 0, 1, 0], [], []>} : vector<8x16xbf16>, vector<8x16xbf16>, vector<8x8xf32> -> vector<8x8xf32>
    %311 = vector.broadcast %12 : vector<1x8xf32> to vector<8x8xf32>
    %312 = arith.addf %310, %311 : vector<8x8xf32>
    %cst_151 = arith.constant dense<0xFF800000> : vector<8xf32>
    %313 = vector.multi_reduction <maximumf>, %312, %cst_151 [1] : vector<8x8xf32> to vector<8xf32>
    %314 = vector.shape_cast %313 : vector<8xf32> to vector<8x1xf32>
    %315 = vector.broadcast %314 : vector<8x1xf32> to vector<8x8xf32>
    %316 = arith.subf %312, %315 : vector<8x8xf32>
    %317 = math.exp %316 : vector<8x8xf32>
    %cst_152 = arith.constant dense<0.000000e+00> : vector<8xf32>
    %318 = vector.multi_reduction <add>, %317, %cst_152 [1] : vector<8x8xf32> to vector<8xf32>
    %319 = vector.shape_cast %318 : vector<8xf32> to vector<8x1xf32>
    %320 = tpu.reciprocal %319 {approx = true} : vector<8x1xf32> -> vector<8x1xf32>
    %321 = vector.broadcast %320 : vector<8x1xf32> to vector<8x8xf32>
    %322 = arith.mulf %317, %321 : vector<8x8xf32>
    %323 = arith.truncf %322 : vector<8x8xf32> to vector<8x8xbf16>
    %324 = arith.truncf %307 : vector<8x16xf32> to vector<8x16xbf16>
    %cst_153 = arith.constant dense<0.000000e+00> : vector<8x16xf32>
    %325 = tpu.matmul %323, %324, %cst_153 {dimension_numbers = #tpu.dot_dimension_numbers<[1], [0], [0], [1], [0, 0, 1, 1], [], []>} : vector<8x8xbf16>, vector<8x16xbf16>, vector<8x16xf32> -> vector<8x16xf32>
    %326 = arith.truncf %325 : vector<8x16xf32> to vector<8x16xbf16>
    %327 = vector.extract_strided_slice %235 {offsets = [1, 0, 0], sizes = [1, 16, 32], strides = [1, 1, 1]} : vector<2x16x32xbf16> to vector<1x16x32xbf16>
    %328 = vector.shape_cast %327 : vector<1x16x32xbf16> to vector<16x32xbf16>
    %cst_154 = arith.constant dense<0.000000e+00> : vector<8x32xf32>
    %329 = tpu.matmul %326, %328, %cst_154 {dimension_numbers = #tpu.dot_dimension_numbers<[1], [0], [0], [1], [0, 0, 1, 1], [], []>} : vector<8x16xbf16>, vector<16x32xbf16>, vector<8x32xf32> -> vector<8x32xf32>
    %330 = arith.addf %284, %329 : vector<8x32xf32>
    %331 = arith.addf %196, %330 : vector<8x32xf32>
    %c1_155 = arith.constant 1 : index
    %c0_156 = arith.constant 0 : index
    %c0_157 = arith.constant 0 : index
    %332 = vector.load %arg15[%c1_155, %c0_156, %c0_157] : memref<2x1x32xf32, #tpu.memory_space<vmem>>, vector<1x1x32xf32>
    %333 = vector.shape_cast %332 : vector<1x1x32xf32> to vector<1x32xf32>
    %c1_158 = arith.constant 1 : index
    %c0_159 = arith.constant 0 : index
    %c0_160 = arith.constant 0 : index
    %334 = vector.load %arg16[%c1_158, %c0_159, %c0_160] : memref<2x1x32xf32, #tpu.memory_space<vmem>>, vector<1x1x32xf32>
    %335 = vector.shape_cast %334 : vector<1x1x32xf32> to vector<1x32xf32>
    %cst_161 = arith.constant dense<0.000000e+00> : vector<8xf32>
    %336 = vector.multi_reduction <add>, %331, %cst_161 [1] : vector<8x32xf32> to vector<8xf32>
    %337 = vector.shape_cast %336 : vector<8xf32> to vector<8x1xf32>
    %cst_162 = arith.constant 3.200000e+01 : f32
    %338 = vector.broadcast %cst_162 : f32 to vector<8x1xf32>
    %339 = arith.divf %337, %338 : vector<8x1xf32>
    %340 = vector.broadcast %339 : vector<8x1xf32> to vector<8x32xf32>
    %341 = arith.subf %331, %340 : vector<8x32xf32>
    %342 = arith.mulf %341, %341 : vector<8x32xf32>
    %cst_163 = arith.constant dense<0.000000e+00> : vector<8xf32>
    %343 = vector.multi_reduction <add>, %342, %cst_163 [1] : vector<8x32xf32> to vector<8xf32>
    %344 = vector.shape_cast %343 : vector<8xf32> to vector<8x1xf32>
    %cst_164 = arith.constant 3.200000e+01 : f32
    %345 = vector.broadcast %cst_164 : f32 to vector<8x1xf32>
    %346 = arith.divf %344, %345 : vector<8x1xf32>
    %cst_165 = arith.constant 9.99999996E-13 : f32
    %347 = vector.broadcast %cst_165 : f32 to vector<8x1xf32>
    %348 = arith.addf %346, %347 : vector<8x1xf32>
    %349 = math.rsqrt %348 : vector<8x1xf32>
    %350 = vector.broadcast %349 : vector<8x1xf32> to vector<8x32xf32>
    %351 = arith.mulf %341, %350 : vector<8x32xf32>
    %352 = vector.broadcast %333 : vector<1x32xf32> to vector<8x32xf32>
    %353 = arith.mulf %351, %352 : vector<8x32xf32>
    %354 = vector.broadcast %335 : vector<1x32xf32> to vector<8x32xf32>
    %355 = arith.addf %353, %354 : vector<8x32xf32>
    %356 = arith.truncf %355 : vector<8x32xf32> to vector<8x32xbf16>
    %c1_166 = arith.constant 1 : index
    %c0_167 = arith.constant 0 : index
    %c0_168 = arith.constant 0 : index
    %357 = vector.load %arg17[%c1_166, %c0_167, %c0_168] : memref<2x32x128xbf16, #tpu.memory_space<vmem>>, vector<1x32x128xbf16>
    %358 = vector.shape_cast %357 : vector<1x32x128xbf16> to vector<32x128xbf16>
    %cst_169 = arith.constant dense<0.000000e+00> : vector<8x128xf32>
    %359 = tpu.matmul %356, %358, %cst_169 {dimension_numbers = #tpu.dot_dimension_numbers<[1], [0], [0], [1], [0, 0, 1, 1], [], []>} : vector<8x32xbf16>, vector<32x128xbf16>, vector<8x128xf32> -> vector<8x128xf32>
    %c1_170 = arith.constant 1 : index
    %c0_171 = arith.constant 0 : index
    %c0_172 = arith.constant 0 : index
    %360 = vector.load %arg18[%c1_170, %c0_171, %c0_172] : memref<2x1x128xf32, #tpu.memory_space<vmem>>, vector<1x1x128xf32>
    %361 = vector.shape_cast %360 : vector<1x1x128xf32> to vector<1x128xf32>
    %362 = vector.broadcast %361 : vector<1x128xf32> to vector<8x128xf32>
    %363 = arith.addf %359, %362 : vector<8x128xf32>
    %cst_173 = arith.constant 5.000000e-01 : f32
    %364 = vector.broadcast %cst_173 : f32 to vector<8x128xf32>
    %365 = arith.mulf %364, %363 : vector<8x128xf32>
    %cst_174 = arith.constant 0.707106769 : f32
    %366 = vector.broadcast %cst_174 : f32 to vector<8x128xf32>
    %367 = arith.mulf %363, %366 : vector<8x128xf32>
    %368 = math.erf %367 : vector<8x128xf32>
    %cst_175 = arith.constant 1.000000e+00 : f32
    %369 = vector.broadcast %cst_175 : f32 to vector<8x128xf32>
    %370 = arith.addf %369, %368 : vector<8x128xf32>
    %371 = arith.mulf %365, %370 : vector<8x128xf32>
    %372 = arith.truncf %371 : vector<8x128xf32> to vector<8x128xbf16>
    %c1_176 = arith.constant 1 : index
    %c0_177 = arith.constant 0 : index
    %c0_178 = arith.constant 0 : index
    %373 = vector.load %arg19[%c1_176, %c0_177, %c0_178] : memref<2x128x32xbf16, #tpu.memory_space<vmem>>, vector<1x128x32xbf16>
    %374 = vector.shape_cast %373 : vector<1x128x32xbf16> to vector<128x32xbf16>
    %cst_179 = arith.constant dense<0.000000e+00> : vector<8x32xf32>
    %375 = tpu.matmul %372, %374, %cst_179 {dimension_numbers = #tpu.dot_dimension_numbers<[1], [0], [0], [1], [0, 0, 1, 1], [], []>} : vector<8x128xbf16>, vector<128x32xbf16>, vector<8x32xf32> -> vector<8x32xf32>
    %376 = arith.addf %331, %375 : vector<8x32xf32>
    %c1_180 = arith.constant 1 : index
    %c0_181 = arith.constant 0 : index
    %c0_182 = arith.constant 0 : index
    %377 = vector.load %arg20[%c1_180, %c0_181, %c0_182] : memref<2x1x32xf32, #tpu.memory_space<vmem>>, vector<1x1x32xf32>
    %378 = vector.shape_cast %377 : vector<1x1x32xf32> to vector<1x32xf32>
    %379 = vector.broadcast %378 : vector<1x32xf32> to vector<8x32xf32>
    %380 = arith.addf %376, %379 : vector<8x32xf32>
    %c0_183 = arith.constant 0 : index
    %c0_184 = arith.constant 0 : index
    %381 = vector.load %arg21[%c0_183, %c0_184] : memref<1x32xf32, #tpu.memory_space<vmem>>, vector<1x32xf32>
    %c0_185 = arith.constant 0 : index
    %c0_186 = arith.constant 0 : index
    %382 = vector.load %arg22[%c0_185, %c0_186] : memref<1x32xf32, #tpu.memory_space<vmem>>, vector<1x32xf32>
    %cst_187 = arith.constant dense<0.000000e+00> : vector<8xf32>
    %383 = vector.multi_reduction <add>, %380, %cst_187 [1] : vector<8x32xf32> to vector<8xf32>
    %384 = vector.shape_cast %383 : vector<8xf32> to vector<8x1xf32>
    %cst_188 = arith.constant 3.200000e+01 : f32
    %385 = vector.broadcast %cst_188 : f32 to vector<8x1xf32>
    %386 = arith.divf %384, %385 : vector<8x1xf32>
    %387 = vector.broadcast %386 : vector<8x1xf32> to vector<8x32xf32>
    %388 = arith.subf %380, %387 : vector<8x32xf32>
    %389 = arith.mulf %388, %388 : vector<8x32xf32>
    %cst_189 = arith.constant dense<0.000000e+00> : vector<8xf32>
    %390 = vector.multi_reduction <add>, %389, %cst_189 [1] : vector<8x32xf32> to vector<8xf32>
    %391 = vector.shape_cast %390 : vector<8xf32> to vector<8x1xf32>
    %cst_190 = arith.constant 3.200000e+01 : f32
    %392 = vector.broadcast %cst_190 : f32 to vector<8x1xf32>
    %393 = arith.divf %391, %392 : vector<8x1xf32>
    %cst_191 = arith.constant 9.99999996E-13 : f32
    %394 = vector.broadcast %cst_191 : f32 to vector<8x1xf32>
    %395 = arith.addf %393, %394 : vector<8x1xf32>
    %396 = math.rsqrt %395 : vector<8x1xf32>
    %397 = vector.broadcast %396 : vector<8x1xf32> to vector<8x32xf32>
    %398 = arith.mulf %388, %397 : vector<8x32xf32>
    %399 = vector.broadcast %381 : vector<1x32xf32> to vector<8x32xf32>
    %400 = arith.mulf %398, %399 : vector<8x32xf32>
    %401 = vector.broadcast %382 : vector<1x32xf32> to vector<8x32xf32>
    %402 = arith.addf %400, %401 : vector<8x32xf32>
    %403 = vector.extract_strided_slice %402 {offsets = [0, 0], sizes = [1, 32], strides = [1, 1]} : vector<8x32xf32> to vector<1x32xf32>
    %404 = arith.truncf %403 : vector<1x32xf32> to vector<1x32xbf16>
    %c0_192 = arith.constant 0 : index
    %c0_193 = arith.constant 0 : index
    %405 = vector.load %arg23[%c0_192, %c0_193] : memref<32x16xbf16, #tpu.memory_space<vmem>>, vector<32x16xbf16>
    %cst_194 = arith.constant dense<0.000000e+00> : vector<1x16xf32>
    %406 = tpu.matmul %404, %405, %cst_194 {dimension_numbers = #tpu.dot_dimension_numbers<[1], [0], [0], [1], [0, 0, 1, 1], [], []>} : vector<1x32xbf16>, vector<32x16xbf16>, vector<1x16xf32> -> vector<1x16xf32>
    %c0_195 = arith.constant 0 : index
    %c0_196 = arith.constant 0 : index
    %407 = vector.load %arg24[%c0_195, %c0_196] : memref<1x16xf32, #tpu.memory_space<vmem>>, vector<1x16xf32>
    %408 = arith.addf %406, %407 : vector<1x16xf32>
    %cst_197 = arith.constant 0.000000e+00 : f32
    %409 = vector.broadcast %cst_197 : f32 to vector<1x16xf32>
    %410 = arith.maximumf %408, %409 : vector<1x16xf32>
    %411 = arith.truncf %410 : vector<1x16xf32> to vector<1x16xbf16>
    %c0_198 = arith.constant 0 : index
    %c0_199 = arith.constant 0 : index
    %412 = vector.load %arg25[%c0_198, %c0_199] : memref<16x4xbf16, #tpu.memory_space<vmem>>, vector<16x4xbf16>
    %cst_200 = arith.constant dense<0.000000e+00> : vector<1x4xf32>
    %413 = tpu.matmul %411, %412, %cst_200 {dimension_numbers = #tpu.dot_dimension_numbers<[1], [0], [0], [1], [0, 0, 1, 1], [], []>} : vector<1x16xbf16>, vector<16x4xbf16>, vector<1x4xf32> -> vector<1x4xf32>
    %c0_201 = arith.constant 0 : index
    %c0_202 = arith.constant 0 : index
    %414 = vector.load %arg26[%c0_201, %c0_202] : memref<1x4xf32, #tpu.memory_space<vmem>>, vector<1x4xf32>
    %415 = arith.addf %413, %414 : vector<1x4xf32>
    %c0_203 = arith.constant 0 : index
    %c0_204 = arith.constant 0 : index
    %c0_205 = arith.constant 0 : index
    %416 = vector.load %arg27[%c0_203, %c0_204, %c0_205] : memref<1x1x4xf32, #tpu.memory_space<vmem>>, vector<1x1x4xf32>
    %417 = vector.shape_cast %416 : vector<1x1x4xf32> to vector<1x4xf32>
    %418 = vector.shape_cast %415 : vector<1x4xf32> to vector<1x1x4xf32>
    tpu.vector_store %arg27[%c0_203, %c0_204, %c0_205], %418 {strides = array<i32>} : memref<1x1x4xf32, #tpu.memory_space<vmem>>, vector<1x1x4xf32>,
    %c0_206 = arith.constant 0 : index
    %c0_207 = arith.constant 0 : index
    %c0_208 = arith.constant 0 : index
    %419 = vector.load %arg1[%c0_206, %c0_207, %c0_208] : memref<1x1x1xi32, #tpu.memory_space<vmem>>, vector<1x1x1xi32>
    %420 = vector.shape_cast %419 : vector<1x1x1xi32> to vector<1x1xi32>
    %421 = tpu.iota {dimensions = array<i32: 1>} : vector<1x4xi32>
    %422 = vector.broadcast %420 : vector<1x1xi32> to vector<1x4xi32>
    %423 = arith.cmpi eq, %421, %422 : vector<1x4xi32>
    %424 = arith.extui %423 : vector<1x4xi1> to vector<1x4xi32>
    %425 = arith.sitofp %424 : vector<1x4xi32> to vector<1x4xf32>
    %cst_209 = arith.constant dense<0xFF800000> : vector<1xf32>
    %426 = vector.multi_reduction <maximumf>, %415, %cst_209 [1] : vector<1x4xf32> to vector<1xf32>
    %427 = vector.shape_cast %426 : vector<1xf32> to vector<1x1xf32>
    %428 = vector.broadcast %427 : vector<1x1xf32> to vector<1x4xf32>
    %429 = arith.subf %415, %428 : vector<1x4xf32>
    %430 = math.exp %429 : vector<1x4xf32>
    %cst_210 = arith.constant dense<0.000000e+00> : vector<1xf32>
    %431 = vector.multi_reduction <add>, %430, %cst_210 [1] : vector<1x4xf32> to vector<1xf32>
    %432 = vector.shape_cast %431 : vector<1xf32> to vector<1x1xf32>
    %433 = math.log %432 : vector<1x1xf32>
    %434 = arith.addf %433, %427 : vector<1x1xf32>
    %435 = arith.mulf %425, %415 : vector<1x4xf32>
    %cst_211 = arith.constant dense<0.000000e+00> : vector<1xf32>
    %436 = vector.multi_reduction <add>, %435, %cst_211 [1] : vector<1x4xf32> to vector<1xf32>
    %437 = vector.shape_cast %436 : vector<1xf32> to vector<1x1xf32>
    %438 = arith.subf %434, %437 : vector<1x1xf32>
    %c0_212 = arith.constant 0 : index
    %c0_213 = arith.constant 0 : index
    %c0_214 = arith.constant 0 : index
    %439 = vector.load %arg28[%c0_212, %c0_213, %c0_214] : memref<1x1x1xf32, #tpu.memory_space<vmem>>, vector<1x1x1xf32>
    %440 = vector.shape_cast %439 : vector<1x1x1xf32> to vector<1x1xf32>
    %441 = vector.shape_cast %438 : vector<1x1xf32> to vector<1x1x1xf32>
    tpu.vector_store %arg28[%c0_212, %c0_213, %c0_214], %441 {strides = array<i32>} : memref<1x1x1xf32, #tpu.memory_space<vmem>>, vector<1x1x1xf32>,
    return
  }
  func.func @transform_0(%arg0: i32) -> (i32, i32, i32) {
    %c0_i32 = arith.constant 0 : i32
    %c0_i32_0 = arith.constant 0 : i32
    %c0_i32_1 = arith.constant 0 : i32
    return %arg0, %c0_i32, %c0_i32_0 : i32, i32, i32
  }
  func.func @transform_1(%arg0: i32) -> (i32, i32, i32) {
    %c0_i32 = arith.constant 0 : i32
    %c0_i32_0 = arith.constant 0 : i32
    %c0_i32_1 = arith.constant 0 : i32
    return %arg0, %c0_i32, %c0_i32_0 : i32, i32, i32
  }
  func.func @transform_2(%arg0: i32) -> (i32, i32) {
    %c0_i32 = arith.constant 0 : i32
    %c0_i32_0 = arith.constant 0 : i32
    %c0_i32_1 = arith.constant 0 : i32
    return %c0_i32, %c0_i32_0 : i32, i32
  }
  func.func @transform_3(%arg0: i32) -> (i32, i32) {
    %c0_i32 = arith.constant 0 : i32
    %c0_i32_0 = arith.constant 0 : i32
    %c0_i32_1 = arith.constant 0 : i32
    return %c0_i32, %c0_i32_0 : i32, i32
  }
  func.func @transform_4(%arg0: i32) -> (i32, i32, i32) {
    %c0_i32 = arith.constant 0 : i32
    %c0_i32_0 = arith.constant 0 : i32
    %c0_i32_1 = arith.constant 0 : i32
    %c0_i32_2 = arith.constant 0 : i32
    return %c0_i32, %c0_i32_0, %c0_i32_1 : i32, i32, i32
  }
  func.func @transform_5(%arg0: i32) -> (i32, i32, i32) {
    %c0_i32 = arith.constant 0 : i32
    %c0_i32_0 = arith.constant 0 : i32
    %c0_i32_1 = arith.constant 0 : i32
    %c0_i32_2 = arith.constant 0 : i32
    return %c0_i32, %c0_i32_0, %c0_i32_1 : i32, i32, i32
  }
  func.func @transform_6(%arg0: i32) -> (i32, i32, i32, i32) {
    %c0_i32 = arith.constant 0 : i32
    %c0_i32_0 = arith.constant 0 : i32
    %c0_i32_1 = arith.constant 0 : i32
    %c0_i32_2 = arith.constant 0 : i32
    %c0_i32_3 = arith.constant 0 : i32
    return %c0_i32, %c0_i32_0, %c0_i32_1, %c0_i32_2 : i32, i32, i32, i32
  }
  func.func @transform_7(%arg0: i32) -> (i32, i32, i32, i32) {
    %c0_i32 = arith.constant 0 : i32
    %c0_i32_0 = arith.constant 0 : i32
    %c0_i32_1 = arith.constant 0 : i32
    %c0_i32_2 = arith.constant 0 : i32
    %c0_i32_3 = arith.constant 0 : i32
    return %c0_i32, %c0_i32_0, %c0_i32_1, %c0_i32_2 : i32, i32, i32, i32
  }
  func.func @transform_8(%arg0: i32) -> (i32, i32, i32, i32) {
    %c0_i32 = arith.constant 0 : i32
    %c0_i32_0 = arith.constant 0 : i32
    %c0_i32_1 = arith.constant 0 : i32
    %c0_i32_2 = arith.constant 0 : i32
    %c0_i32_3 = arith.constant 0 : i32
    return %c0_i32, %c0_i32_0, %c0_i32_1, %c0_i32_2 : i32, i32, i32, i32
  }
  func.func @transform_9(%arg0: i32) -> (i32, i32, i32, i32) {
    %c0_i32 = arith.constant 0 : i32
    %c0_i32_0 = arith.constant 0 : i32
    %c0_i32_1 = arith.constant 0 : i32
    %c0_i32_2 = arith.constant 0 : i32
    %c0_i32_3 = arith.constant 0 : i32
    return %c0_i32, %c0_i32_0, %c0_i32_1, %c0_i32_2 : i32, i32, i32, i32
  }
  func.func @transform_10(%arg0: i32) -> (i32, i32, i32, i32) {
    %c0_i32 = arith.constant 0 : i32
    %c0_i32_0 = arith.constant 0 : i32
    %c0_i32_1 = arith.constant 0 : i32
    %c0_i32_2 = arith.constant 0 : i32
    %c0_i32_3 = arith.constant 0 : i32
    return %c0_i32, %c0_i32_0, %c0_i32_1, %c0_i32_2 : i32, i32, i32, i32
  }
  func.func @transform_11(%arg0: i32) -> (i32, i32, i32, i32) {
    %c0_i32 = arith.constant 0 : i32
    %c0_i32_0 = arith.constant 0 : i32
    %c0_i32_1 = arith.constant 0 : i32
    %c0_i32_2 = arith.constant 0 : i32
    %c0_i32_3 = arith.constant 0 : i32
    return %c0_i32, %c0_i32_0, %c0_i32_1, %c0_i32_2 : i32, i32, i32, i32
  }
  func.func @transform_12(%arg0: i32) -> (i32, i32, i32, i32) {
    %c0_i32 = arith.constant 0 : i32
    %c0_i32_0 = arith.constant 0 : i32
    %c0_i32_1 = arith.constant 0 : i32
    %c0_i32_2 = arith.constant 0 : i32
    %c0_i32_3 = arith.constant 0 : i32
    return %c0_i32, %c0_i32_0, %c0_i32_1, %c0_i32_2 : i32, i32, i32, i32
  }
  func.func @transform_13(%arg0: i32) -> (i32, i32, i32) {
    %c0_i32 = arith.constant 0 : i32
    %c0_i32_0 = arith.constant 0 : i32
    %c0_i32_1 = arith.constant 0 : i32
    %c0_i32_2 = arith.constant 0 : i32
    return %c0_i32, %c0_i32_0, %c0_i32_1 : i32, i32, i32
  }
  func.func @transform_14(%arg0: i32) -> (i32, i32, i32) {
    %c0_i32 = arith.constant 0 : i32
    %c0_i32_0 = arith.constant 0 : i32
    %c0_i32_1 = arith.constant 0 : i32
    %c0_i32_2 = arith.constant 0 : i32
    return %c0_i32, %c0_i32_0, %c0_i32_1 : i32, i32, i32
  }
  func.func @transform_15(%arg0: i32) -> (i32, i32, i32) {
    %c0_i32 = arith.constant 0 : i32
    %c0_i32_0 = arith.constant 0 : i32
    %c0_i32_1 = arith.constant 0 : i32
    %c0_i32_2 = arith.constant 0 : i32
    return %c0_i32, %c0_i32_0, %c0_i32_1 : i32, i32, i32
  }
  func.func @transform_16(%arg0: i32) -> (i32, i32, i32) {
    %c0_i32 = arith.constant 0 : i32
    %c0_i32_0 = arith.constant 0 : i32
    %c0_i32_1 = arith.constant 0 : i32
    %c0_i32_2 = arith.constant 0 : i32
    return %c0_i32, %c0_i32_0, %c0_i32_1 : i32, i32, i32
  }
  func.func @transform_17(%arg0: i32) -> (i32, i32, i32) {
    %c0_i32 = arith.constant 0 : i32
    %c0_i32_0 = arith.constant 0 : i32
    %c0_i32_1 = arith.constant 0 : i32
    %c0_i32_2 = arith.constant 0 : i32
    return %c0_i32, %c0_i32_0, %c0_i32_1 : i32, i32, i32
  }
  func.func @transform_18(%arg0: i32) -> (i32, i32, i32) {
    %c0_i32 = arith.constant 0 : i32
    %c0_i32_0 = arith.constant 0 : i32
    %c0_i32_1 = arith.constant 0 : i32
    %c0_i32_2 = arith.constant 0 : i32
    return %c0_i32, %c0_i32_0, %c0_i32_1 : i32, i32, i32
  }
  func.func @transform_19(%arg0: i32) -> (i32, i32, i32) {
    %c0_i32 = arith.constant 0 : i32
    %c0_i32_0 = arith.constant 0 : i32
    %c0_i32_1 = arith.constant 0 : i32
    %c0_i32_2 = arith.constant 0 : i32
    return %c0_i32, %c0_i32_0, %c0_i32_1 : i32, i32, i32
  }
  func.func @transform_20(%arg0: i32) -> (i32, i32) {
    %c0_i32 = arith.constant 0 : i32
    %c0_i32_0 = arith.constant 0 : i32
    %c0_i32_1 = arith.constant 0 : i32
    return %c0_i32, %c0_i32_0 : i32, i32
  }
  func.func @transform_21(%arg0: i32) -> (i32, i32) {
    %c0_i32 = arith.constant 0 : i32
    %c0_i32_0 = arith.constant 0 : i32
    %c0_i32_1 = arith.constant 0 : i32
    return %c0_i32, %c0_i32_0 : i32, i32
  }
  func.func @transform_22(%arg0: i32) -> (i32, i32) {
    %c0_i32 = arith.constant 0 : i32
    %c0_i32_0 = arith.constant 0 : i32
    %c0_i32_1 = arith.constant 0 : i32
    return %c0_i32, %c0_i32_0 : i32, i32
  }
  func.func @transform_23(%arg0: i32) -> (i32, i32) {
    %c0_i32 = arith.constant 0 : i32
    %c0_i32_0 = arith.constant 0 : i32
    %c0_i32_1 = arith.constant 0 : i32
    return %c0_i32, %c0_i32_0 : i32, i32
  }
  func.func @transform_24(%arg0: i32) -> (i32, i32) {
    %c0_i32 = arith.constant 0 : i32
    %c0_i32_0 = arith.constant 0 : i32
    %c0_i32_1 = arith.constant 0 : i32
    return %c0_i32, %c0_i32_0 : i32, i32
  }
  func.func @transform_25(%arg0: i32) -> (i32, i32) {
    %c0_i32 = arith.constant 0 : i32
    %c0_i32_0 = arith.constant 0 : i32
    %c0_i32_1 = arith.constant 0 : i32
    return %c0_i32, %c0_i32_0 : i32, i32
  }
  func.func @transform_26(%arg0: i32) -> (i32, i32, i32) {
    %c0_i32 = arith.constant 0 : i32
    %c0_i32_0 = arith.constant 0 : i32
    %c0_i32_1 = arith.constant 0 : i32
    return %arg0, %c0_i32, %c0_i32_0 : i32, i32, i32
  }
  func.func @transform_27(%arg0: i32) -> (i32, i32, i32) {
    %c0_i32 = arith.constant 0 : i32
    %c0_i32_0 = arith.constant 0 : i32
    %c0_i32_1 = arith.constant 0 : i32
    return %arg0, %c0_i32, %c0_i32_0 : i32, i32, i32
  }
}

</mosaic_0001>

<llo_original>
// kernel: model_forward.1
$region0: #{model_forward.1}
  #allocation0 [shape = 'u32[]', space=smem, size = 0x4, offset = 0x4, fixed_abs, tag = 'smem constant byte address 0x4 - core index']
  #allocation1 [shape = 'u32[72,128]{1,0:T(1,128)}', space=vmem, size = 0x9000, scoped, tag = 'internal scratch']
  %s0 = inlined_call_operand.vmem [shape: s32[2,1,1], index: 0, kind: input, shape index: {}]
  %s1 = inlined_call_operand.vmem [shape: f32[2,8,768], index: 1, kind: input, shape index: {}]
  %s2 = inlined_call_operand.vmem [shape: f32[8,32], index: 2, kind: input, shape index: {}]
  %s3 = inlined_call_operand.vmem [shape: bf16[768,32], index: 3, kind: input, shape index: {}]
  %s4 = inlined_call_operand.vmem [shape: f32[2,1,32], index: 4, kind: input, shape index: {}]
  %s5 = inlined_call_operand.vmem [shape: f32[2,1,32], index: 5, kind: input, shape index: {}]
  %s6 = inlined_call_operand.vmem [shape: bf16[2,2,32,16], index: 6, kind: input, shape index: {}]
  %s7 = inlined_call_operand.vmem [shape: f32[2,2,1,16], index: 7, kind: input, shape index: {}]
  %s8 = inlined_call_operand.vmem [shape: bf16[2,2,32,16], index: 8, kind: input, shape index: {}]
  %s9 = inlined_call_operand.vmem [shape: f32[2,2,1,16], index: 9, kind: input, shape index: {}]
  %s10 = inlined_call_operand.vmem [shape: bf16[2,2,32,16], index: 10, kind: input, shape index: {}]
  %s11 = inlined_call_operand.vmem [shape: f32[2,2,1,16], index: 11, kind: input, shape index: {}]
  %s12 = inlined_call_operand.vmem [shape: bf16[2,2,16,32], index: 12, kind: input, shape index: {}]
  %s13 = inlined_call_operand.vmem [shape: f32[2,1,32], index: 13, kind: input, shape index: {}]
  %s14 = inlined_call_operand.vmem [shape: f32[2,1,32], index: 14, kind: input, shape index: {}]
  %s15 = inlined_call_operand.vmem [shape: f32[2,1,32], index: 15, kind: input, shape index: {}]
  %s16 = inlined_call_operand.vmem [shape: bf16[2,32,128], index: 16, kind: input, shape index: {}]
  %s17 = inlined_call_operand.vmem [shape: f32[2,1,128], index: 17, kind: input, shape index: {}]
  %s18 = inlined_call_operand.vmem [shape: bf16[2,128,32], index: 18, kind: input, shape index: {}]
  %s19 = inlined_call_operand.vmem [shape: f32[2,1,32], index: 19, kind: input, shape index: {}]
  %s20 = inlined_call_operand.vmem [shape: f32[1,32], index: 20, kind: input, shape index: {}]
  %s21 = inlined_call_operand.vmem [shape: f32[1,32], index: 21, kind: input, shape index: {}]
  %s22 = inlined_call_operand.vmem [shape: bf16[32,16], index: 22, kind: input, shape index: {}]
  %s23 = inlined_call_operand.vmem [shape: f32[1,16], index: 23, kind: input, shape index: {}]
  %s24 = inlined_call_operand.vmem [shape: bf16[16,4], index: 24, kind: input, shape index: {}]
  %s25 = inlined_call_operand.vmem [shape: f32[1,4], index: 25, kind: input, shape index: {}]
  %s26 = inlined_call_operand.hbm [shape: f32[2,1,4], index: 26, kind: output, shape index: {0}]
  %s27 = inlined_call_operand.vmem [shape: f32[2,1,1], index: 27, kind: output, shape index: {1}]
  %28 = xla_tuple %s26, %s27
  %s29 = sld [smem:[#allocation0]]
  $region145: #{model_forward.1} parent=0
    _
  %s31 = ssub.s32 1, %s29
  %s32 = scalar_select 0, %s31, %s29
  $region1: #{model_forward.1} parent=0
    #allocation2 [shape = 'u8[1024]{0}', space=vmem, size = 0x400, scoped, tag = 'output window, operand 0']
    #allocation3 [shape = 's32[2]{0}', space=sflag, size = 0x8, scoped, tag = 'scoped memory for model_forward.1']
    %33 = vsyncpa [#allocation3], 0
    %s34 = scalar_lea.sflag [#allocation3], 1
    %35 = vsyncpa %s34, 0
    loop: start=0, step=1, limit=4
    $region2: #{model_forward.1} parent=1 // loop_pre_header
      _
    $region3: #{model_forward.1} parent=1 // loop_header
      %s37 = sphi 0, %s41
      %p38 = scmp.ge.s32.totalorder %s37, 4
      %s47 = sphi 0, %s49
      %s50 = sphi 0, %s47
      %s51 = sphi 0, %s50
      %s67 = sphi 0, %s51
      %s73 = sphi 0, %s75
      %s76 = sphi 0, %s73
      %s77 = sphi 0, %s76
      %s93 = sphi 0, %s77
      %s97 = sphi 0, %s97
      %s99 = sphi 0, %s97
      %s100 = sphi 0, %s99
      %s114 = sphi 0, %s100
      %s118 = sphi 0, %s118
      %s120 = sphi 0, %s118
      %s121 = sphi 0, %s120
      %s135 = sphi 0, %s121
      %s139 = sphi 0, %s139
      %s141 = sphi 0, %s139
      %s142 = sphi 0, %s141
      %s156 = sphi 0, %s142
      %s160 = sphi 0, %s160
      %s162 = sphi 0, %s160
      %s163 = sphi 0, %s162
      %s177 = sphi 0, %s163
      %s181 = sphi 0, %s181
      %s183 = sphi 0, %s181
      %s184 = sphi 0, %s183
      %s198 = sphi 0, %s184
      %s202 = sphi 0, %s202
      %s204 = sphi 0, %s202
      %s205 = sphi 0, %s204
      %s219 = sphi 0, %s205
      %s223 = sphi 0, %s223
      %s225 = sphi 0, %s223
      %s226 = sphi 0, %s225
      %s240 = sphi 0, %s226
      %s244 = sphi 0, %s244
      %s246 = sphi 0, %s244
      %s247 = sphi 0, %s246
      %s261 = sphi 0, %s247
      %s265 = sphi 0, %s265
      %s267 = sphi 0, %s265
      %s268 = sphi 0, %s267
      %s282 = sphi 0, %s268
      %s286 = sphi 0, %s286
      %s288 = sphi 0, %s286
      %s289 = sphi 0, %s288
      %s303 = sphi 0, %s289
      %s307 = sphi 0, %s307
      %s309 = sphi 0, %s307
      %s310 = sphi 0, %s309
      %s324 = sphi 0, %s310
      %s328 = sphi 0, %s328
      %s330 = sphi 0, %s328
      %s331 = sphi 0, %s330
      %s345 = sphi 0, %s331
      %s349 = sphi 0, %s349
      %s351 = sphi 0, %s349
      %s352 = sphi 0, %s351
      %s366 = sphi 0, %s352
      %s370 = sphi 0, %s370
      %s372 = sphi 0, %s370
      %s373 = sphi 0, %s372
      %s387 = sphi 0, %s373
      %s391 = sphi 0, %s391
      %s393 = sphi 0, %s391
      %s394 = sphi 0, %s393
      %s408 = sphi 0, %s394
      %s412 = sphi 0, %s412
      %s414 = sphi 0, %s412
      %s415 = sphi 0, %s414
      %s429 = sphi 0, %s415
      %s433 = sphi 0, %s433
      %s435 = sphi 0, %s433
      %s436 = sphi 0, %s435
      %s450 = sphi 0, %s436
      %s454 = sphi 0, %s454
      %s456 = sphi 0, %s454
      %s457 = sphi 0, %s456
      %s471 = sphi 0, %s457
      %s475 = sphi 0, %s475
      %s477 = sphi 0, %s475
      %s478 = sphi 0, %s477
      %s492 = sphi 0, %s478
      %s496 = sphi 0, %s496
      %s498 = sphi 0, %s496
      %s499 = sphi 0, %s498
      %s513 = sphi 0, %s499
      %s517 = sphi 0, %s517
      %s519 = sphi 0, %s517
      %s520 = sphi 0, %s519
      %s534 = sphi 0, %s520
      %s538 = sphi 0, %s538
      %s540 = sphi 0, %s538
      %s541 = sphi 0, %s540
      %s555 = sphi 0, %s541
      %s559 = sphi 0, %s559
      %s561 = sphi 0, %s559
      %s562 = sphi 0, %s561
      %s576 = sphi 0, %s562
      %s580 = sphi 0, %s580
      %s582 = sphi 0, %s580
      %s583 = sphi 0, %s582
      %s597 = sphi 0, %s583
      %s603 = sphi 0, %s605
      %s606 = sphi 0, %s603
      %s607 = sphi 0, %s606
      %s623 = sphi 0, %s607
      %s629 = sphi 0, %s631
      %s632 = sphi 0, %s629
      %s633 = sphi 0, %s632
      %s649 = sphi 0, %s633
    $region4: #{model_forward.1} parent=1 // loop_header_branch
      %40 = sbr.rel (%p38) target = $region8
    $region5: #{model_forward.1} parent=1 // loop_body
      %s42 = ssub.s32 %s37, 1
      %s43 = ssub.s32 %s37, 2
      %s44 = sadd.s32 %s37, 1
      %s45 = ssub.s32 %s37, %s44
      %p46 = scmp.eq.s32.totalorder %s45, 0
      %s48 = sadd.s32 %s47, 1
      %s49 = scalar_select %p46, %s47, %s48
      %p52 = pneg %p46
      %p53 = scmp.eq.s32.totalorder %s37, 1
      %p54 = por %p52, %p53
      %p55 = scmp.ne.s32.totalorder %s47, %s50
      %p56 = scmp.eq.s32.totalorder %s37, 0
      %p57 = por %p55, %p56
      %p58 = scmp.ne.s32.totalorder %s47, %s50
      %p59 = scmp.eq.s32.totalorder %s42, 1
      %p60 = por %p58, %p59
      %p61 = scmp.ne.s32.totalorder %s50, %s51
      %p62 = scmp.eq.s32.totalorder %s42, 0
      %p63 = por %p61, %p62
      %p64 = scmp.ne.s32.totalorder %s50, %s51
      %p65 = scmp.eq.s32.totalorder %s43, 1
      %p66 = por %p64, %p65
      %p68 = scmp.ne.s32.totalorder %s51, %s67
      %p69 = scmp.eq.s32.totalorder %s43, 0
      %p70 = por %p68, %p69
      %s71 = ssub.s32 %s37, %s44
      %p72 = scmp.eq.s32.totalorder %s71, 0
      %s74 = sadd.s32 %s73, 1
      %s75 = scalar_select %p72, %s73, %s74
      %p78 = pneg %p72
      %p79 = scmp.eq.s32.totalorder %s37, 1
      %p80 = por %p78, %p79
      %p81 = scmp.ne.s32.totalorder %s73, %s76
      %p82 = scmp.eq.s32.totalorder %s37, 0
      %p83 = por %p81, %p82
      %p84 = scmp.ne.s32.totalorder %s73, %s76
      %p85 = scmp.eq.s32.totalorder %s42, 1
      %p86 = por %p84, %p85
      %p87 = scmp.ne.s32.totalorder %s76, %s77
      %p88 = scmp.eq.s32.totalorder %s42, 0
      %p89 = por %p87, %p88
      %p90 = scmp.ne.s32.totalorder %s76, %s77
      %p91 = scmp.eq.s32.totalorder %s43, 1
      %p92 = por %p90, %p91
      %p94 = scmp.ne.s32.totalorder %s77, %s93
      %p95 = scmp.eq.s32.totalorder %s43, 0
      %p96 = por %p94, %p95
      %s98 = sadd.s32 %s97, 1
      %p101 = scmp.eq.s32.totalorder %s37, 1
      %p102 = scmp.ne.s32.totalorder %s97, %s99
      %p103 = scmp.eq.s32.totalorder %s37, 0
      %p104 = por %p102, %p103
      %p105 = scmp.ne.s32.totalorder %s97, %s99
      %p106 = scmp.eq.s32.totalorder %s42, 1
      %p107 = por %p105, %p106
      %p108 = scmp.ne.s32.totalorder %s99, %s100
      %p109 = scmp.eq.s32.totalorder %s42, 0
      %p110 = por %p108, %p109
      %p111 = scmp.ne.s32.totalorder %s99, %s100
      %p112 = scmp.eq.s32.totalorder %s43, 1
      %p113 = por %p111, %p112
      %p115 = scmp.ne.s32.totalorder %s100, %s114
      %p116 = scmp.eq.s32.totalorder %s43, 0
      %p117 = por %p115, %p116
      %s119 = sadd.s32 %s118, 1
      %p122 = scmp.eq.s32.totalorder %s37, 1
      %p123 = scmp.ne.s32.totalorder %s118, %s120
      %p124 = scmp.eq.s32.totalorder %s37, 0
      %p125 = por %p123, %p124
      %p126 = scmp.ne.s32.totalorder %s118, %s120
      %p127 = scmp.eq.s32.totalorder %s42, 1
      %p128 = por %p126, %p127
      %p129 = scmp.ne.s32.totalorder %s120, %s121
      %p130 = scmp.eq.s32.totalorder %s42, 0
      %p131 = por %p129, %p130
      %p132 = scmp.ne.s32.totalorder %s120, %s121
      %p133 = scmp.eq.s32.totalorder %s43, 1
      %p134 = por %p132, %p133
      %p136 = scmp.ne.s32.totalorder %s121, %s135
      %p137 = scmp.eq.s32.totalorder %s43, 0
      %p138 = por %p136, %p137
      %s140 = sadd.s32 %s139, 1
      %p143 = scmp.eq.s32.totalorder %s37, 1
      %p144 = scmp.ne.s32.totalorder %s139, %s141
      %p145 = scmp.eq.s32.totalorder %s37, 0
      %p146 = por %p144, %p145
      %p147 = scmp.ne.s32.totalorder %s139, %s141
      %p148 = scmp.eq.s32.totalorder %s42, 1
      %p149 = por %p147, %p148
      %p150 = scmp.ne.s32.totalorder %s141, %s142
      %p151 = scmp.eq.s32.totalorder %s42, 0
      %p152 = por %p150, %p151
      %p153 = scmp.ne.s32.totalorder %s141, %s142
      %p154 = scmp.eq.s32.totalorder %s43, 1
      %p155 = por %p153, %p154
      %p157 = scmp.ne.s32.totalorder %s142, %s156
      %p158 = scmp.eq.s32.totalorder %s43, 0
      %p159 = por %p157, %p158
      %s161 = sadd.s32 %s160, 1
      %p164 = scmp.eq.s32.totalorder %s37, 1
      %p165 = scmp.ne.s32.totalorder %s160, %s162
      %p166 = scmp.eq.s32.totalorder %s37, 0
      %p167 = por %p165, %p166
      %p168 = scmp.ne.s32.totalorder %s160, %s162
      %p169 = scmp.eq.s32.totalorder %s42, 1
      %p170 = por %p168, %p169
      %p171 = scmp.ne.s32.totalorder %s162, %s163
      %p172 = scmp.eq.s32.totalorder %s42, 0
      %p173 = por %p171, %p172
      %p174 = scmp.ne.s32.totalorder %s162, %s163
      %p175 = scmp.eq.s32.totalorder %s43, 1
      %p176 = por %p174, %p175
      %p178 = scmp.ne.s32.totalorder %s163, %s177
      %p179 = scmp.eq.s32.totalorder %s43, 0
      %p180 = por %p178, %p179
      %s182 = sadd.s32 %s181, 1
      %p185 = scmp.eq.s32.totalorder %s37, 1
      %p186 = scmp.ne.s32.totalorder %s181, %s183
      %p187 = scmp.eq.s32.totalorder %s37, 0
      %p188 = por %p186, %p187
      %p189 = scmp.ne.s32.totalorder %s181, %s183
      %p190 = scmp.eq.s32.totalorder %s42, 1
      %p191 = por %p189, %p190
      %p192 = scmp.ne.s32.totalorder %s183, %s184
      %p193 = scmp.eq.s32.totalorder %s42, 0
      %p194 = por %p192, %p193
      %p195 = scmp.ne.s32.totalorder %s183, %s184
      %p196 = scmp.eq.s32.totalorder %s43, 1
      %p197 = por %p195, %p196
      %p199 = scmp.ne.s32.totalorder %s184, %s198
      %p200 = scmp.eq.s32.totalorder %s43, 0
      %p201 = por %p199, %p200
      %s203 = sadd.s32 %s202, 1
      %p206 = scmp.eq.s32.totalorder %s37, 1
      %p207 = scmp.ne.s32.totalorder %s202, %s204
      %p208 = scmp.eq.s32.totalorder %s37, 0
      %p209 = por %p207, %p208
      %p210 = scmp.ne.s32.totalorder %s202, %s204
      %p211 = scmp.eq.s32.totalorder %s42, 1
      %p212 = por %p210, %p211
      %p213 = scmp.ne.s32.totalorder %s204, %s205
      %p214 = scmp.eq.s32.totalorder %s42, 0
      %p215 = por %p213, %p214
      %p216 = scmp.ne.s32.totalorder %s204, %s205
      %p217 = scmp.eq.s32.totalorder %s43, 1
      %p218 = por %p216, %p217
      %p220 = scmp.ne.s32.totalorder %s205, %s219
      %p221 = scmp.eq.s32.totalorder %s43, 0
      %p222 = por %p220, %p221
      %s224 = sadd.s32 %s223, 1
      %p227 = scmp.eq.s32.totalorder %s37, 1
      %p228 = scmp.ne.s32.totalorder %s223, %s225
      %p229 = scmp.eq.s32.totalorder %s37, 0
      %p230 = por %p228, %p229
      %p231 = scmp.ne.s32.totalorder %s223, %s225
      %p232 = scmp.eq.s32.totalorder %s42, 1
      %p233 = por %p231, %p232
      %p234 = scmp.ne.s32.totalorder %s225, %s226
      %p235 = scmp.eq.s32.totalorder %s42, 0
      %p236 = por %p234, %p235
      %p237 = scmp.ne.s32.totalorder %s225, %s226
      %p238 = scmp.eq.s32.totalorder %s43, 1
      %p239 = por %p237, %p238
      %p241 = scmp.ne.s32.totalorder %s226, %s240
      %p242 = scmp.eq.s32.totalorder %s43, 0
      %p243 = por %p241, %p242
      %s245 = sadd.s32 %s244, 1
      %p248 = scmp.eq.s32.totalorder %s37, 1
      %p249 = scmp.ne.s32.totalorder %s244, %s246
      %p250 = scmp.eq.s32.totalorder %s37, 0
      %p251 = por %p249, %p250
      %p252 = scmp.ne.s32.totalorder %s244, %s246
      %p253 = scmp.eq.s32.totalorder %s42, 1
      %p254 = por %p252, %p253
      %p255 = scmp.ne.s32.totalorder %s246, %s247
      %p256 = scmp.eq.s32.totalorder %s42, 0
      %p257 = por %p255, %p256
      %p258 = scmp.ne.s32.totalorder %s246, %s247
      %p259 = scmp.eq.s32.totalorder %s43, 1
      %p260 = por %p258, %p259
      %p262 = scmp.ne.s32.totalorder %s247, %s261
      %p263 = scmp.eq.s32.totalorder %s43, 0
      %p264 = por %p262, %p263
      %s266 = sadd.s32 %s265, 1
      %p269 = scmp.eq.s32.totalorder %s37, 1
      %p270 = scmp.ne.s32.totalorder %s265, %s267
      %p271 = scmp.eq.s32.totalorder %s37, 0
      %p272 = por %p270, %p271
      %p273 = scmp.ne.s32.totalorder %s265, %s267
      %p274 = scmp.eq.s32.totalorder %s42, 1
      %p275 = por %p273, %p274
      %p276 = scmp.ne.s32.totalorder %s267, %s268
      %p277 = scmp.eq.s32.totalorder %s42, 0
      %p278 = por %p276, %p277
      %p279 = scmp.ne.s32.totalorder %s267, %s268
      %p280 = scmp.eq.s32.totalorder %s43, 1
      %p281 = por %p279, %p280
      %p283 = scmp.ne.s32.totalorder %s268, %s282
      %p284 = scmp.eq.s32.totalorder %s43, 0
      %p285 = por %p283, %p284
      %s287 = sadd.s32 %s286, 1
      %p290 = scmp.eq.s32.totalorder %s37, 1
      %p291 = scmp.ne.s32.totalorder %s286, %s288
      %p292 = scmp.eq.s32.totalorder %s37, 0
      %p293 = por %p291, %p292
      %p294 = scmp.ne.s32.totalorder %s286, %s288
      %p295 = scmp.eq.s32.totalorder %s42, 1
      %p296 = por %p294, %p295
      %p297 = scmp.ne.s32.totalorder %s288, %s289
      %p298 = scmp.eq.s32.totalorder %s42, 0
      %p299 = por %p297, %p298
      %p300 = scmp.ne.s32.totalorder %s288, %s289
      %p301 = scmp.eq.s32.totalorder %s43, 1
      %p302 = por %p300, %p301
      %p304 = scmp.ne.s32.totalorder %s289, %s303
      %p305 = scmp.eq.s32.totalorder %s43, 0
      %p306 = por %p304, %p305
      %s308 = sadd.s32 %s307, 1
      %p311 = scmp.eq.s32.totalorder %s37, 1
      %p312 = scmp.ne.s32.totalorder %s307, %s309
      %p313 = scmp.eq.s32.totalorder %s37, 0
      %p314 = por %p312, %p313
      %p315 = scmp.ne.s32.totalorder %s307, %s309
      %p316 = scmp.eq.s32.totalorder %s42, 1
      %p317 = por %p315, %p316
      %p318 = scmp.ne.s32.totalorder %s309, %s310
      %p319 = scmp.eq.s32.totalorder %s42, 0
      %p320 = por %p318, %p319
      %p321 = scmp.ne.s32.totalorder %s309, %s310
      %p322 = scmp.eq.s32.totalorder %s43, 1
      %p323 = por %p321, %p322
      %p325 = scmp.ne.s32.totalorder %s310, %s324
      %p326 = scmp.eq.s32.totalorder %s43, 0
      %p327 = por %p325, %p326
      %s329 = sadd.s32 %s328, 1
      %p332 = scmp.eq.s32.totalorder %s37, 1
      %p333 = scmp.ne.s32.totalorder %s328, %s330
      %p334 = scmp.eq.s32.totalorder %s37, 0
      %p335 = por %p333, %p334
      %p336 = scmp.ne.s32.totalorder %s328, %s330
      %p337 = scmp.eq.s32.totalorder %s42, 1
      %p338 = por %p336, %p337
      %p339 = scmp.ne.s32.totalorder %s330, %s331
      %p340 = scmp.eq.s32.totalorder %s42, 0
      %p341 = por %p339, %p340
      %p342 = scmp.ne.s32.totalorder %s330, %s331
      %p343 = scmp.eq.s32.totalorder %s43, 1
      %p344 = por %p342, %p343
      %p346 = scmp.ne.s32.totalorder %s331, %s345
      %p347 = scmp.eq.s32.totalorder %s43, 0
      %p348 = por %p346, %p347
      %s350 = sadd.s32 %s349, 1
      %p353 = scmp.eq.s32.totalorder %s37, 1
      %p354 = scmp.ne.s32.totalorder %s349, %s351
      %p355 = scmp.eq.s32.totalorder %s37, 0
      %p356 = por %p354, %p355
      %p357 = scmp.ne.s32.totalorder %s349, %s351
      %p358 = scmp.eq.s32.totalorder %s42, 1
      %p359 = por %p357, %p358
      %p360 = scmp.ne.s32.totalorder %s351, %s352
      %p361 = scmp.eq.s32.totalorder %s42, 0
      %p362 = por %p360, %p361
      %p363 = scmp.ne.s32.totalorder %s351, %s352
      %p364 = scmp.eq.s32.totalorder %s43, 1
      %p365 = por %p363, %p364
      %p367 = scmp.ne.s32.totalorder %s352, %s366
      %p368 = scmp.eq.s32.totalorder %s43, 0
      %p369 = por %p367, %p368
      %s371 = sadd.s32 %s370, 1
      %p374 = scmp.eq.s32.totalorder %s37, 1
      %p375 = scmp.ne.s32.totalorder %s370, %s372
      %p376 = scmp.eq.s32.totalorder %s37, 0
      %p377 = por %p375, %p376
      %p378 = scmp.ne.s32.totalorder %s370, %s372
      %p379 = scmp.eq.s32.totalorder %s42, 1
      %p380 = por %p378, %p379
      %p381 = scmp.ne.s32.totalorder %s372, %s373
      %p382 = scmp.eq.s32.totalorder %s42, 0
      %p383 = por %p381, %p382
      %p384 = scmp.ne.s32.totalorder %s372, %s373
      %p385 = scmp.eq.s32.totalorder %s43, 1
      %p386 = por %p384, %p385
      %p388 = scmp.ne.s32.totalorder %s373, %s387
      %p389 = scmp.eq.s32.totalorder %s43, 0
      %p390 = por %p388, %p389
      %s392 = sadd.s32 %s391, 1
      %p395 = scmp.eq.s32.totalorder %s37, 1
      %p396 = scmp.ne.s32.totalorder %s391, %s393
      %p397 = scmp.eq.s32.totalorder %s37, 0
      %p398 = por %p396, %p397
      %p399 = scmp.ne.s32.totalorder %s391, %s393
      %p400 = scmp.eq.s32.totalorder %s42, 1
      %p401 = por %p399, %p400
      %p402 = scmp.ne.s32.totalorder %s393, %s394
      %p403 = scmp.eq.s32.totalorder %s42, 0
      %p404 = por %p402, %p403
      %p405 = scmp.ne.s32.totalorder %s393, %s394
      %p406 = scmp.eq.s32.totalorder %s43, 1
      %p407 = por %p405, %p406
      %p409 = scmp.ne.s32.totalorder %s394, %s408
      %p410 = scmp.eq.s32.totalorder %s43, 0
      %p411 = por %p409, %p410
      %s413 = sadd.s32 %s412, 1
      %p416 = scmp.eq.s32.totalorder %s37, 1
      %p417 = scmp.ne.s32.totalorder %s412, %s414
      %p418 = scmp.eq.s32.totalorder %s37, 0
      %p419 = por %p417, %p418
      %p420 = scmp.ne.s32.totalorder %s412, %s414
      %p421 = scmp.eq.s32.totalorder %s42, 1
      %p422 = por %p420, %p421
      %p423 = scmp.ne.s32.totalorder %s414, %s415
      %p424 = scmp.eq.s32.totalorder %s42, 0
      %p425 = por %p423, %p424
      %p426 = scmp.ne.s32.totalorder %s414, %s415
      %p427 = scmp.eq.s32.totalorder %s43, 1
      %p428 = por %p426, %p427
      %p430 = scmp.ne.s32.totalorder %s415, %s429
      %p431 = scmp.eq.s32.totalorder %s43, 0
      %p432 = por %p430, %p431
      %s434 = sadd.s32 %s433, 1
      %p437 = scmp.eq.s32.totalorder %s37, 1
      %p438 = scmp.ne.s32.totalorder %s433, %s435
      %p439 = scmp.eq.s32.totalorder %s37, 0
      %p440 = por %p438, %p439
      %p441 = scmp.ne.s32.totalorder %s433, %s435
      %p442 = scmp.eq.s32.totalorder %s42, 1
      %p443 = por %p441, %p442
      %p444 = scmp.ne.s32.totalorder %s435, %s436
      %p445 = scmp.eq.s32.totalorder %s42, 0
      %p446 = por %p444, %p445
      %p447 = scmp.ne.s32.totalorder %s435, %s436
      %p448 = scmp.eq.s32.totalorder %s43, 1
      %p449 = por %p447, %p448
      %p451 = scmp.ne.s32.totalorder %s436, %s450
      %p452 = scmp.eq.s32.totalorder %s43, 0
      %p453 = por %p451, %p452
      %s455 = sadd.s32 %s454, 1
      %p458 = scmp.eq.s32.totalorder %s37, 1
      %p459 = scmp.ne.s32.totalorder %s454, %s456
      %p460 = scmp.eq.s32.totalorder %s37, 0
      %p461 = por %p459, %p460
      %p462 = scmp.ne.s32.totalorder %s454, %s456
      %p463 = scmp.eq.s32.totalorder %s42, 1
      %p464 = por %p462, %p463
      %p465 = scmp.ne.s32.totalorder %s456, %s457
      %p466 = scmp.eq.s32.totalorder %s42, 0
      %p467 = por %p465, %p466
      %p468 = scmp.ne.s32.totalorder %s456, %s457
      %p469 = scmp.eq.s32.totalorder %s43, 1
      %p470 = por %p468, %p469
      %p472 = scmp.ne.s32.totalorder %s457, %s471
      %p473 = scmp.eq.s32.totalorder %s43, 0
      %p474 = por %p472, %p473
      %s476 = sadd.s32 %s475, 1
      %p479 = scmp.eq.s32.totalorder %s37, 1
      %p480 = scmp.ne.s32.totalorder %s475, %s477
      %p481 = scmp.eq.s32.totalorder %s37, 0
      %p482 = por %p480, %p481
      %p483 = scmp.ne.s32.totalorder %s475, %s477
      %p484 = scmp.eq.s32.totalorder %s42, 1
      %p485 = por %p483, %p484
      %p486 = scmp.ne.s32.totalorder %s477, %s478
      %p487 = scmp.eq.s32.totalorder %s42, 0
      %p488 = por %p486, %p487
      %p489 = scmp.ne.s32.totalorder %s477, %s478
      %p490 = scmp.eq.s32.totalorder %s43, 1
      %p491 = por %p489, %p490
      %p493 = scmp.ne.s32.totalorder %s478, %s492
      %p494 = scmp.eq.s32.totalorder %s43, 0
      %p495 = por %p493, %p494
      %s497 = sadd.s32 %s496, 1
      %p500 = scmp.eq.s32.totalorder %s37, 1
      %p501 = scmp.ne.s32.totalorder %s496, %s498
      %p502 = scmp.eq.s32.totalorder %s37, 0
      %p503 = por %p501, %p502
      %p504 = scmp.ne.s32.totalorder %s496, %s498
      %p505 = scmp.eq.s32.totalorder %s42, 1
      %p506 = por %p504, %p505
      %p507 = scmp.ne.s32.totalorder %s498, %s499
      %p508 = scmp.eq.s32.totalorder %s42, 0
      %p509 = por %p507, %p508
      %p510 = scmp.ne.s32.totalorder %s498, %s499
      %p511 = scmp.eq.s32.totalorder %s43, 1
      %p512 = por %p510, %p511
      %p514 = scmp.ne.s32.totalorder %s499, %s513
      %p515 = scmp.eq.s32.totalorder %s43, 0
      %p516 = por %p514, %p515
      %s518 = sadd.s32 %s517, 1
      %p521 = scmp.eq.s32.totalorder %s37, 1
      %p522 = scmp.ne.s32.totalorder %s517, %s519
      %p523 = scmp.eq.s32.totalorder %s37, 0
      %p524 = por %p522, %p523
      %p525 = scmp.ne.s32.totalorder %s517, %s519
      %p526 = scmp.eq.s32.totalorder %s42, 1
      %p527 = por %p525, %p526
      %p528 = scmp.ne.s32.totalorder %s519, %s520
      %p529 = scmp.eq.s32.totalorder %s42, 0
      %p530 = por %p528, %p529
      %p531 = scmp.ne.s32.totalorder %s519, %s520
      %p532 = scmp.eq.s32.totalorder %s43, 1
      %p533 = por %p531, %p532
      %p535 = scmp.ne.s32.totalorder %s520, %s534
      %p536 = scmp.eq.s32.totalorder %s43, 0
      %p537 = por %p535, %p536
      %s539 = sadd.s32 %s538, 1
      %p542 = scmp.eq.s32.totalorder %s37, 1
      %p543 = scmp.ne.s32.totalorder %s538, %s540
      %p544 = scmp.eq.s32.totalorder %s37, 0
      %p545 = por %p543, %p544
      %p546 = scmp.ne.s32.totalorder %s538, %s540
      %p547 = scmp.eq.s32.totalorder %s42, 1
      %p548 = por %p546, %p547
      %p549 = scmp.ne.s32.totalorder %s540, %s541
      %p550 = scmp.eq.s32.totalorder %s42, 0
      %p551 = por %p549, %p550
      %p552 = scmp.ne.s32.totalorder %s540, %s541
      %p553 = scmp.eq.s32.totalorder %s43, 1
      %p554 = por %p552, %p553
      %p556 = scmp.ne.s32.totalorder %s541, %s555
      %p557 = scmp.eq.s32.totalorder %s43, 0
      %p558 = por %p556, %p557
      %s560 = sadd.s32 %s559, 1
      %p563 = scmp.eq.s32.totalorder %s37, 1
      %p564 = scmp.ne.s32.totalorder %s559, %s561
      %p565 = scmp.eq.s32.totalorder %s37, 0
      %p566 = por %p564, %p565
      %p567 = scmp.ne.s32.totalorder %s559, %s561
      %p568 = scmp.eq.s32.totalorder %s42, 1
      %p569 = por %p567, %p568
      %p570 = scmp.ne.s32.totalorder %s561, %s562
      %p571 = scmp.eq.s32.totalorder %s42, 0
      %p572 = por %p570, %p571
      %p573 = scmp.ne.s32.totalorder %s561, %s562
      %p574 = scmp.eq.s32.totalorder %s43, 1
      %p575 = por %p573, %p574
      %p577 = scmp.ne.s32.totalorder %s562, %s576
      %p578 = scmp.eq.s32.totalorder %s43, 0
      %p579 = por %p577, %p578
      %s581 = sadd.s32 %s580, 1
      %p584 = scmp.eq.s32.totalorder %s37, 1
      %p585 = scmp.ne.s32.totalorder %s580, %s582
      %p586 = scmp.eq.s32.totalorder %s37, 0
      %p587 = por %p585, %p586
      %p588 = scmp.ne.s32.totalorder %s580, %s582
      %p589 = scmp.eq.s32.totalorder %s42, 1
      %p590 = por %p588, %p589
      %p591 = scmp.ne.s32.totalorder %s582, %s583
      %p592 = scmp.eq.s32.totalorder %s42, 0
      %p593 = por %p591, %p592
      %p594 = scmp.ne.s32.totalorder %s582, %s583
      %p595 = scmp.eq.s32.totalorder %s43, 1
      %p596 = por %p594, %p595
      %p598 = scmp.ne.s32.totalorder %s583, %s597
      %p599 = scmp.eq.s32.totalorder %s43, 0
      %p600 = por %p598, %p599
      %s601 = ssub.s32 %s37, %s44
      %p602 = scmp.eq.s32.totalorder %s601, 0
      %s604 = sadd.s32 %s603, 1
      %s605 = scalar_select %p602, %s603, %s604
      %p608 = pneg %p602
      %p609 = scmp.eq.s32.totalorder %s37, 1
      %p610 = por %p608, %p609
      %p611 = scmp.ne.s32.totalorder %s603, %s606
      %p612 = scmp.eq.s32.totalorder %s37, 0
      %p613 = por %p611, %p612
      %p614 = scmp.ne.s32.totalorder %s603, %s606
      %p615 = scmp.eq.s32.totalorder %s42, 1
      %p616 = por %p614, %p615
      %p617 = scmp.ne.s32.totalorder %s606, %s607
      %p618 = scmp.eq.s32.totalorder %s42, 0
      %p619 = por %p617, %p618
      %p620 = scmp.ne.s32.totalorder %s606, %s607
      %p621 = scmp.eq.s32.totalorder %s43, 1
      %p622 = por %p620, %p621
      %p624 = scmp.ne.s32.totalorder %s607, %s623
      %p625 = scmp.eq.s32.totalorder %s43, 0
      %p626 = por %p624, %p625
      %s627 = ssub.s32 %s37, %s44
      %p628 = scmp.eq.s32.totalorder %s627, 0
      %s630 = sadd.s32 %s629, 1
      %s631 = scalar_select %p628, %s629, %s630
      %p634 = pneg %p628
      %p635 = scmp.eq.s32.totalorder %s37, 1
      %p636 = por %p634, %p635
      %p637 = scmp.ne.s32.totalorder %s629, %s632
      %p638 = scmp.eq.s32.totalorder %s37, 0
      %p639 = por %p637, %p638
      %p640 = scmp.ne.s32.totalorder %s629, %s632
      %p641 = scmp.eq.s32.totalorder %s42, 1
      %p642 = por %p640, %p641
      %p643 = scmp.ne.s32.totalorder %s632, %s633
      %p644 = scmp.eq.s32.totalorder %s42, 0
      %p645 = por %p643, %p644
      %p646 = scmp.ne.s32.totalorder %s632, %s633
      %p647 = scmp.eq.s32.totalorder %s43, 1
      %p648 = por %p646, %p647
      %p650 = scmp.ne.s32.totalorder %s633, %s649
      %p651 = scmp.eq.s32.totalorder %s43, 0
      %p652 = por %p650, %p651
      %p653 = scmp.le.s32.totalorder 1, %s37
      %p654 = scmp.lt.s32.totalorder %s37, 3
      %p655 = pnand %p653, %p654
      %p656 = pneg %p655
      // Predicated region
      $region9: #{model_forward.1} parent=5 // pred_check
        _
      $region10: #{model_forward.1} parent=5 // pred_check_branch
        %658 = sbr.rel (%p655) target = $region12
      $region11: #{model_forward.1} parent=5 // pred_region
        %s659 = ssub.s32 %s37, 1
        // Predicated region
        $region13: #{model_forward.1} parent=11 // pred_check
          %p660 = pneg %p110
        $region14: #{model_forward.1} parent=11 // pred_check_branch
          %662 = sbr.rel (%p660) target = $region16
        $region15: #{model_forward.1} parent=11 // pred_region
          _
        $region16: #{model_forward.1} parent=11 // pred_fallthru
          _
        // Predicated region
        $region17: #{model_forward.1} parent=11 // pred_check
          %p663 = pneg %p131
        $region18: #{model_forward.1} parent=11 // pred_check_branch
          %665 = sbr.rel (%p663) target = $region20
        $region19: #{model_forward.1} parent=11 // pred_region
          _
        $region20: #{model_forward.1} parent=11 // pred_fallthru
          _
        // Predicated region
        $region21: #{model_forward.1} parent=11 // pred_check
          %p666 = pneg %p152
        $region22: #{model_forward.1} parent=11 // pred_check_branch
          %668 = sbr.rel (%p666) target = $region24
        $region23: #{model_forward.1} parent=11 // pred_region
          _
        $region24: #{model_forward.1} parent=11 // pred_fallthru
          _
        // Predicated region
        $region25: #{model_forward.1} parent=11 // pred_check
          %p669 = pneg %p173
        $region26: #{model_forward.1} parent=11 // pred_check_branch
          %671 = sbr.rel (%p669) target = $region28
        $region27: #{model_forward.1} parent=11 // pred_region
          _
        $region28: #{model_forward.1} parent=11 // pred_fallthru
          _
        // Predicated region
        $region29: #{model_forward.1} parent=11 // pred_check
          %p672 = pneg %p194
        $region30: #{model_forward.1} parent=11 // pred_check_branch
          %674 = sbr.rel (%p672) target = $region32
        $region31: #{model_forward.1} parent=11 // pred_region
          _
        $region32: #{model_forward.1} parent=11 // pred_fallthru
          _
        // Predicated region
        $region33: #{model_forward.1} parent=11 // pred_check
          %p675 = pneg %p215
        $region34: #{model_forward.1} parent=11 // pred_check_branch
          %677 = sbr.rel (%p675) target = $region36
        $region35: #{model_forward.1} parent=11 // pred_region
          _
        $region36: #{model_forward.1} parent=11 // pred_fallthru
          _
        // Predicated region
        $region37: #{model_forward.1} parent=11 // pred_check
          %p678 = pneg %p236
        $region38: #{model_forward.1} parent=11 // pred_check_branch
          %680 = sbr.rel (%p678) target = $region40
        $region39: #{model_forward.1} parent=11 // pred_region
          _
        $region40: #{model_forward.1} parent=11 // pred_fallthru
          _
        // Predicated region
        $region41: #{model_forward.1} parent=11 // pred_check
          %p681 = pneg %p257
        $region42: #{model_forward.1} parent=11 // pred_check_branch
          %683 = sbr.rel (%p681) target = $region44
        $region43: #{model_forward.1} parent=11 // pred_region
          _
        $region44: #{model_forward.1} parent=11 // pred_fallthru
          _
        // Predicated region
        $region45: #{model_forward.1} parent=11 // pred_check
          %p684 = pneg %p278
        $region46: #{model_forward.1} parent=11 // pred_check_branch
          %686 = sbr.rel (%p684) target = $region48
        $region47: #{model_forward.1} parent=11 // pred_region
          _
        $region48: #{model_forward.1} parent=11 // pred_fallthru
          _
        // Predicated region
        $region49: #{model_forward.1} parent=11 // pred_check
          %p687 = pneg %p299
        $region50: #{model_forward.1} parent=11 // pred_check_branch
          %689 = sbr.rel (%p687) target = $region52
        $region51: #{model_forward.1} parent=11 // pred_region
          _
        $region52: #{model_forward.1} parent=11 // pred_fallthru
          _
        // Predicated region
        $region53: #{model_forward.1} parent=11 // pred_check
          %p690 = pneg %p320
        $region54: #{model_forward.1} parent=11 // pred_check_branch
          %692 = sbr.rel (%p690) target = $region56
        $region55: #{model_forward.1} parent=11 // pred_region
          _
        $region56: #{model_forward.1} parent=11 // pred_fallthru
          _
        // Predicated region
        $region57: #{model_forward.1} parent=11 // pred_check
          %p693 = pneg %p341
        $region58: #{model_forward.1} parent=11 // pred_check_branch
          %695 = sbr.rel (%p693) target = $region60
        $region59: #{model_forward.1} parent=11 // pred_region
          _
        $region60: #{model_forward.1} parent=11 // pred_fallthru
          _
        // Predicated region
        $region61: #{model_forward.1} parent=11 // pred_check
          %p696 = pneg %p362
        $region62: #{model_forward.1} parent=11 // pred_check_branch
          %698 = sbr.rel (%p696) target = $region64
        $region63: #{model_forward.1} parent=11 // pred_region
          _
        $region64: #{model_forward.1} parent=11 // pred_fallthru
          _
        // Predicated region
        $region65: #{model_forward.1} parent=11 // pred_check
          %p699 = pneg %p383
        $region66: #{model_forward.1} parent=11 // pred_check_branch
          %701 = sbr.rel (%p699) target = $region68
        $region67: #{model_forward.1} parent=11 // pred_region
          _
        $region68: #{model_forward.1} parent=11 // pred_fallthru
          _
        // Predicated region
        $region69: #{model_forward.1} parent=11 // pred_check
          %p702 = pneg %p404
        $region70: #{model_forward.1} parent=11 // pred_check_branch
          %704 = sbr.rel (%p702) target = $region72
        $region71: #{model_forward.1} parent=11 // pred_region
          _
        $region72: #{model_forward.1} parent=11 // pred_fallthru
          _
        // Predicated region
        $region73: #{model_forward.1} parent=11 // pred_check
          %p705 = pneg %p425
        $region74: #{model_forward.1} parent=11 // pred_check_branch
          %707 = sbr.rel (%p705) target = $region76
        $region75: #{model_forward.1} parent=11 // pred_region
          _
        $region76: #{model_forward.1} parent=11 // pred_fallthru
          _
        // Predicated region
        $region77: #{model_forward.1} parent=11 // pred_check
          %p708 = pneg %p446
        $region78: #{model_forward.1} parent=11 // pred_check_branch
          %710 = sbr.rel (%p708) target = $region80
        $region79: #{model_forward.1} parent=11 // pred_region
          _
        $region80: #{model_forward.1} parent=11 // pred_fallthru
          _
        // Predicated region
        $region81: #{model_forward.1} parent=11 // pred_check
          %p711 = pneg %p467
        $region82: #{model_forward.1} parent=11 // pred_check_branch
          %713 = sbr.rel (%p711) target = $region84
        $region83: #{model_forward.1} parent=11 // pred_region
          _
        $region84: #{model_forward.1} parent=11 // pred_fallthru
          _
        // Predicated region
        $region85: #{model_forward.1} parent=11 // pred_check
          %p714 = pneg %p488
        $region86: #{model_forward.1} parent=11 // pred_check_branch
          %716 = sbr.rel (%p714) target = $region88
        $region87: #{model_forward.1} parent=11 // pred_region
          _
        $region88: #{model_forward.1} parent=11 // pred_fallthru
          _
        // Predicated region
        $region89: #{model_forward.1} parent=11 // pred_check
          %p717 = pneg %p509
        $region90: #{model_forward.1} parent=11 // pred_check_branch
          %719 = sbr.rel (%p717) target = $region92
        $region91: #{model_forward.1} parent=11 // pred_region
          _
        $region92: #{model_forward.1} parent=11 // pred_fallthru
          _
        // Predicated region
        $region93: #{model_forward.1} parent=11 // pred_check
          %p720 = pneg %p530
        $region94: #{model_forward.1} parent=11 // pred_check_branch
          %722 = sbr.rel (%p720) target = $region96
        $region95: #{model_forward.1} parent=11 // pred_region
          _
        $region96: #{model_forward.1} parent=11 // pred_fallthru
          _
        // Predicated region
        $region97: #{model_forward.1} parent=11 // pred_check
          %p723 = pneg %p551
        $region98: #{model_forward.1} parent=11 // pred_check_branch
          %725 = sbr.rel (%p723) target = $region100
        $region99: #{model_forward.1} parent=11 // pred_region
          _
        $region100: #{model_forward.1} parent=11 // pred_fallthru
          _
        // Predicated region
        $region101: #{model_forward.1} parent=11 // pred_check
          %p726 = pneg %p572
        $region102: #{model_forward.1} parent=11 // pred_check_branch
          %728 = sbr.rel (%p726) target = $region104
        $region103: #{model_forward.1} parent=11 // pred_region
          _
        $region104: #{model_forward.1} parent=11 // pred_fallthru
          _
        // Predicated region
        $region105: #{model_forward.1} parent=11 // pred_check
          %p729 = pneg %p593
        $region106: #{model_forward.1} parent=11 // pred_check_branch
          %731 = sbr.rel (%p729) target = $region108
        $region107: #{model_forward.1} parent=11 // pred_region
          _
        $region108: #{model_forward.1} parent=11 // pred_fallthru
          _
      $region12: #{model_forward.1} parent=5 // pred_fallthru
        _
      %p732 = scmp.lt.s32.totalorder %s37, 2
      // Predicated region
      $region109: #{model_forward.1} parent=5 // pred_check
        %p733 = pneg %p732
      $region110: #{model_forward.1} parent=5 // pred_check_branch
        %735 = sbr.rel (%p733) target = $region112
      $region111: #{model_forward.1} parent=5 // pred_region
        // Predicated region
        $region113: #{model_forward.1} parent=111 // pred_check
          %p736 = pneg %p57
        $region114: #{model_forward.1} parent=111 // pred_check_branch
          %738 = sbr.rel (%p736) target = $region116
        $region115: #{model_forward.1} parent=111 // pred_region
          %p739 = scmp.lt.s32.totalorder %s37, 1
          %s740 = scalar_select %p739, %s37, 1
          %s741 = scalar_lea.vmem %s0, %s740
        $region116: #{model_forward.1} parent=111 // pred_fallthru
          _
        // Predicated region
        $region117: #{model_forward.1} parent=111 // pred_check
          %p742 = pneg %p83
        $region118: #{model_forward.1} parent=111 // pred_check_branch
          %744 = sbr.rel (%p742) target = $region120
        $region119: #{model_forward.1} parent=111 // pred_region
          %p745 = scmp.lt.s32.totalorder %s37, 1
          %s746 = scalar_select %p745, %s37, 1
          %s747 = smul.addr %s746, 6
          %s748 = smul.addr %s747, 8
          %s749 = scalar_lea.vmem %s1, %s748
        $region120: #{model_forward.1} parent=111 // pred_fallthru
          _
      $region112: #{model_forward.1} parent=5 // pred_fallthru
        _
      %p750 = scmp.le.s32.totalorder 1, %s37
      %p751 = scmp.lt.s32.totalorder %s37, 3
      %p752 = pnand %p750, %p751
      %p753 = pneg %p752
      // Predicated region
      $region121: #{model_forward.1} parent=5 // pred_check
        _
      $region122: #{model_forward.1} parent=5 // pred_check_branch
        %755 = sbr.rel (%p752) target = $region124
      $region123: #{model_forward.1} parent=5 // pred_region
        %s756 = ssub.s32 %s37, 1
        %p757 = scmp.lt.s32.totalorder %s42, 1
        %s758 = scalar_select %p757, %s42, 1
        %s759 = scalar_lea.vmem %s0, %s758
        %p760 = pneg %p63
        %p761 = pneg %p60
        %p762 = scmp.lt.s32.totalorder %s42, 1
        %s763 = scalar_select %p762, %s42, 1
        %s764 = smul.addr %s763, 6
        %s765 = smul.addr %s764, 8
        %s766 = scalar_lea.vmem %s1, %s765
        %p767 = pneg %p89
        %p768 = pneg %p86
        %p769 = pneg %p110
        %p770 = pneg %p107
        %p771 = pneg %p131
        %p772 = pneg %p128
        %p773 = pneg %p152
        %p774 = pneg %p149
        %p775 = pneg %p173
        %p776 = pneg %p170
        %p777 = pneg %p194
        %p778 = pneg %p191
        %p779 = pneg %p215
        %p780 = pneg %p212
        %p781 = pneg %p236
        %p782 = pneg %p233
        %p783 = pneg %p257
        %p784 = pneg %p254
        %p785 = pneg %p278
        %p786 = pneg %p275
        %p787 = pneg %p299
        %p788 = pneg %p296
        %p789 = pneg %p320
        %p790 = pneg %p317
        %p791 = pneg %p341
        %p792 = pneg %p338
        %p793 = pneg %p362
        %p794 = pneg %p359
        %p795 = pneg %p383
        %p796 = pneg %p380
        %p797 = pneg %p404
        %p798 = pneg %p401
        %p799 = pneg %p425
        %p800 = pneg %p422
        %p801 = pneg %p446
        %p802 = pneg %p443
        %p803 = pneg %p467
        %p804 = pneg %p464
        %p805 = pneg %p488
        %p806 = pneg %p485
        %p807 = pneg %p509
        %p808 = pneg %p506
        %p809 = pneg %p530
        %p810 = pneg %p527
        %p811 = pneg %p551
        %p812 = pneg %p548
        %p813 = pneg %p572
        %p814 = pneg %p569
        %p815 = pneg %p593
        %p816 = pneg %p590
        %p817 = pneg %p619
        %p818 = pneg %p616
        %s819 = sand.u32 %s606, 1
        %s820 = scalar_lea.sflag [#allocation3], %s819
        %s821 = sand.u32 %s606, 1
        %s822 = scalar_lea.vmem [#allocation2], %s821
        %p823 = pneg %p645
        %p824 = pneg %p642
        %p825 = scmp.lt.s32.totalorder %s42, 1
        %s826 = scalar_select %p825, %s42, 1
        %s827 = scalar_lea.vmem %s27, %s826
        %p828 = scmp.lt.s32.totalorder %s42, 1
        %s829 = scalar_select %p828, %s42, 1
        %s830 = scalar_lea.vmem %s0, %s829
        %p831 = scmp.lt.s32.totalorder %s42, 1
        %s832 = scalar_select %p831, %s42, 1
        %s833 = smul.addr %s832, 6
        %s834 = smul.addr %s833, 8
        %s835 = scalar_lea.vmem %s1, %s834
        %p836 = scmp.lt.s32.totalorder %s42, 1
        %s837 = scalar_select %p836, %s42, 1
        %s838 = scalar_lea.vmem %s27, %s837
        %v840 = vld [vmem:[%s835] sm:$0xff]
        %v841 = vld [vmem:[%s835 + $0x8] sm:$0xff]
        %v842 = vld [vmem:[%s835 + $0x10] sm:$0xff]
        %v843 = vld [vmem:[%s835 + $0x18] sm:$0xff]
        %v844 = vld [vmem:[%s835 + $0x20] sm:$0xff]
        %v845 = vld [vmem:[%s835 + $0x28] sm:$0xff]
        %v846 = vpack.c.bf16 %v840, %v840
        %v847 = vpack.c.bf16 %v841, %v841
        %v848 = vpack.c.bf16 %v842, %v842
        %v849 = vpack.c.bf16 %v843, %v843
        %v850 = vpack.c.bf16 %v844, %v844
        %v851 = vpack.c.bf16 %v845, %v845
        %v852 = vld [vmem:[%s3] sm:$0xf]
        %v853 = vld [vmem:[%s3 + $0x4] sm:$0xf]
        %v854 = vld [vmem:[%s3 + $0x8] sm:$0xf]
        %v855 = vld [vmem:[%s3 + $0xc] sm:$0xf]
        %v856 = vld [vmem:[%s3 + $0x10] sm:$0xf]
        %v857 = vld [vmem:[%s3 + $0x14] sm:$0xf]
        %v858 = vld [vmem:[%s3 + $0x18] sm:$0xf]
        %v859 = vld [vmem:[%s3 + $0x1c] sm:$0xf]
        %v860 = vld [vmem:[%s3 + $0x20] sm:$0xf]
        %v861 = vld [vmem:[%s3 + $0x24] sm:$0xf]
        %v862 = vld [vmem:[%s3 + $0x28] sm:$0xf]
        %v863 = vld [vmem:[%s3 + $0x2c] sm:$0xf]
        %v864 = vld [vmem:[%s3 + $0x30] sm:$0xf]
        %v865 = vld [vmem:[%s3 + $0x34] sm:$0xf]
        %v866 = vld [vmem:[%s3 + $0x38] sm:$0xf]
        %v867 = vld [vmem:[%s3 + $0x3c] sm:$0xf]
        %v868 = vld [vmem:[%s3 + $0x40] sm:$0xf]
        %v869 = vld [vmem:[%s3 + $0x44] sm:$0xf]
        %v870 = vld [vmem:[%s3 + $0x48] sm:$0xf]
        %v871 = vld [vmem:[%s3 + $0x4c] sm:$0xf]
        %v872 = vld [vmem:[%s3 + $0x50] sm:$0xf]
        %v873 = vld [vmem:[%s3 + $0x54] sm:$0xf]
        %v874 = vld [vmem:[%s3 + $0x58] sm:$0xf]
        %v875 = vld [vmem:[%s3 + $0x5c] sm:$0xf]
        %v876 = vld [vmem:[%s3 + $0x60] sm:$0xf]
        %v877 = vld [vmem:[%s3 + $0x64] sm:$0xf]
        %v878 = vld [vmem:[%s3 + $0x68] sm:$0xf]
        %v879 = vld [vmem:[%s3 + $0x6c] sm:$0xf]
        %v880 = vld [vmem:[%s3 + $0x70] sm:$0xf]
        %v881 = vld [vmem:[%s3 + $0x74] sm:$0xf]
        %v882 = vld [vmem:[%s3 + $0x78] sm:$0xf]
        %v883 = vld [vmem:[%s3 + $0x7c] sm:$0xf]
        %v884 = vld [vmem:[%s3 + $0x80] sm:$0xf]
        %v885 = vld [vmem:[%s3 + $0x84] sm:$0xf]
        %v886 = vld [vmem:[%s3 + $0x88] sm:$0xf]
        %v887 = vld [vmem:[%s3 + $0x8c] sm:$0xf]
        %v888 = vld [vmem:[%s3 + $0x90] sm:$0xf]
        %v889 = vld [vmem:[%s3 + $0x94] sm:$0xf]
        %v890 = vld [vmem:[%s3 + $0x98] sm:$0xf]
        %v891 = vld [vmem:[%s3 + $0x9c] sm:$0xf]
        %v892 = vld [vmem:[%s3 + $0xa0] sm:$0xf]
        %v893 = vld [vmem:[%s3 + $0xa4] sm:$0xf]
        %v894 = vld [vmem:[%s3 + $0xa8] sm:$0xf]
        %v895 = vld [vmem:[%s3 + $0xac] sm:$0xf]
        %v896 = vld [vmem:[%s3 + $0xb0] sm:$0xf]
        %v897 = vld [vmem:[%s3 + $0xb4] sm:$0xf]
        %v898 = vld [vmem:[%s3 + $0xb8] sm:$0xf]
        %v899 = vld [vmem:[%s3 + $0xbc] sm:$0xf]
        %v900 = vld [vmem:[%s3 + $0xc0] sm:$0xf]
        %v901 = vld [vmem:[%s3 + $0xc4] sm:$0xf]
        %v902 = vld [vmem:[%s3 + $0xc8] sm:$0xf]
        %v903 = vld [vmem:[%s3 + $0xcc] sm:$0xf]
        %v904 = vld [vmem:[%s3 + $0xd0] sm:$0xf]
        %v905 = vld [vmem:[%s3 + $0xd4] sm:$0xf]
        %v906 = vld [vmem:[%s3 + $0xd8] sm:$0xf]
        %v907 = vld [vmem:[%s3 + $0xdc] sm:$0xf]
        %v908 = vld [vmem:[%s3 + $0xe0] sm:$0xf]
        %v909 = vld [vmem:[%s3 + $0xe4] sm:$0xf]
        %v910 = vld [vmem:[%s3 + $0xe8] sm:$0xf]
        %v911 = vld [vmem:[%s3 + $0xec] sm:$0xf]
        %v912 = vld [vmem:[%s3 + $0xf0] sm:$0xf]
        %v913 = vld [vmem:[%s3 + $0xf4] sm:$0xf]
        %v914 = vld [vmem:[%s3 + $0xf8] sm:$0xf]
        %v915 = vld [vmem:[%s3 + $0xfc] sm:$0xf]
        %v916 = vld [vmem:[%s3 + $0x100] sm:$0xf]
        %v917 = vld [vmem:[%s3 + $0x104] sm:$0xf]
        %v918 = vld [vmem:[%s3 + $0x108] sm:$0xf]
        %v919 = vld [vmem:[%s3 + $0x10c] sm:$0xf]
        %v920 = vld [vmem:[%s3 + $0x110] sm:$0xf]
        %v921 = vld [vmem:[%s3 + $0x114] sm:$0xf]
        %v922 = vld [vmem:[%s3 + $0x118] sm:$0xf]
        %v923 = vld [vmem:[%s3 + $0x11c] sm:$0xf]
        %v924 = vld [vmem:[%s3 + $0x120] sm:$0xf]
        %v925 = vld [vmem:[%s3 + $0x124] sm:$0xf]
        %v926 = vld [vmem:[%s3 + $0x128] sm:$0xf]
        %v927 = vld [vmem:[%s3 + $0x12c] sm:$0xf]
        %v928 = vld [vmem:[%s3 + $0x130] sm:$0xf]
        %v929 = vld [vmem:[%s3 + $0x134] sm:$0xf]
        %v930 = vld [vmem:[%s3 + $0x138] sm:$0xf]
        %v931 = vld [vmem:[%s3 + $0x13c] sm:$0xf]
        %v932 = vld [vmem:[%s3 + $0x140] sm:$0xf]
        %v933 = vld [vmem:[%s3 + $0x144] sm:$0xf]
        %v934 = vld [vmem:[%s3 + $0x148] sm:$0xf]
        %v935 = vld [vmem:[%s3 + $0x14c] sm:$0xf]
        %v936 = vld [vmem:[%s3 + $0x150] sm:$0xf]
        %v937 = vld [vmem:[%s3 + $0x154] sm:$0xf]
        %v938 = vld [vmem:[%s3 + $0x158] sm:$0xf]
        %v939 = vld [vmem:[%s3 + $0x15c] sm:$0xf]
        %v940 = vld [vmem:[%s3 + $0x160] sm:$0xf]
        %v941 = vld [vmem:[%s3 + $0x164] sm:$0xf]
        %v942 = vld [vmem:[%s3 + $0x168] sm:$0xf]
        %v943 = vld [vmem:[%s3 + $0x16c] sm:$0xf]
        %v944 = vld [vmem:[%s3 + $0x170] sm:$0xf]
        %v945 = vld [vmem:[%s3 + $0x174] sm:$0xf]
        %v946 = vld [vmem:[%s3 + $0x178] sm:$0xf]
        %v947 = vld [vmem:[%s3 + $0x17c] sm:$0xf]
        %v948 = vld [vmem:[%s2] sm:$0xff]
        %v1045 = vunpack.c.l.b16 %v852
        %v1046 = vunpack.c.l.b16 %v853
        %v1047 = vunpack.c.l.b16 %v854
        %v1048 = vunpack.c.l.b16 %v855
        %v1049 = vunpack.c.l.b16 %v856
        %v1050 = vunpack.c.l.b16 %v857
        %v1051 = vunpack.c.l.b16 %v858
        %v1052 = vunpack.c.l.b16 %v859
        %v1053 = vunpack.c.l.b16 %v860
        %v1054 = vunpack.c.l.b16 %v861
        %v1055 = vunpack.c.l.b16 %v862
        %v1056 = vunpack.c.l.b16 %v863
        %v1057 = vunpack.c.l.b16 %v864
        %v1058 = vunpack.c.l.b16 %v865
        %v1059 = vunpack.c.l.b16 %v866
        %v1060 = vunpack.c.l.b16 %v867
        %v1061 = vunpack.c.l.b16 %v868
        %v1062 = vunpack.c.l.b16 %v869
        %v1063 = vunpack.c.l.b16 %v870
        %v1064 = vunpack.c.l.b16 %v871
        %v1065 = vunpack.c.l.b16 %v872
        %v1066 = vunpack.c.l.b16 %v873
        %v1067 = vunpack.c.l.b16 %v874
        %v1068 = vunpack.c.l.b16 %v875
        %v1069 = vunpack.c.l.b16 %v876
        %v1070 = vunpack.c.l.b16 %v877
        %v1071 = vunpack.c.l.b16 %v878
        %v1072 = vunpack.c.l.b16 %v879
        %v1073 = vunpack.c.l.b16 %v880
        %v1074 = vunpack.c.l.b16 %v881
        %v1075 = vunpack.c.l.b16 %v882
        %v1076 = vunpack.c.l.b16 %v883
        %v1077 = vunpack.c.l.b16 %v884
        %v1078 = vunpack.c.l.b16 %v885
        %v1079 = vunpack.c.l.b16 %v886
        %v1080 = vunpack.c.l.b16 %v887
        %v1081 = vunpack.c.l.b16 %v888
        %v1082 = vunpack.c.l.b16 %v889
        %v1083 = vunpack.c.l.b16 %v890
        %v1084 = vunpack.c.l.b16 %v891
        %v1085 = vunpack.c.l.b16 %v892
        %v1086 = vunpack.c.l.b16 %v893
        %v1087 = vunpack.c.l.b16 %v894
        %v1088 = vunpack.c.l.b16 %v895
        %v1089 = vunpack.c.l.b16 %v896
        %v1090 = vunpack.c.l.b16 %v897
        %v1091 = vunpack.c.l.b16 %v898
        %v1092 = vunpack.c.l.b16 %v899
        %v1093 = vunpack.c.l.b16 %v900
        %v1094 = vunpack.c.l.b16 %v901
        %v1095 = vunpack.c.l.b16 %v902
        %v1096 = vunpack.c.l.b16 %v903
        %v1097 = vunpack.c.l.b16 %v904
        %v1098 = vunpack.c.l.b16 %v905
        %v1099 = vunpack.c.l.b16 %v906
        %v1100 = vunpack.c.l.b16 %v907
        %v1101 = vunpack.c.l.b16 %v908
        %v1102 = vunpack.c.l.b16 %v909
        %v1103 = vunpack.c.l.b16 %v910
        %v1104 = vunpack.c.l.b16 %v911
        %v1105 = vunpack.c.l.b16 %v912
        %v1106 = vunpack.c.l.b16 %v913
        %v1107 = vunpack.c.l.b16 %v914
        %v1108 = vunpack.c.l.b16 %v915
        %v1109 = vunpack.c.l.b16 %v916
        %v1110 = vunpack.c.l.b16 %v917
        %v1111 = vunpack.c.l.b16 %v918
        %v1112 = vunpack.c.l.b16 %v919
        %v1113 = vunpack.c.l.b16 %v920
        %v1114 = vunpack.c.l.b16 %v921
        %v1115 = vunpack.c.l.b16 %v922
        %v1116 = vunpack.c.l.b16 %v923
        %v1117 = vunpack.c.l.b16 %v924
        %v1118 = vunpack.c.l.b16 %v925
        %v1119 = vunpack.c.l.b16 %v926
        %v1120 = vunpack.c.l.b16 %v927
        %v1121 = vunpack.c.l.b16 %v928
        %v1122 = vunpack.c.l.b16 %v929
        %v1123 = vunpack.c.l.b16 %v930
        %v1124 = vunpack.c.l.b16 %v931
        %v1125 = vunpack.c.l.b16 %v932
        %v1126 = vunpack.c.l.b16 %v933
        %v1127 = vunpack.c.l.b16 %v934
        %v1128 = vunpack.c.l.b16 %v935
        %v1129 = vunpack.c.l.b16 %v936
        %v1130 = vunpack.c.l.b16 %v937
        %v1131 = vunpack.c.l.b16 %v938
        %v1132 = vunpack.c.l.b16 %v939
        %v1133 = vunpack.c.l.b16 %v940
        %v1134 = vunpack.c.l.b16 %v941
        %v1135 = vunpack.c.l.b16 %v942
        %v1136 = vunpack.c.l.b16 %v943
        %v1137 = vunpack.c.l.b16 %v944
        %v1138 = vunpack.c.l.b16 %v945
        %v1139 = vunpack.c.l.b16 %v946
        %v1140 = vunpack.c.l.b16 %v947
        %v1141 = vpack.c.b16 %v1046, %v1045
        %v1142 = vpack.c.b16 %v1048, %v1047
        %v1143 = vpack.c.b16 %v1050, %v1049
        %v1144 = vpack.c.b16 %v1052, %v1051
        %v1145 = vpack.c.b16 %v1054, %v1053
        %v1146 = vpack.c.b16 %v1056, %v1055
        %v1147 = vpack.c.b16 %v1058, %v1057
        %v1148 = vpack.c.b16 %v1060, %v1059
        %v1149 = vpack.c.b16 %v1062, %v1061
        %v1150 = vpack.c.b16 %v1064, %v1063
        %v1151 = vpack.c.b16 %v1066, %v1065
        %v1152 = vpack.c.b16 %v1068, %v1067
        %v1153 = vpack.c.b16 %v1070, %v1069
        %v1154 = vpack.c.b16 %v1072, %v1071
        %v1155 = vpack.c.b16 %v1074, %v1073
        %v1156 = vpack.c.b16 %v1076, %v1075
        %v1157 = vpack.c.b16 %v1078, %v1077
        %v1158 = vpack.c.b16 %v1080, %v1079
        %v1159 = vpack.c.b16 %v1082, %v1081
        %v1160 = vpack.c.b16 %v1084, %v1083
        %v1161 = vpack.c.b16 %v1086, %v1085
        %v1162 = vpack.c.b16 %v1088, %v1087
        %v1163 = vpack.c.b16 %v1090, %v1089
        %v1164 = vpack.c.b16 %v1092, %v1091
        %v1165 = vpack.c.b16 %v1094, %v1093
        %v1166 = vpack.c.b16 %v1096, %v1095
        %v1167 = vpack.c.b16 %v1098, %v1097
        %v1168 = vpack.c.b16 %v1100, %v1099
        %v1169 = vpack.c.b16 %v1102, %v1101
        %v1170 = vpack.c.b16 %v1104, %v1103
        %v1171 = vpack.c.b16 %v1106, %v1105
        %v1172 = vpack.c.b16 %v1108, %v1107
        %v1173 = vpack.c.b16 %v1110, %v1109
        %v1174 = vpack.c.b16 %v1112, %v1111
        %v1175 = vpack.c.b16 %v1114, %v1113
        %v1176 = vpack.c.b16 %v1116, %v1115
        %v1177 = vpack.c.b16 %v1118, %v1117
        %v1178 = vpack.c.b16 %v1120, %v1119
        %v1179 = vpack.c.b16 %v1122, %v1121
        %v1180 = vpack.c.b16 %v1124, %v1123
        %v1181 = vpack.c.b16 %v1126, %v1125
        %v1182 = vpack.c.b16 %v1128, %v1127
        %v1183 = vpack.c.b16 %v1130, %v1129
        %v1184 = vpack.c.b16 %v1132, %v1131
        %v1185 = vpack.c.b16 %v1134, %v1133
        %v1186 = vpack.c.b16 %v1136, %v1135
        %v1187 = vpack.c.b16 %v1138, %v1137
        %v1188 = vpack.c.b16 %v1140, %v1139
        %1237 = vmatpush.bf16.msra.mxu0 %v1148
        %1238 = vmatpush.bf16.msra.mxu0 %v1147
        %1239 = vmatpush.bf16.msra.mxu0 %v1146
        %1240 = vmatpush.bf16.msra.mxu0 %v1145
        %1241 = vmatpush.bf16.msra.mxu0 %v1144
        %1242 = vmatpush.bf16.msra.mxu0 %v1143
        %1243 = vmatpush.bf16.msra.mxu0 %v1142
        %1244 = vmatpush.bf16.msra.mxu0 %v1141
        %1245 = vmatmul.bf16.gmra.mxu0 %v846
        %v1246 = vpop.f32.mrf.mxu0
        %v1247 = vadd.f32 %v948, %v1246
        %v1248 = vpop.f32.mrf.mxu0
        %1249 = vdwg.mxu0
        %1250 = vmatpush.bf16.msra.mxu0 %v1156
        %1251 = vmatpush.bf16.msra.mxu0 %v1155
        %1252 = vmatpush.bf16.msra.mxu0 %v1154
        %1253 = vmatpush.bf16.msra.mxu0 %v1153
        %1254 = vmatpush.bf16.msra.mxu0 %v1152
        %1255 = vmatpush.bf16.msra.mxu0 %v1151
        %1256 = vmatpush.bf16.msra.mxu0 %v1150
        %1257 = vmatpush.bf16.msra.mxu0 %v1149
        %1258 = vmatmul.bf16.gmra.mxu0 %v847
        %v1259 = vpop.f32.mrf.mxu0
        %v1260 = vadd.f32 %v1247, %v1259
        %v1261 = vpop.f32.mrf.mxu0
        %1262 = vdwg.mxu0
        %1263 = vmatpush.bf16.msra.mxu0 %v1164
        %1264 = vmatpush.bf16.msra.mxu0 %v1163
        %1265 = vmatpush.bf16.msra.mxu0 %v1162
        %1266 = vmatpush.bf16.msra.mxu0 %v1161
        %1267 = vmatpush.bf16.msra.mxu0 %v1160
        %1268 = vmatpush.bf16.msra.mxu0 %v1159
        %1269 = vmatpush.bf16.msra.mxu0 %v1158
        %1270 = vmatpush.bf16.msra.mxu0 %v1157
        %1271 = vmatmul.bf16.gmra.mxu0 %v848
        %v1272 = vpop.f32.mrf.mxu0
        %v1273 = vadd.f32 %v1260, %v1272
        %v1274 = vpop.f32.mrf.mxu0
        %1275 = vdwg.mxu0
        %1276 = vmatpush.bf16.msra.mxu0 %v1172
        %1277 = vmatpush.bf16.msra.mxu0 %v1171
        %1278 = vmatpush.bf16.msra.mxu0 %v1170
        %1279 = vmatpush.bf16.msra.mxu0 %v1169
        %1280 = vmatpush.bf16.msra.mxu0 %v1168
        %1281 = vmatpush.bf16.msra.mxu0 %v1167
        %1282 = vmatpush.bf16.msra.mxu0 %v1166
        %1283 = vmatpush.bf16.msra.mxu0 %v1165
        %1284 = vmatmul.bf16.gmra.mxu0 %v849
        %v1285 = vpop.f32.mrf.mxu0
        %v1286 = vadd.f32 %v1273, %v1285
        %v1287 = vpop.f32.mrf.mxu0
        %1288 = vdwg.mxu0
        %1289 = vmatpush.bf16.msra.mxu0 %v1180
        %1290 = vmatpush.bf16.msra.mxu0 %v1179
        %1291 = vmatpush.bf16.msra.mxu0 %v1178
        %1292 = vmatpush.bf16.msra.mxu0 %v1177
        %1293 = vmatpush.bf16.msra.mxu0 %v1176
        %1294 = vmatpush.bf16.msra.mxu0 %v1175
        %1295 = vmatpush.bf16.msra.mxu0 %v1174
        %1296 = vmatpush.bf16.msra.mxu0 %v1173
        %1297 = vmatmul.bf16.gmra.mxu0 %v850
        %v1298 = vpop.f32.mrf.mxu0
        %v1299 = vadd.f32 %v1286, %v1298
        %v1300 = vpop.f32.mrf.mxu0
        %1301 = vdwg.mxu0
        %1302 = vmatpush.bf16.msra.mxu0 %v1188
        %1303 = vmatpush.bf16.msra.mxu0 %v1187
        %1304 = vmatpush.bf16.msra.mxu0 %v1186
        %1305 = vmatpush.bf16.msra.mxu0 %v1185
        %1306 = vmatpush.bf16.msra.mxu0 %v1184
        %1307 = vmatpush.bf16.msra.mxu0 %v1183
        %1308 = vmatpush.bf16.msra.mxu0 %v1182
        %1309 = vmatpush.bf16.msra.mxu0 %v1181
        %1310 = vmatmul.bf16.gmra.mxu0 %v851
        %v1311 = vpop.f32.mrf.mxu0
        %v1312 = vadd.f32 %v1299, %v1311
        %v1313 = vpop.f32.mrf.mxu0
        %1314 = vdwg.mxu0
        %v1315 = vlaneseq
        %v1316 = vand.u32 %v1315, 127
        %vm1317 = vcmp.lt.s32.totalorder %v1316, 5
        %v1318 = vsel %vm1317, 0.0, -1e+30
        %v1319 = vld [vmem:[%s4] sm:$0x1]
        %v1320 = vld [vmem:[%s5] sm:$0x1]
        %vm1321 = vcmask 261120
        %v1322 = vsel %vm1321, %v1312, 0.0
        %1323 = vadd.xlane.f32.xlu0 %v1322
        %v1324 = vpop.xlane.xlu0 %1323
        %v1325 = vrcp.pop 32.0
        %v1326 = vmul.f32 32.0, %v1325
        %v1327 = vsub.f32 1.0, %v1326
        %v1328 = vmul.f32 %v1325, %v1327
        %v1329 = vadd.f32 %v1325, %v1328
        %vm1330 = vweird.f32 %v1325
        %v1331 = vsel %vm1330, %v1325, %v1329
        %v1332 = vmul.f32 %v1324, %v1331
        %v1333 = vsub.f32 %v1312, %v1332
        %v1334 = vmul.f32 %v1333, %v1333
        %v1335 = vsel %vm1321, %v1334, 0.0
        %1336 = vadd.xlane.f32.xlu0 %v1335
        %v1337 = vpop.xlane.xlu0 %1336
        %v1338 = vmul.f32 %v1337, %v1331
        %v1339 = vadd.f32 %v1338, 1e-12
        %v1340 = vrsqrt.pop %v1339
        %v1341 = vmul.f32 %v1340, %v1339
        %v1342 = vmul.f32 %v1341, %v1340
        %v1343 = vmul.f32 0.5, %v1342
        %v1344 = vsub.f32 1.5, %v1343
        %v1345 = vmul.f32 %v1340, %v1344
        %vm1346 = vweird.f32 %v1339
        %vm1347 = vweird.f32 %v1340
        %vm1348 = vmor %vm1346, %vm1347
        %v1349 = vsel %vm1348, %v1340, %v1345
        %v1350 = vmul.f32 %v1333, %v1349
        %v1352 = vperm.slane %v1319, 0
        %v1354 = vmul.f32 %v1350, %v1352
        %v1356 = vperm.slane %v1320, 0
        %v1358 = vadd.f32 %v1354, %v1356
        %v1359 = vpack.c.bf16 %v1358, %v1358
        %v1360 = vld [vmem:[%s6] sm:$0xf]
        %v1361 = vld [vmem:[%s6 + $0x4] sm:$0xf]
        %v1362 = vld [vmem:[%s6 + $0x8] sm:$0xf]
        %v1363 = vld [vmem:[%s6 + $0xc] sm:$0xf]
        %v1364 = vld [vmem:[%s6 + $0x10] sm:$0xf]
        %v1365 = vld [vmem:[%s6 + $0x14] sm:$0xf]
        %v1366 = vld [vmem:[%s6 + $0x18] sm:$0xf]
        %v1367 = vld [vmem:[%s6 + $0x1c] sm:$0xf]
        %v1368 = vld [vmem:[%s7] sm:$0x1]
        %v1369 = vld [vmem:[%s7 + $0x1] sm:$0x1]
        %v1370 = vld [vmem:[%s8] sm:$0xf]
        %v1371 = vld [vmem:[%s8 + $0x4] sm:$0xf]
        %v1372 = vld [vmem:[%s8 + $0x8] sm:$0xf]
        %v1373 = vld [vmem:[%s8 + $0xc] sm:$0xf]
        %v1374 = vld [vmem:[%s8 + $0x10] sm:$0xf]
        %v1375 = vld [vmem:[%s8 + $0x14] sm:$0xf]
        %v1376 = vld [vmem:[%s8 + $0x18] sm:$0xf]
        %v1377 = vld [vmem:[%s8 + $0x1c] sm:$0xf]
        %v1378 = vld [vmem:[%s9] sm:$0x1]
        %v1379 = vld [vmem:[%s9 + $0x1] sm:$0x1]
        %v1380 = vld [vmem:[%s10] sm:$0xf]
        %v1381 = vld [vmem:[%s10 + $0x4] sm:$0xf]
        %v1382 = vld [vmem:[%s10 + $0x8] sm:$0xf]
        %v1383 = vld [vmem:[%s10 + $0xc] sm:$0xf]
        %v1384 = vld [vmem:[%s10 + $0x10] sm:$0xf]
        %v1385 = vld [vmem:[%s10 + $0x14] sm:$0xf]
        %v1386 = vld [vmem:[%s10 + $0x18] sm:$0xf]
        %v1387 = vld [vmem:[%s10 + $0x1c] sm:$0xf]
        %v1388 = vld [vmem:[%s11] sm:$0x1]
        %v1389 = vld [vmem:[%s11 + $0x1] sm:$0x1]
        %v1390 = vld [vmem:[%s12] sm:$0xf]
        %v1391 = vld [vmem:[%s12 + $0x4] sm:$0xf]
        %v1392 = vld [vmem:[%s12 + $0x8] sm:$0xf]
        %v1393 = vld [vmem:[%s12 + $0xc] sm:$0xf]
        %v1394 = vld [vmem:[%s13] sm:$0x1]
        %v1396 = vperm.slane %v1368, 0
        %v1402 = vunpack.c.l.b16 %v1360
        %v1403 = vunpack.c.l.b16 %v1361
        %v1404 = vunpack.c.l.b16 %v1362
        %v1405 = vunpack.c.l.b16 %v1363
        %v1406 = vpack.c.b16 %v1403, %v1402
        %v1407 = vpack.c.b16 %v1405, %v1404
        %v1411 = vsel %vm1321, %v1359, 0
        %1413 = vmatpush.bf16.msra.mxu0 0
        %1414 = vmatpush.bf16.msra.mxu0 0
        %1415 = vmatpush.bf16.msra.mxu0 0
        %1416 = vmatpush.bf16.msra.mxu0 0
        %1417 = vmatpush.bf16.msra.mxu0 0
        %1418 = vmatpush.bf16.msra.mxu0 0
        %1419 = vmatpush.bf16.msra.mxu0 %v1407
        %1420 = vmatpush.bf16.msra.mxu0 %v1406
        %1421 = vmatmul.bf16.gmra.mxu0 %v1411
        %v1422 = vpop.f32.mrf.mxu0
        %v1423 = vadd.f32 %v1396, %v1422
        %v1424 = vpop.f32.mrf.mxu0
        %1425 = vdwg.mxu0
        %v1426 = vmul.f32 %v1423, 0.25
        %v1428 = vperm.slane %v1378, 0
        %v1434 = vunpack.c.l.b16 %v1370
        %v1435 = vunpack.c.l.b16 %v1371
        %v1436 = vunpack.c.l.b16 %v1372
        %v1437 = vunpack.c.l.b16 %v1373
        %v1438 = vpack.c.b16 %v1435, %v1434
        %v1439 = vpack.c.b16 %v1437, %v1436
        %1442 = vmatpush.bf16.msra.mxu0 0
        %1443 = vmatpush.bf16.msra.mxu0 0
        %1444 = vmatpush.bf16.msra.mxu0 0
        %1445 = vmatpush.bf16.msra.mxu0 0
        %1446 = vmatpush.bf16.msra.mxu0 0
        %1447 = vmatpush.bf16.msra.mxu0 0
        %1448 = vmatpush.bf16.msra.mxu0 %v1439
        %1449 = vmatpush.bf16.msra.mxu0 %v1438
        %1450 = vmatmul.bf16.gmra.mxu0 %v1411
        %v1451 = vpop.f32.mrf.mxu0
        %v1452 = vadd.f32 %v1428, %v1451
        %v1453 = vpop.f32.mrf.mxu0
        %1454 = vdwg.mxu0
        %v1456 = vperm.slane %v1388, 0
        %v1462 = vunpack.c.l.b16 %v1380
        %v1463 = vunpack.c.l.b16 %v1381
        %v1464 = vunpack.c.l.b16 %v1382
        %v1465 = vunpack.c.l.b16 %v1383
        %v1466 = vpack.c.b16 %v1463, %v1462
        %v1467 = vpack.c.b16 %v1465, %v1464
        %1470 = vmatpush.bf16.msra.mxu0 0
        %1471 = vmatpush.bf16.msra.mxu0 0
        %1472 = vmatpush.bf16.msra.mxu0 0
        %1473 = vmatpush.bf16.msra.mxu0 0
        %1474 = vmatpush.bf16.msra.mxu0 0
        %1475 = vmatpush.bf16.msra.mxu0 0
        %1476 = vmatpush.bf16.msra.mxu0 %v1467
        %1477 = vmatpush.bf16.msra.mxu0 %v1466
        %1478 = vmatmul.bf16.gmra.mxu0 %v1411
        %v1479 = vpop.f32.mrf.mxu0
        %v1480 = vadd.f32 %v1456, %v1479
        %v1481 = vpop.f32.mrf.mxu0
        %1482 = vdwg.mxu0
        %v1483 = vpack.c.bf16 %v1426, %v1426
        %v1484 = vpack.c.bf16 %v1452, %v1452
        %vm1485 = vcmask 130048
        %v1487 = vsel %vm1485, %v1483, 0
        %v1490 = vsel %vm1485, %v1484, 0
        %1492 = vmatpush.bf16.xpose.msra.mxu0 0
        %1493 = vmatpush.bf16.xpose.msra.mxu0 0
        %1494 = vmatpush.bf16.xpose.msra.mxu0 0
        %1495 = vmatpush.bf16.xpose.msra.mxu0 0
        %1496 = vmatpush.bf16.xpose.msra.mxu0 0
        %1497 = vmatpush.bf16.xpose.msra.mxu0 0
        %1498 = vmatpush.bf16.xpose.msra.mxu0 0
        %1499 = vmatpush.bf16.xpose.msra.mxu0 %v1490
        %1500 = vmatmul.bf16.gmra.mxu0 %v1487
        %v1501 = vpop.f32.mrf.mxu0
        %v1502 = vadd.f32 %v1318, %v1501
        %v1503 = vpop.f32.mrf.mxu0
        %1504 = vdwg.mxu0
        %vm1505 = vcmask 64512
        %v1506 = vsel %vm1505, %v1502, -inf
        %1507 = vmax.xlane.f32.xlu0 %v1506
        %v1508 = vpop.xlane.xlu0 %1507
        %v1509 = vsub.f32 %v1502, %v1508
        %v1510 = vmul.f32 %v1509, 1.442695
        %v1511 = vpow.pop %v1510
        %v1512 = vsel %vm1505, %v1511, 0.0
        %1513 = vadd.xlane.f32.xlu0 %v1512
        %v1514 = vpop.xlane.xlu0 %1513
        %v1515 = vrcp.pop %v1514
        %v1516 = vmul.f32 %v1511, %v1515
        %v1517 = vpack.c.bf16 %v1516, %v1516
        %v1518 = vpack.c.bf16 %v1480, %v1480
        %v1520 = vsel %vm1505, %v1517, 0
        %vm1522 = vcmask 1043456
        %v1524 = vsel %vm1522, %v1518, 0
        %1526 = vmatpush.bf16.msra.mxu0 0
        %1527 = vmatpush.bf16.msra.mxu0 0
        %1528 = vmatpush.bf16.msra.mxu0 0
        %1529 = vmatpush.bf16.msra.mxu0 0
        %1530 = vmatpush.bf16.msra.mxu0 0
        %1531 = vmatpush.bf16.msra.mxu0 0
        %1532 = vmatpush.bf16.msra.mxu0 0
        %1533 = vmatpush.bf16.msra.mxu0 %v1524
        %1534 = vmatmul.bf16.gmra.mxu0 %v1520
        %v1535 = vpop.f32.mrf.mxu0
        %v1536 = vadd.f32 0.0, %v1535
        %v1537 = vpop.f32.mrf.mxu0
        %1538 = vdwg.mxu0
        %v1539 = vpack.c.bf16 %v1536, %v1536
        %v1542 = vunpack.c.l.b16 %v1390
        %v1543 = vunpack.c.l.b16 %v1391
        %v1544 = vpack.c.b16 %v1543, %v1542
        %v1547 = vsel %vm1485, %v1539, 0
        %1549 = vmatpush.bf16.msra.mxu0 0
        %1550 = vmatpush.bf16.msra.mxu0 0
        %1551 = vmatpush.bf16.msra.mxu0 0
        %1552 = vmatpush.bf16.msra.mxu0 0
        %1553 = vmatpush.bf16.msra.mxu0 0
        %1554 = vmatpush.bf16.msra.mxu0 0
        %1555 = vmatpush.bf16.msra.mxu0 0
        %1556 = vmatpush.bf16.msra.mxu0 %v1544
        %1557 = vmatmul.bf16.gmra.mxu0 %v1547
        %v1558 = vpop.f32.mrf.mxu0
        %v1559 = vadd.f32 0.0, %v1558
        %v1560 = vpop.f32.mrf.mxu0
        %1561 = vdwg.mxu0
        %v1563 = vperm.slane %v1394, 0
        %v1565 = vadd.f32 %v1563, %v1559
        %v1567 = vperm.slane %v1369, 0
        %v1573 = vunpack.c.l.b16 %v1364
        %v1574 = vunpack.c.l.b16 %v1365
        %v1575 = vunpack.c.l.b16 %v1366
        %v1576 = vunpack.c.l.b16 %v1367
        %v1577 = vpack.c.b16 %v1574, %v1573
        %v1578 = vpack.c.b16 %v1576, %v1575
        %1581 = vmatpush.bf16.msra.mxu0 0
        %1582 = vmatpush.bf16.msra.mxu0 0
        %1583 = vmatpush.bf16.msra.mxu0 0
        %1584 = vmatpush.bf16.msra.mxu0 0
        %1585 = vmatpush.bf16.msra.mxu0 0
        %1586 = vmatpush.bf16.msra.mxu0 0
        %1587 = vmatpush.bf16.msra.mxu0 %v1578
        %1588 = vmatpush.bf16.msra.mxu0 %v1577
        %1589 = vmatmul.bf16.gmra.mxu0 %v1411
        %v1590 = vpop.f32.mrf.mxu0
        %v1591 = vadd.f32 %v1567, %v1590
        %v1592 = vpop.f32.mrf.mxu0
        %1593 = vdwg.mxu0
        %v1594 = vmul.f32 %v1591, 0.25
        %v1596 = vperm.slane %v1379, 0
        %v1602 = vunpack.c.l.b16 %v1374
        %v1603 = vunpack.c.l.b16 %v1375
        %v1604 = vunpack.c.l.b16 %v1376
        %v1605 = vunpack.c.l.b16 %v1377
        %v1606 = vpack.c.b16 %v1603, %v1602
        %v1607 = vpack.c.b16 %v1605, %v1604
        %1610 = vmatpush.bf16.msra.mxu0 0
        %1611 = vmatpush.bf16.msra.mxu0 0
        %1612 = vmatpush.bf16.msra.mxu0 0
        %1613 = vmatpush.bf16.msra.mxu0 0
        %1614 = vmatpush.bf16.msra.mxu0 0
        %1615 = vmatpush.bf16.msra.mxu0 0
        %1616 = vmatpush.bf16.msra.mxu0 %v1607
        %1617 = vmatpush.bf16.msra.mxu0 %v1606
        %1618 = vmatmul.bf16.gmra.mxu0 %v1411
        %v1619 = vpop.f32.mrf.mxu0
        %v1620 = vadd.f32 %v1596, %v1619
        %v1621 = vpop.f32.mrf.mxu0
        %1622 = vdwg.mxu0
        %v1624 = vperm.slane %v1389, 0
        %v1630 = vunpack.c.l.b16 %v1384
        %v1631 = vunpack.c.l.b16 %v1385
        %v1632 = vunpack.c.l.b16 %v1386
        %v1633 = vunpack.c.l.b16 %v1387
        %v1634 = vpack.c.b16 %v1631, %v1630
        %v1635 = vpack.c.b16 %v1633, %v1632
        %1638 = vmatpush.bf16.msra.mxu0 0
        %1639 = vmatpush.bf16.msra.mxu0 0
        %1640 = vmatpush.bf16.msra.mxu0 0
        %1641 = vmatpush.bf16.msra.mxu0 0
        %1642 = vmatpush.bf16.msra.mxu0 0
        %1643 = vmatpush.bf16.msra.mxu0 0
        %1644 = vmatpush.bf16.msra.mxu0 %v1635
        %1645 = vmatpush.bf16.msra.mxu0 %v1634
        %1646 = vmatmul.bf16.gmra.mxu0 %v1411
        %v1647 = vpop.f32.mrf.mxu0
        %v1648 = vadd.f32 %v1624, %v1647
        %v1649 = vpop.f32.mrf.mxu0
        %1650 = vdwg.mxu0
        %v1651 = vpack.c.bf16 %v1594, %v1594
        %v1652 = vpack.c.bf16 %v1620, %v1620
        %v1654 = vsel %vm1485, %v1651, 0
        %v1657 = vsel %vm1485, %v1652, 0
        %1659 = vmatpush.bf16.xpose.msra.mxu0 0
        %1660 = vmatpush.bf16.xpose.msra.mxu0 0
        %1661 = vmatpush.bf16.xpose.msra.mxu0 0
        %1662 = vmatpush.bf16.xpose.msra.mxu0 0
        %1663 = vmatpush.bf16.xpose.msra.mxu0 0
        %1664 = vmatpush.bf16.xpose.msra.mxu0 0
        %1665 = vmatpush.bf16.xpose.msra.mxu0 0
        %1666 = vmatpush.bf16.xpose.msra.mxu0 %v1657
        %1667 = vmatmul.bf16.gmra.mxu0 %v1654
        %v1668 = vpop.f32.mrf.mxu0
        %v1669 = vadd.f32 %v1318, %v1668
        %v1670 = vpop.f32.mrf.mxu0
        %1671 = vdwg.mxu0
        %v1672 = vsel %vm1505, %v1669, -inf
        %1673 = vmax.xlane.f32.xlu0 %v1672
        %v1674 = vpop.xlane.xlu0 %1673
        %v1675 = vsub.f32 %v1669, %v1674
        %v1676 = vmul.f32 %v1675, 1.442695
        %v1677 = vpow.pop %v1676
        %v1678 = vsel %vm1505, %v1677, 0.0
        %1679 = vadd.xlane.f32.xlu0 %v1678
        %v1680 = vpop.xlane.xlu0 %1679
        %v1681 = vrcp.pop %v1680
        %v1682 = vmul.f32 %v1677, %v1681
        %v1683 = vpack.c.bf16 %v1682, %v1682
        %v1684 = vpack.c.bf16 %v1648, %v1648
        %v1686 = vsel %vm1505, %v1683, 0
        %v1689 = vsel %vm1522, %v1684, 0
        %1691 = vmatpush.bf16.msra.mxu0 0
        %1692 = vmatpush.bf16.msra.mxu0 0
        %1693 = vmatpush.bf16.msra.mxu0 0
        %1694 = vmatpush.bf16.msra.mxu0 0
        %1695 = vmatpush.bf16.msra.mxu0 0
        %1696 = vmatpush.bf16.msra.mxu0 0
        %1697 = vmatpush.bf16.msra.mxu0 0
        %1698 = vmatpush.bf16.msra.mxu0 %v1689
        %1699 = vmatmul.bf16.gmra.mxu0 %v1686
        %v1700 = vpop.f32.mrf.mxu0
        %v1701 = vadd.f32 0.0, %v1700
        %v1702 = vpop.f32.mrf.mxu0
        %1703 = vdwg.mxu0
        %v1704 = vpack.c.bf16 %v1701, %v1701
        %v1707 = vunpack.c.l.b16 %v1392
        %v1708 = vunpack.c.l.b16 %v1393
        %v1709 = vpack.c.b16 %v1708, %v1707
        %v1712 = vsel %vm1485, %v1704, 0
        %1714 = vmatpush.bf16.msra.mxu0 0
        %1715 = vmatpush.bf16.msra.mxu0 0
        %1716 = vmatpush.bf16.msra.mxu0 0
        %1717 = vmatpush.bf16.msra.mxu0 0
        %1718 = vmatpush.bf16.msra.mxu0 0
        %1719 = vmatpush.bf16.msra.mxu0 0
        %1720 = vmatpush.bf16.msra.mxu0 0
        %1721 = vmatpush.bf16.msra.mxu0 %v1709
        %1722 = vmatmul.bf16.gmra.mxu0 %v1712
        %v1723 = vpop.f32.mrf.mxu0
        %v1724 = vadd.f32 0.0, %v1723
        %v1725 = vpop.f32.mrf.mxu0
        %1726 = vdwg.mxu0
        %v1727 = vadd.f32 %v1565, %v1724
        %v1728 = vadd.f32 %v1312, %v1727
        %v1729 = vld [vmem:[%s14] sm:$0x1]
        %v1730 = vld [vmem:[%s15] sm:$0x1]
        %v1731 = vsel %vm1321, %v1728, 0.0
        %1732 = vadd.xlane.f32.xlu0 %v1731
        %v1733 = vpop.xlane.xlu0 %1732
        %v1734 = vmul.f32 %v1733, %v1331
        %v1735 = vsub.f32 %v1728, %v1734
        %v1736 = vmul.f32 %v1735, %v1735
        %v1737 = vsel %vm1321, %v1736, 0.0
        %1738 = vadd.xlane.f32.xlu0 %v1737
        %v1739 = vpop.xlane.xlu0 %1738
        %v1740 = vmul.f32 %v1739, %v1331
        %v1741 = vadd.f32 %v1740, 1e-12
        %v1742 = vrsqrt.pop %v1741
        %v1743 = vmul.f32 %v1742, %v1741
        %v1744 = vmul.f32 %v1743, %v1742
        %v1745 = vmul.f32 0.5, %v1744
        %v1746 = vsub.f32 1.5, %v1745
        %v1747 = vmul.f32 %v1742, %v1746
        %vm1748 = vweird.f32 %v1741
        %vm1749 = vweird.f32 %v1742
        %vm1750 = vmor %vm1748, %vm1749
        %v1751 = vsel %vm1750, %v1742, %v1747
        %v1752 = vmul.f32 %v1735, %v1751
        %v1754 = vperm.slane %v1729, 0
        %v1756 = vmul.f32 %v1752, %v1754
        %v1758 = vperm.slane %v1730, 0
        %v1760 = vadd.f32 %v1756, %v1758
        %v1761 = vpack.c.bf16 %v1760, %v1760
        %v1762 = vld [vmem:[%s16] sm:$0xf]
        %v1763 = vld [vmem:[%s16 + $0x4] sm:$0xf]
        %v1764 = vld [vmem:[%s16 + $0x8] sm:$0xf]
        %v1765 = vld [vmem:[%s16 + $0xc] sm:$0xf]
        %v1766 = vld [vmem:[%s17] sm:$0x1]
        %v1768 = vperm.slane %v1766, 0
        %v1774 = vunpack.c.l.b16 %v1762
        %v1775 = vunpack.c.l.b16 %v1763
        %v1776 = vunpack.c.l.b16 %v1764
        %v1777 = vunpack.c.l.b16 %v1765
        %v1778 = vpack.c.b16 %v1775, %v1774
        %v1779 = vpack.c.b16 %v1777, %v1776
        %v1783 = vsel %vm1321, %v1761, 0
        %1785 = vmatpush.bf16.msra.mxu0 0
        %1786 = vmatpush.bf16.msra.mxu0 0
        %1787 = vmatpush.bf16.msra.mxu0 0
        %1788 = vmatpush.bf16.msra.mxu0 0
        %1789 = vmatpush.bf16.msra.mxu0 0
        %1790 = vmatpush.bf16.msra.mxu0 0
        %1791 = vmatpush.bf16.msra.mxu0 %v1779
        %1792 = vmatpush.bf16.msra.mxu0 %v1778
        %1793 = vmatmul.bf16.gmra.mxu0 %v1783
        %v1794 = vpop.f32.mrf.mxu0
        %v1795 = vadd.f32 %v1768, %v1794
        %v1796 = vpop.f32.mrf.mxu0
        %1797 = vdwg.mxu0
        %v1798 = vmul.f32 %v1795, 0.5
        %v1799 = vmul.f32 %v1795, 0.70710677
        %v1800 = vmul.f32 %v1799, %v1799
        %v1801 = vmin.f32 16.0, %v1800
        %v1802 = vmul.f32 %v1801, 2.1237322e-06
        %v1803 = vadd.f32 %v1802, 0.00028619796
        %v1804 = vmul.f32 %v1801, %v1803
        %v1805 = vadd.f32 %v1804, 0.0036580483
        %v1806 = vmul.f32 %v1801, %v1805
        %v1807 = vadd.f32 %v1806, 0.05243302
        %v1808 = vmul.f32 %v1801, %v1807
        %v1809 = vadd.f32 %v1808, 0.18741608
        %v1810 = vmul.f32 %v1801, %v1809
        %v1811 = vadd.f32 %v1810, 1.1283791
        %v1812 = vmul.f32 %v1799, %v1811
        %v1813 = vmul.f32 %v1801, 3.8918573e-05
        %v1814 = vadd.f32 %v1813, 0.001143296
        %v1815 = vmul.f32 %v1801, %v1814
        %v1816 = vadd.f32 %v1815, 0.014752088
        %v1817 = vmul.f32 %v1801, %v1816
        %v1818 = vadd.f32 %v1817, 0.112945676
        %v1819 = vmul.f32 %v1801, %v1818
        %v1820 = vadd.f32 %v1819, 0.4994258
        %v1821 = vmul.f32 %v1801, %v1820
        %v1822 = vadd.f32 %v1821, 1.0
        %v1823 = vrcp.pop %v1822
        %v1824 = vmul.f32 %v1822, %v1823
        %v1825 = vsub.f32 1.0, %v1824
        %v1826 = vmul.f32 %v1823, %v1825
        %v1827 = vadd.f32 %v1823, %v1826
        %vm1828 = vweird.f32 %v1822
        %vm1829 = vweird.f32 %v1823
        %vm1830 = vmor %vm1828, %vm1829
        %v1831 = vsel %vm1830, %v1823, %v1827
        %v1832 = vand.u32 2147483647, %v1822
        %vm1833 = vcmp.eq.f32.partialorder %v1832, 8.507059e+37
        %v1834 = vand.u32 %v1822, 2147483648
        %v1835 = vor.u32 1.1754944e-38, %v1834
        %v1836 = vsel %vm1833, %v1835, %v1831
        %v1837 = vmul.f32 %v1812, %v1836
        %v1838 = vmin.f32 %v1837, 1.0
        %v1839 = vmax.f32 %v1838, -1.0
        %v1840 = vadd.f32 %v1839, 1.0
        %v1841 = vmul.f32 %v1798, %v1840
        %v1842 = vpack.c.bf16 %v1841, %v1841
        %v1843 = vld [vmem:[%s18] sm:$0xf]
        %v1844 = vld [vmem:[%s18 + $0x4] sm:$0xf]
        %v1845 = vld [vmem:[%s18 + $0x8] sm:$0xf]
        %v1846 = vld [vmem:[%s18 + $0xc] sm:$0xf]
        %v1847 = vld [vmem:[%s18 + $0x10] sm:$0xf]
        %v1848 = vld [vmem:[%s18 + $0x14] sm:$0xf]
        %v1849 = vld [vmem:[%s18 + $0x18] sm:$0xf]
        %v1850 = vld [vmem:[%s18 + $0x1c] sm:$0xf]
        %v1851 = vld [vmem:[%s18 + $0x20] sm:$0xf]
        %v1852 = vld [vmem:[%s18 + $0x24] sm:$0xf]
        %v1853 = vld [vmem:[%s18 + $0x28] sm:$0xf]
        %v1854 = vld [vmem:[%s18 + $0x2c] sm:$0xf]
        %v1855 = vld [vmem:[%s18 + $0x30] sm:$0xf]
        %v1856 = vld [vmem:[%s18 + $0x34] sm:$0xf]
        %v1857 = vld [vmem:[%s18 + $0x38] sm:$0xf]
        %v1858 = vld [vmem:[%s18 + $0x3c] sm:$0xf]
        %v1875 = vunpack.c.l.b16 %v1843
        %v1876 = vunpack.c.l.b16 %v1844
        %v1877 = vunpack.c.l.b16 %v1845
        %v1878 = vunpack.c.l.b16 %v1846
        %v1879 = vunpack.c.l.b16 %v1847
        %v1880 = vunpack.c.l.b16 %v1848
        %v1881 = vunpack.c.l.b16 %v1849
        %v1882 = vunpack.c.l.b16 %v1850
        %v1883 = vunpack.c.l.b16 %v1851
        %v1884 = vunpack.c.l.b16 %v1852
        %v1885 = vunpack.c.l.b16 %v1853
        %v1886 = vunpack.c.l.b16 %v1854
        %v1887 = vunpack.c.l.b16 %v1855
        %v1888 = vunpack.c.l.b16 %v1856
        %v1889 = vunpack.c.l.b16 %v1857
        %v1890 = vunpack.c.l.b16 %v1858
        %v1891 = vpack.c.b16 %v1876, %v1875
        %v1892 = vpack.c.b16 %v1878, %v1877
        %v1893 = vpack.c.b16 %v1880, %v1879
        %v1894 = vpack.c.b16 %v1882, %v1881
        %v1895 = vpack.c.b16 %v1884, %v1883
        %v1896 = vpack.c.b16 %v1886, %v1885
        %v1897 = vpack.c.b16 %v1888, %v1887
        %v1898 = vpack.c.b16 %v1890, %v1889
        %1907 = vmatpush.bf16.msra.mxu0 %v1898
        %1908 = vmatpush.bf16.msra.mxu0 %v1897
        %1909 = vmatpush.bf16.msra.mxu0 %v1896
        %1910 = vmatpush.bf16.msra.mxu0 %v1895
        %1911 = vmatpush.bf16.msra.mxu0 %v1894
        %1912 = vmatpush.bf16.msra.mxu0 %v1893
        %1913 = vmatpush.bf16.msra.mxu0 %v1892
        %1914 = vmatpush.bf16.msra.mxu0 %v1891
        %1915 = vmatmul.bf16.gmra.mxu0 %v1842
        %v1916 = vpop.f32.mrf.mxu0
        %v1917 = vadd.f32 0.0, %v1916
        %v1918 = vpop.f32.mrf.mxu0
        %1919 = vdwg.mxu0
        %v1920 = vadd.f32 %v1728, %v1917
        %v1921 = vld [vmem:[%s19] sm:$0x1]
        %v1923 = vperm.slane %v1921, 0
        %v1925 = vadd.f32 %v1920, %v1923
        %s1926 = scalar_lea.vmem %s4, 1
        %v1927 = vld [vmem:[%s1926] sm:$0x1]
        %s1928 = scalar_lea.vmem %s5, 1
        %v1929 = vld [vmem:[%s1928] sm:$0x1]
        %v1930 = vsel %vm1321, %v1925, 0.0
        %1931 = vadd.xlane.f32.xlu0 %v1930
        %v1932 = vpop.xlane.xlu0 %1931
        %v1933 = vmul.f32 %v1932, %v1331
        %v1934 = vsub.f32 %v1925, %v1933
        %v1935 = vmul.f32 %v1934, %v1934
        %v1936 = vsel %vm1321, %v1935, 0.0
        %1937 = vadd.xlane.f32.xlu0 %v1936
        %v1938 = vpop.xlane.xlu0 %1937
        %v1939 = vmul.f32 %v1938, %v1331
        %v1940 = vadd.f32 %v1939, 1e-12
        %v1941 = vrsqrt.pop %v1940
        %v1942 = vmul.f32 %v1941, %v1940
        %v1943 = vmul.f32 %v1942, %v1941
        %v1944 = vmul.f32 0.5, %v1943
        %v1945 = vsub.f32 1.5, %v1944
        %v1946 = vmul.f32 %v1941, %v1945
        %vm1947 = vweird.f32 %v1940
        %vm1948 = vweird.f32 %v1941
        %vm1949 = vmor %vm1947, %vm1948
        %v1950 = vsel %vm1949, %v1941, %v1946
        %v1951 = vmul.f32 %v1934, %v1950
        %v1953 = vperm.slane %v1927, 0
        %v1955 = vmul.f32 %v1951, %v1953
        %v1957 = vperm.slane %v1929, 0
        %v1959 = vadd.f32 %v1955, %v1957
        %v1960 = vpack.c.bf16 %v1959, %v1959
        %s1961 = scalar_lea.vmem %s6, 32
        %v1962 = vld [vmem:[%s1961] sm:$0xf]
        %v1963 = vld [vmem:[%s1961 + $0x4] sm:$0xf]
        %v1964 = vld [vmem:[%s1961 + $0x8] sm:$0xf]
        %v1965 = vld [vmem:[%s1961 + $0xc] sm:$0xf]
        %v1966 = vld [vmem:[%s1961 + $0x10] sm:$0xf]
        %v1967 = vld [vmem:[%s1961 + $0x14] sm:$0xf]
        %v1968 = vld [vmem:[%s1961 + $0x18] sm:$0xf]
        %v1969 = vld [vmem:[%s1961 + $0x1c] sm:$0xf]
        %s1970 = scalar_lea.vmem %s7, 2
        %v1971 = vld [vmem:[%s1970] sm:$0x1]
        %v1972 = vld [vmem:[%s1970 + $0x1] sm:$0x1]
        %s1973 = scalar_lea.vmem %s8, 32
        %v1974 = vld [vmem:[%s1973] sm:$0xf]
        %v1975 = vld [vmem:[%s1973 + $0x4] sm:$0xf]
        %v1976 = vld [vmem:[%s1973 + $0x8] sm:$0xf]
        %v1977 = vld [vmem:[%s1973 + $0xc] sm:$0xf]
        %v1978 = vld [vmem:[%s1973 + $0x10] sm:$0xf]
        %v1979 = vld [vmem:[%s1973 + $0x14] sm:$0xf]
        %v1980 = vld [vmem:[%s1973 + $0x18] sm:$0xf]
        %v1981 = vld [vmem:[%s1973 + $0x1c] sm:$0xf]
        %s1982 = scalar_lea.vmem %s9, 2
        %v1983 = vld [vmem:[%s1982] sm:$0x1]
        %v1984 = vld [vmem:[%s1982 + $0x1] sm:$0x1]
        %s1985 = scalar_lea.vmem %s10, 32
        %v1986 = vld [vmem:[%s1985] sm:$0xf]
        %v1987 = vld [vmem:[%s1985 + $0x4] sm:$0xf]
        %v1988 = vld [vmem:[%s1985 + $0x8] sm:$0xf]
        %v1989 = vld [vmem:[%s1985 + $0xc] sm:$0xf]
        %v1990 = vld [vmem:[%s1985 + $0x10] sm:$0xf]
        %v1991 = vld [vmem:[%s1985 + $0x14] sm:$0xf]
        %v1992 = vld [vmem:[%s1985 + $0x18] sm:$0xf]
        %v1993 = vld [vmem:[%s1985 + $0x1c] sm:$0xf]
        %s1994 = scalar_lea.vmem %s11, 2
        %v1995 = vld [vmem:[%s1994] sm:$0x1]
        %v1996 = vld [vmem:[%s1994 + $0x1] sm:$0x1]
        %s1997 = scalar_lea.vmem %s12, 16
        %v1998 = vld [vmem:[%s1997] sm:$0xf]
        %v1999 = vld [vmem:[%s1997 + $0x4] sm:$0xf]
        %v2000 = vld [vmem:[%s1997 + $0x8] sm:$0xf]
        %v2001 = vld [vmem:[%s1997 + $0xc] sm:$0xf]
        %s2002 = scalar_lea.vmem %s13, 1
        %v2003 = vld [vmem:[%s2002] sm:$0x1]
        %v2005 = vperm.slane %v1971, 0
        %v2011 = vunpack.c.l.b16 %v1962
        %v2012 = vunpack.c.l.b16 %v1963
        %v2013 = vunpack.c.l.b16 %v1964
        %v2014 = vunpack.c.l.b16 %v1965
        %v2015 = vpack.c.b16 %v2012, %v2011
        %v2016 = vpack.c.b16 %v2014, %v2013
        %v2020 = vsel %vm1321, %v1960, 0
        %2022 = vmatpush.bf16.msra.mxu0 0
        %2023 = vmatpush.bf16.msra.mxu0 0
        %2024 = vmatpush.bf16.msra.mxu0 0
        %2025 = vmatpush.bf16.msra.mxu0 0
        %2026 = vmatpush.bf16.msra.mxu0 0
        %2027 = vmatpush.bf16.msra.mxu0 0
        %2028 = vmatpush.bf16.msra.mxu0 %v2016
        %2029 = vmatpush.bf16.msra.mxu0 %v2015
        %2030 = vmatmul.bf16.gmra.mxu0 %v2020
        %v2031 = vpop.f32.mrf.mxu0
        %v2032 = vadd.f32 %v2005, %v2031
        %v2033 = vpop.f32.mrf.mxu0
        %2034 = vdwg.mxu0
        %v2035 = vmul.f32 %v2032, 0.25
        %v2037 = vperm.slane %v1983, 0
        %v2043 = vunpack.c.l.b16 %v1974
        %v2044 = vunpack.c.l.b16 %v1975
        %v2045 = vunpack.c.l.b16 %v1976
        %v2046 = vunpack.c.l.b16 %v1977
        %v2047 = vpack.c.b16 %v2044, %v2043
        %v2048 = vpack.c.b16 %v2046, %v2045
        %2051 = vmatpush.bf16.msra.mxu0 0
        %2052 = vmatpush.bf16.msra.mxu0 0
        %2053 = vmatpush.bf16.msra.mxu0 0
        %2054 = vmatpush.bf16.msra.mxu0 0
        %2055 = vmatpush.bf16.msra.mxu0 0
        %2056 = vmatpush.bf16.msra.mxu0 0
        %2057 = vmatpush.bf16.msra.mxu0 %v2048
        %2058 = vmatpush.bf16.msra.mxu0 %v2047
        %2059 = vmatmul.bf16.gmra.mxu0 %v2020
        %v2060 = vpop.f32.mrf.mxu0
        %v2061 = vadd.f32 %v2037, %v2060
        %v2062 = vpop.f32.mrf.mxu0
        %2063 = vdwg.mxu0
        %v2065 = vperm.slane %v1995, 0
        %v2071 = vunpack.c.l.b16 %v1986
        %v2072 = vunpack.c.l.b16 %v1987
        %v2073 = vunpack.c.l.b16 %v1988
        %v2074 = vunpack.c.l.b16 %v1989
        %v2075 = vpack.c.b16 %v2072, %v2071
        %v2076 = vpack.c.b16 %v2074, %v2073
        %2079 = vmatpush.bf16.msra.mxu0 0
        %2080 = vmatpush.bf16.msra.mxu0 0
        %2081 = vmatpush.bf16.msra.mxu0 0
        %2082 = vmatpush.bf16.msra.mxu0 0
        %2083 = vmatpush.bf16.msra.mxu0 0
        %2084 = vmatpush.bf16.msra.mxu0 0
        %2085 = vmatpush.bf16.msra.mxu0 %v2076
        %2086 = vmatpush.bf16.msra.mxu0 %v2075
        %2087 = vmatmul.bf16.gmra.mxu0 %v2020
        %v2088 = vpop.f32.mrf.mxu0
        %v2089 = vadd.f32 %v2065, %v2088
        %v2090 = vpop.f32.mrf.mxu0
        %2091 = vdwg.mxu0
        %v2092 = vpack.c.bf16 %v2035, %v2035
        %v2093 = vpack.c.bf16 %v2061, %v2061
        %v2095 = vsel %vm1485, %v2092, 0
        %v2098 = vsel %vm1485, %v2093, 0
        %2100 = vmatpush.bf16.xpose.msra.mxu0 0
        %2101 = vmatpush.bf16.xpose.msra.mxu0 0
        %2102 = vmatpush.bf16.xpose.msra.mxu0 0
        %2103 = vmatpush.bf16.xpose.msra.mxu0 0
        %2104 = vmatpush.bf16.xpose.msra.mxu0 0
        %2105 = vmatpush.bf16.xpose.msra.mxu0 0
        %2106 = vmatpush.bf16.xpose.msra.mxu0 0
        %2107 = vmatpush.bf16.xpose.msra.mxu0 %v2098
        %2108 = vmatmul.bf16.gmra.mxu0 %v2095
        %v2109 = vpop.f32.mrf.mxu0
        %v2110 = vadd.f32 %v1318, %v2109
        %v2111 = vpop.f32.mrf.mxu0
        %2112 = vdwg.mxu0
        %v2113 = vsel %vm1505, %v2110, -inf
        %2114 = vmax.xlane.f32.xlu0 %v2113
        %v2115 = vpop.xlane.xlu0 %2114
        %v2116 = vsub.f32 %v2110, %v2115
        %v2117 = vmul.f32 %v2116, 1.442695
        %v2118 = vpow.pop %v2117
        %v2119 = vsel %vm1505, %v2118, 0.0
        %2120 = vadd.xlane.f32.xlu0 %v2119
        %v2121 = vpop.xlane.xlu0 %2120
        %v2122 = vrcp.pop %v2121
        %v2123 = vmul.f32 %v2118, %v2122
        %v2124 = vpack.c.bf16 %v2123, %v2123
        %v2125 = vpack.c.bf16 %v2089, %v2089
        %v2127 = vsel %vm1505, %v2124, 0
        %v2130 = vsel %vm1522, %v2125, 0
        %2132 = vmatpush.bf16.msra.mxu0 0
        %2133 = vmatpush.bf16.msra.mxu0 0
        %2134 = vmatpush.bf16.msra.mxu0 0
        %2135 = vmatpush.bf16.msra.mxu0 0
        %2136 = vmatpush.bf16.msra.mxu0 0
        %2137 = vmatpush.bf16.msra.mxu0 0
        %2138 = vmatpush.bf16.msra.mxu0 0
        %2139 = vmatpush.bf16.msra.mxu0 %v2130
        %2140 = vmatmul.bf16.gmra.mxu0 %v2127
        %v2141 = vpop.f32.mrf.mxu0
        %v2142 = vadd.f32 0.0, %v2141
        %v2143 = vpop.f32.mrf.mxu0
        %2144 = vdwg.mxu0
        %v2145 = vpack.c.bf16 %v2142, %v2142
        %v2148 = vunpack.c.l.b16 %v1998
        %v2149 = vunpack.c.l.b16 %v1999
        %v2150 = vpack.c.b16 %v2149, %v2148
        %v2153 = vsel %vm1485, %v2145, 0
        %2155 = vmatpush.bf16.msra.mxu0 0
        %2156 = vmatpush.bf16.msra.mxu0 0
        %2157 = vmatpush.bf16.msra.mxu0 0
        %2158 = vmatpush.bf16.msra.mxu0 0
        %2159 = vmatpush.bf16.msra.mxu0 0
        %2160 = vmatpush.bf16.msra.mxu0 0
        %2161 = vmatpush.bf16.msra.mxu0 0
        %2162 = vmatpush.bf16.msra.mxu0 %v2150
        %2163 = vmatmul.bf16.gmra.mxu0 %v2153
        %v2164 = vpop.f32.mrf.mxu0
        %v2165 = vadd.f32 0.0, %v2164
        %v2166 = vpop.f32.mrf.mxu0
        %2167 = vdwg.mxu0
        %v2169 = vperm.slane %v2003, 0
        %v2171 = vadd.f32 %v2169, %v2165
        %v2173 = vperm.slane %v1972, 0
        %v2179 = vunpack.c.l.b16 %v1966
        %v2180 = vunpack.c.l.b16 %v1967
        %v2181 = vunpack.c.l.b16 %v1968
        %v2182 = vunpack.c.l.b16 %v1969
        %v2183 = vpack.c.b16 %v2180, %v2179
        %v2184 = vpack.c.b16 %v2182, %v2181
        %2187 = vmatpush.bf16.msra.mxu0 0
        %2188 = vmatpush.bf16.msra.mxu0 0
        %2189 = vmatpush.bf16.msra.mxu0 0
        %2190 = vmatpush.bf16.msra.mxu0 0
        %2191 = vmatpush.bf16.msra.mxu0 0
        %2192 = vmatpush.bf16.msra.mxu0 0
        %2193 = vmatpush.bf16.msra.mxu0 %v2184
        %2194 = vmatpush.bf16.msra.mxu0 %v2183
        %2195 = vmatmul.bf16.gmra.mxu0 %v2020
        %v2196 = vpop.f32.mrf.mxu0
        %v2197 = vadd.f32 %v2173, %v2196
        %v2198 = vpop.f32.mrf.mxu0
        %2199 = vdwg.mxu0
        %v2200 = vmul.f32 %v2197, 0.25
        %v2202 = vperm.slane %v1984, 0
        %v2208 = vunpack.c.l.b16 %v1978
        %v2209 = vunpack.c.l.b16 %v1979
        %v2210 = vunpack.c.l.b16 %v1980
        %v2211 = vunpack.c.l.b16 %v1981
        %v2212 = vpack.c.b16 %v2209, %v2208
        %v2213 = vpack.c.b16 %v2211, %v2210
        %2216 = vmatpush.bf16.msra.mxu0 0
        %2217 = vmatpush.bf16.msra.mxu0 0
        %2218 = vmatpush.bf16.msra.mxu0 0
        %2219 = vmatpush.bf16.msra.mxu0 0
        %2220 = vmatpush.bf16.msra.mxu0 0
        %2221 = vmatpush.bf16.msra.mxu0 0
        %2222 = vmatpush.bf16.msra.mxu0 %v2213
        %2223 = vmatpush.bf16.msra.mxu0 %v2212
        %2224 = vmatmul.bf16.gmra.mxu0 %v2020
        %v2225 = vpop.f32.mrf.mxu0
        %v2226 = vadd.f32 %v2202, %v2225
        %v2227 = vpop.f32.mrf.mxu0
        %2228 = vdwg.mxu0
        %v2230 = vperm.slane %v1996, 0
        %v2236 = vunpack.c.l.b16 %v1990
        %v2237 = vunpack.c.l.b16 %v1991
        %v2238 = vunpack.c.l.b16 %v1992
        %v2239 = vunpack.c.l.b16 %v1993
        %v2240 = vpack.c.b16 %v2237, %v2236
        %v2241 = vpack.c.b16 %v2239, %v2238
        %2244 = vmatpush.bf16.msra.mxu0 0
        %2245 = vmatpush.bf16.msra.mxu0 0
        %2246 = vmatpush.bf16.msra.mxu0 0
        %2247 = vmatpush.bf16.msra.mxu0 0
        %2248 = vmatpush.bf16.msra.mxu0 0
        %2249 = vmatpush.bf16.msra.mxu0 0
        %2250 = vmatpush.bf16.msra.mxu0 %v2241
        %2251 = vmatpush.bf16.msra.mxu0 %v2240
        %2252 = vmatmul.bf16.gmra.mxu0 %v2020
        %v2253 = vpop.f32.mrf.mxu0
        %v2254 = vadd.f32 %v2230, %v2253
        %v2255 = vpop.f32.mrf.mxu0
        %2256 = vdwg.mxu0
        %v2257 = vpack.c.bf16 %v2200, %v2200
        %v2258 = vpack.c.bf16 %v2226, %v2226
        %v2260 = vsel %vm1485, %v2257, 0
        %v2263 = vsel %vm1485, %v2258, 0
        %2265 = vmatpush.bf16.xpose.msra.mxu0 0
        %2266 = vmatpush.bf16.xpose.msra.mxu0 0
        %2267 = vmatpush.bf16.xpose.msra.mxu0 0
        %2268 = vmatpush.bf16.xpose.msra.mxu0 0
        %2269 = vmatpush.bf16.xpose.msra.mxu0 0
        %2270 = vmatpush.bf16.xpose.msra.mxu0 0
        %2271 = vmatpush.bf16.xpose.msra.mxu0 0
        %2272 = vmatpush.bf16.xpose.msra.mxu0 %v2263
        %2273 = vmatmul.bf16.gmra.mxu0 %v2260
        %v2274 = vpop.f32.mrf.mxu0
        %v2275 = vadd.f32 %v1318, %v2274
        %v2276 = vpop.f32.mrf.mxu0
        %2277 = vdwg.mxu0
        %v2278 = vsel %vm1505, %v2275, -inf
        %2279 = vmax.xlane.f32.xlu0 %v2278
        %v2280 = vpop.xlane.xlu0 %2279
        %v2281 = vsub.f32 %v2275, %v2280
        %v2282 = vmul.f32 %v2281, 1.442695
        %v2283 = vpow.pop %v2282
        %v2284 = vsel %vm1505, %v2283, 0.0
        %2285 = vadd.xlane.f32.xlu0 %v2284
        %v2286 = vpop.xlane.xlu0 %2285
        %v2287 = vrcp.pop %v2286
        %v2288 = vmul.f32 %v2283, %v2287
        %v2289 = vpack.c.bf16 %v2288, %v2288
        %v2290 = vpack.c.bf16 %v2254, %v2254
        %v2292 = vsel %vm1505, %v2289, 0
        %v2295 = vsel %vm1522, %v2290, 0
        %2297 = vmatpush.bf16.msra.mxu0 0
        %2298 = vmatpush.bf16.msra.mxu0 0
        %2299 = vmatpush.bf16.msra.mxu0 0
        %2300 = vmatpush.bf16.msra.mxu0 0
        %2301 = vmatpush.bf16.msra.mxu0 0
        %2302 = vmatpush.bf16.msra.mxu0 0
        %2303 = vmatpush.bf16.msra.mxu0 0
        %2304 = vmatpush.bf16.msra.mxu0 %v2295
        %2305 = vmatmul.bf16.gmra.mxu0 %v2292
        %v2306 = vpop.f32.mrf.mxu0
        %v2307 = vadd.f32 0.0, %v2306
        %v2308 = vpop.f32.mrf.mxu0
        %2309 = vdwg.mxu0
        %v2310 = vpack.c.bf16 %v2307, %v2307
        %v2313 = vunpack.c.l.b16 %v2000
        %v2314 = vunpack.c.l.b16 %v2001
        %v2315 = vpack.c.b16 %v2314, %v2313
        %v2318 = vsel %vm1485, %v2310, 0
        %2320 = vmatpush.bf16.msra.mxu0 0
        %2321 = vmatpush.bf16.msra.mxu0 0
        %2322 = vmatpush.bf16.msra.mxu0 0
        %2323 = vmatpush.bf16.msra.mxu0 0
        %2324 = vmatpush.bf16.msra.mxu0 0
        %2325 = vmatpush.bf16.msra.mxu0 0
        %2326 = vmatpush.bf16.msra.mxu0 0
        %2327 = vmatpush.bf16.msra.mxu0 %v2315
        %2328 = vmatmul.bf16.gmra.mxu0 %v2318
        %v2329 = vpop.f32.mrf.mxu0
        %v2330 = vadd.f32 0.0, %v2329
        %v2331 = vpop.f32.mrf.mxu0
        %2332 = vdwg.mxu0
        %v2333 = vadd.f32 %v2171, %v2330
        %v2334 = vadd.f32 %v1925, %v2333
        %s2335 = scalar_lea.vmem %s14, 1
        %v2336 = vld [vmem:[%s2335] sm:$0x1]
        %s2337 = scalar_lea.vmem %s15, 1
        %v2338 = vld [vmem:[%s2337] sm:$0x1]
        %v2339 = vsel %vm1321, %v2334, 0.0
        %2340 = vadd.xlane.f32.xlu0 %v2339
        %v2341 = vpop.xlane.xlu0 %2340
        %v2342 = vmul.f32 %v2341, %v1331
        %v2343 = vsub.f32 %v2334, %v2342
        %v2344 = vmul.f32 %v2343, %v2343
        %v2345 = vsel %vm1321, %v2344, 0.0
        %2346 = vadd.xlane.f32.xlu0 %v2345
        %v2347 = vpop.xlane.xlu0 %2346
        %v2348 = vmul.f32 %v2347, %v1331
        %v2349 = vadd.f32 %v2348, 1e-12
        %v2350 = vrsqrt.pop %v2349
        %v2351 = vmul.f32 %v2350, %v2349
        %v2352 = vmul.f32 %v2351, %v2350
        %v2353 = vmul.f32 0.5, %v2352
        %v2354 = vsub.f32 1.5, %v2353
        %v2355 = vmul.f32 %v2350, %v2354
        %vm2356 = vweird.f32 %v2349
        %vm2357 = vweird.f32 %v2350
        %vm2358 = vmor %vm2356, %vm2357
        %v2359 = vsel %vm2358, %v2350, %v2355
        %v2360 = vmul.f32 %v2343, %v2359
        %v2362 = vperm.slane %v2336, 0
        %v2364 = vmul.f32 %v2360, %v2362
        %v2366 = vperm.slane %v2338, 0
        %v2368 = vadd.f32 %v2364, %v2366
        %v2369 = vpack.c.bf16 %v2368, %v2368
        %s2370 = scalar_lea.vmem %s16, 16
        %v2371 = vld [vmem:[%s2370] sm:$0xf]
        %v2372 = vld [vmem:[%s2370 + $0x4] sm:$0xf]
        %v2373 = vld [vmem:[%s2370 + $0x8] sm:$0xf]
        %v2374 = vld [vmem:[%s2370 + $0xc] sm:$0xf]
        %s2375 = scalar_lea.vmem %s17, 1
        %v2376 = vld [vmem:[%s2375] sm:$0x1]
        %v2378 = vperm.slane %v2376, 0
        %v2384 = vunpack.c.l.b16 %v2371
        %v2385 = vunpack.c.l.b16 %v2372
        %v2386 = vunpack.c.l.b16 %v2373
        %v2387 = vunpack.c.l.b16 %v2374
        %v2388 = vpack.c.b16 %v2385, %v2384
        %v2389 = vpack.c.b16 %v2387, %v2386
        %v2393 = vsel %vm1321, %v2369, 0
        %2395 = vmatpush.bf16.msra.mxu0 0
        %2396 = vmatpush.bf16.msra.mxu0 0
        %2397 = vmatpush.bf16.msra.mxu0 0
        %2398 = vmatpush.bf16.msra.mxu0 0
        %2399 = vmatpush.bf16.msra.mxu0 0
        %2400 = vmatpush.bf16.msra.mxu0 0
        %2401 = vmatpush.bf16.msra.mxu0 %v2389
        %2402 = vmatpush.bf16.msra.mxu0 %v2388
        %2403 = vmatmul.bf16.gmra.mxu0 %v2393
        %v2404 = vpop.f32.mrf.mxu0
        %v2405 = vadd.f32 %v2378, %v2404
        %v2406 = vpop.f32.mrf.mxu0
        %2407 = vdwg.mxu0
        %v2408 = vmul.f32 %v2405, 0.5
        %v2409 = vmul.f32 %v2405, 0.70710677
        %v2410 = vmul.f32 %v2409, %v2409
        %v2411 = vmin.f32 16.0, %v2410
        %v2412 = vmul.f32 %v2411, 2.1237322e-06
        %v2413 = vadd.f32 %v2412, 0.00028619796
        %v2414 = vmul.f32 %v2411, %v2413
        %v2415 = vadd.f32 %v2414, 0.0036580483
        %v2416 = vmul.f32 %v2411, %v2415
        %v2417 = vadd.f32 %v2416, 0.05243302
        %v2418 = vmul.f32 %v2411, %v2417
        %v2419 = vadd.f32 %v2418, 0.18741608
        %v2420 = vmul.f32 %v2411, %v2419
        %v2421 = vadd.f32 %v2420, 1.1283791
        %v2422 = vmul.f32 %v2409, %v2421
        %v2423 = vmul.f32 %v2411, 3.8918573e-05
        %v2424 = vadd.f32 %v2423, 0.001143296
        %v2425 = vmul.f32 %v2411, %v2424
        %v2426 = vadd.f32 %v2425, 0.014752088
        %v2427 = vmul.f32 %v2411, %v2426
        %v2428 = vadd.f32 %v2427, 0.112945676
        %v2429 = vmul.f32 %v2411, %v2428
        %v2430 = vadd.f32 %v2429, 0.4994258
        %v2431 = vmul.f32 %v2411, %v2430
        %v2432 = vadd.f32 %v2431, 1.0
        %v2433 = vrcp.pop %v2432
        %v2434 = vmul.f32 %v2432, %v2433
        %v2435 = vsub.f32 1.0, %v2434
        %v2436 = vmul.f32 %v2433, %v2435
        %v2437 = vadd.f32 %v2433, %v2436
        %vm2438 = vweird.f32 %v2432
        %vm2439 = vweird.f32 %v2433
        %vm2440 = vmor %vm2438, %vm2439
        %v2441 = vsel %vm2440, %v2433, %v2437
        %v2442 = vand.u32 2147483647, %v2432
        %vm2443 = vcmp.eq.f32.partialorder %v2442, 8.507059e+37
        %v2444 = vand.u32 %v2432, 2147483648
        %v2445 = vor.u32 1.1754944e-38, %v2444
        %v2446 = vsel %vm2443, %v2445, %v2441
        %v2447 = vmul.f32 %v2422, %v2446
        %v2448 = vmin.f32 %v2447, 1.0
        %v2449 = vmax.f32 %v2448, -1.0
        %v2450 = vadd.f32 %v2449, 1.0
        %v2451 = vmul.f32 %v2408, %v2450
        %v2452 = vpack.c.bf16 %v2451, %v2451
        %s2453 = scalar_lea.vmem %s18, 64
        %v2454 = vld [vmem:[%s2453] sm:$0xf]
        %v2455 = vld [vmem:[%s2453 + $0x4] sm:$0xf]
        %v2456 = vld [vmem:[%s2453 + $0x8] sm:$0xf]
        %v2457 = vld [vmem:[%s2453 + $0xc] sm:$0xf]
        %v2458 = vld [vmem:[%s2453 + $0x10] sm:$0xf]
        %v2459 = vld [vmem:[%s2453 + $0x14] sm:$0xf]
        %v2460 = vld [vmem:[%s2453 + $0x18] sm:$0xf]
        %v2461 = vld [vmem:[%s2453 + $0x1c] sm:$0xf]
        %v2462 = vld [vmem:[%s2453 + $0x20] sm:$0xf]
        %v2463 = vld [vmem:[%s2453 + $0x24] sm:$0xf]
        %v2464 = vld [vmem:[%s2453 + $0x28] sm:$0xf]
        %v2465 = vld [vmem:[%s2453 + $0x2c] sm:$0xf]
        %v2466 = vld [vmem:[%s2453 + $0x30] sm:$0xf]
        %v2467 = vld [vmem:[%s2453 + $0x34] sm:$0xf]
        %v2468 = vld [vmem:[%s2453 + $0x38] sm:$0xf]
        %v2469 = vld [vmem:[%s2453 + $0x3c] sm:$0xf]
        %v2486 = vunpack.c.l.b16 %v2454
        %v2487 = vunpack.c.l.b16 %v2455
        %v2488 = vunpack.c.l.b16 %v2456
        %v2489 = vunpack.c.l.b16 %v2457
        %v2490 = vunpack.c.l.b16 %v2458
        %v2491 = vunpack.c.l.b16 %v2459
        %v2492 = vunpack.c.l.b16 %v2460
        %v2493 = vunpack.c.l.b16 %v2461
        %v2494 = vunpack.c.l.b16 %v2462
        %v2495 = vunpack.c.l.b16 %v2463
        %v2496 = vunpack.c.l.b16 %v2464
        %v2497 = vunpack.c.l.b16 %v2465
        %v2498 = vunpack.c.l.b16 %v2466
        %v2499 = vunpack.c.l.b16 %v2467
        %v2500 = vunpack.c.l.b16 %v2468
        %v2501 = vunpack.c.l.b16 %v2469
        %v2502 = vpack.c.b16 %v2487, %v2486
        %v2503 = vpack.c.b16 %v2489, %v2488
        %v2504 = vpack.c.b16 %v2491, %v2490
        %v2505 = vpack.c.b16 %v2493, %v2492
        %v2506 = vpack.c.b16 %v2495, %v2494
        %v2507 = vpack.c.b16 %v2497, %v2496
        %v2508 = vpack.c.b16 %v2499, %v2498
        %v2509 = vpack.c.b16 %v2501, %v2500
        %2518 = vmatpush.bf16.msra.mxu0 %v2509
        %2519 = vmatpush.bf16.msra.mxu0 %v2508
        %2520 = vmatpush.bf16.msra.mxu0 %v2507
        %2521 = vmatpush.bf16.msra.mxu0 %v2506
        %2522 = vmatpush.bf16.msra.mxu0 %v2505
        %2523 = vmatpush.bf16.msra.mxu0 %v2504
        %2524 = vmatpush.bf16.msra.mxu0 %v2503
        %2525 = vmatpush.bf16.msra.mxu0 %v2502
        %2526 = vmatmul.bf16.gmra.mxu0 %v2452
        %v2527 = vpop.f32.mrf.mxu0
        %v2528 = vadd.f32 0.0, %v2527
        %v2529 = vpop.f32.mrf.mxu0
        %2530 = vdwg.mxu0
        %v2531 = vadd.f32 %v2334, %v2528
        %s2532 = scalar_lea.vmem %s19, 1
        %v2533 = vld [vmem:[%s2532] sm:$0x1]
        %v2535 = vperm.slane %v2533, 0
        %v2537 = vadd.f32 %v2531, %v2535
        %v2538 = vld [vmem:[%s20] sm:$0x1]
        %v2539 = vld [vmem:[%s21] sm:$0x1]
        %v2540 = vsel %vm1321, %v2537, 0.0
        %2541 = vadd.xlane.f32.xlu0 %v2540
        %v2542 = vpop.xlane.xlu0 %2541
        %v2543 = vmul.f32 %v2542, %v1331
        %v2544 = vsub.f32 %v2537, %v2543
        %v2545 = vmul.f32 %v2544, %v2544
        %v2546 = vsel %vm1321, %v2545, 0.0
        %2547 = vadd.xlane.f32.xlu0 %v2546
        %v2548 = vpop.xlane.xlu0 %2547
        %v2549 = vmul.f32 %v2548, %v1331
        %v2550 = vadd.f32 %v2549, 1e-12
        %v2551 = vrsqrt.pop %v2550
        %v2552 = vmul.f32 %v2551, %v2550
        %v2553 = vmul.f32 %v2552, %v2551
        %v2554 = vmul.f32 0.5, %v2553
        %v2555 = vsub.f32 1.5, %v2554
        %v2556 = vmul.f32 %v2551, %v2555
        %vm2557 = vweird.f32 %v2550
        %vm2558 = vweird.f32 %v2551
        %vm2559 = vmor %vm2557, %vm2558
        %v2560 = vsel %vm2559, %v2551, %v2556
        %v2561 = vmul.f32 %v2544, %v2560
        %v2563 = vperm.slane %v2538, 0
        %v2565 = vmul.f32 %v2561, %v2563
        %v2567 = vperm.slane %v2539, 0
        %v2569 = vadd.f32 %v2565, %v2567
        %v2570 = vpack.c.bf16 %v2569, %v2569
        %v2571 = vld [vmem:[%s22] sm:$0xf]
        %v2572 = vld [vmem:[%s22 + $0x4] sm:$0xf]
        %v2573 = vld [vmem:[%s22 + $0x8] sm:$0xf]
        %v2574 = vld [vmem:[%s22 + $0xc] sm:$0xf]
        %v2575 = vld [vmem:[%s23] sm:$0x1]
        %v2580 = vunpack.c.l.b16 %v2571
        %v2581 = vunpack.c.l.b16 %v2572
        %v2582 = vunpack.c.l.b16 %v2573
        %v2583 = vunpack.c.l.b16 %v2574
        %v2584 = vpack.c.b16 %v2581, %v2580
        %v2585 = vpack.c.b16 %v2583, %v2582
        %v2589 = vsel %vm1321, %v2570, 0
        %2591 = vmatpush.bf16.msra.mxu0 0
        %2592 = vmatpush.bf16.msra.mxu0 0
        %2593 = vmatpush.bf16.msra.mxu0 0
        %2594 = vmatpush.bf16.msra.mxu0 0
        %2595 = vmatpush.bf16.msra.mxu0 0
        %2596 = vmatpush.bf16.msra.mxu0 0
        %2597 = vmatpush.bf16.msra.mxu0 %v2585
        %2598 = vmatpush.bf16.msra.mxu0 %v2584
        %2599 = vmatmul.bf16.gmra.mxu0 %v2589
        %v2600 = vpop.f32.mrf.mxu0
        %v2601 = vadd.f32 %v2575, %v2600
        %v2602 = vpop.f32.mrf.mxu0
        %2603 = vdwg.mxu0
        %v2604 = vmax.f32 %v2601, 0.0
        %v2605 = vpack.c.bf16 %v2604, %v2604
        %v2606 = vld [vmem:[%s24] sm:$0xf]
        %v2607 = vld [vmem:[%s24 + $0x4] sm:$0xf]
        %v2608 = vld [vmem:[%s25] sm:$0x1]
        %v2611 = vunpack.c.l.b16 %v2606
        %v2612 = vunpack.c.l.b16 %v2607
        %v2613 = vpack.c.b16 %v2612, %v2611
        %v2616 = vsel %vm1485, %v2605, 0
        %2618 = vmatpush.bf16.msra.mxu0 0
        %2619 = vmatpush.bf16.msra.mxu0 0
        %2620 = vmatpush.bf16.msra.mxu0 0
        %2621 = vmatpush.bf16.msra.mxu0 0
        %2622 = vmatpush.bf16.msra.mxu0 0
        %2623 = vmatpush.bf16.msra.mxu0 0
        %2624 = vmatpush.bf16.msra.mxu0 0
        %2625 = vmatpush.bf16.msra.mxu0 %v2613
        %2626 = vmatmul.bf16.gmra.mxu0 %v2616
        %v2627 = vpop.f32.mrf.mxu0
        %v2628 = vadd.f32 %v2608, %v2627
        %v2629 = vpop.f32.mrf.mxu0
        %2630 = vdwg.mxu0
        %vm2631 = vcmask 24576
        %2632 = vst.msk [vmem:[%s822] sm:$0x1] %vm2631, %v2628
        %v2633 = vld [vmem:[%s830] sm:$0x1]
        %2634 = vset.pattern.permute.xlu0 0
        %2635 = vperm.xlu0 %2634, %v2633
        %v2636 = vpop.permute.xlu0 %2635
        %v2637 = vperm.slane %v2636, 0
        %vm2638 = vcmp.eq.s32.totalorder %v1316, %v2637
        %v2639 = vsel %vm2638, 1, 0
        %v2640 = vcvt.s32.f32 %v2639
        %v2641 = vsel %vm2631, %v2628, -inf
        %2642 = vmax.xlane.f32.xlu0 %v2641
        %v2643 = vpop.xlane.xlu0 %2642
        %v2644 = vsub.f32 %v2628, %v2643
        %v2645 = vmul.f32 %v2644, 1.442695
        %v2646 = vpow.pop %v2645
        %v2647 = vsel %vm2631, %v2646, 0.0
        %2648 = vadd.xlane.f32.xlu0 %v2647
        %v2649 = vpop.xlane.xlu0 %2648
        %v2650 = vlog2.pop %v2649
        %v2651 = vmul.f32 %v2650, 0.6931472
        %v2652 = vadd.f32 %v2651, %v2643
        %v2653 = vmul.f32 %v2640, %v2628
        %v2654 = vsel %vm2631, %v2653, 0.0
        %2655 = vadd.xlane.f32.xlu0 %v2654
        %v2656 = vpop.xlane.xlu0 %2655
        %v2657 = vsub.f32 %v2652, %v2656
        %vm2658 = vcmask 0
        %2659 = vst.msk [vmem:[%s838] sm:$0x1] %vm2658, %v2657
        %s2660 = sand.u32 %s606, 1
        %s2661 = scalar_lea.sflag [#allocation3], %s2660
        %s2662 = sand.u32 %s606, 1
        %s2663 = scalar_lea.vmem [#allocation2], %s2662
        %p2664 = scmp.lt.s32.totalorder %s42, 1
        %s2665 = scalar_select %p2664, %s42, 1
        %s2666 = scalar_lea.vmem %s27, %s2665
        // Predicated region
        $region125: #{model_forward.1} parent=123 // pred_check
          %p2667 = pneg %p616
        $region126: #{model_forward.1} parent=123 // pred_check_branch
          %2669 = sbr.rel (%p2667) target = $region128
        $region127: #{model_forward.1} parent=123 // pred_region
          %2671 = vsyncadd %s2661, 0
          %s2672 = scalar_lea.hbm %s26, %s42
          %s2674 = sshll.u32 %s2663, 4
          %s2675 = int_to_ptr.vmem [resolvable:$true] %s2674
          %s2676 = sshll.u32 %s2672, 4
          %s2677 = int_to_ptr.hbm [resolvable:$true] %s2676
          %2679 = dma.vmem_to_hbm [thread:$0]  %s2675, 16, %s2677, %s2661
        $region128: #{model_forward.1} parent=123 // pred_fallthru
          _
        // Predicated region
        $region129: #{model_forward.1} parent=123 // pred_check
          %p2680 = pneg %p642
        $region130: #{model_forward.1} parent=123 // pred_check_branch
          %2682 = sbr.rel (%p2680) target = $region132
        $region131: #{model_forward.1} parent=123 // pred_region
          _
        $region132: #{model_forward.1} parent=123 // pred_fallthru
          _
      $region124: #{model_forward.1} parent=5 // pred_fallthru
        _
      %p2683 = scmp.le.s32.totalorder 2, %s37
      // Predicated region
      $region133: #{model_forward.1} parent=5 // pred_check
        %p2684 = pneg %p2683
      $region134: #{model_forward.1} parent=5 // pred_check_branch
        %2686 = sbr.rel (%p2684) target = $region136
      $region135: #{model_forward.1} parent=5 // pred_region
        %s2687 = ssub.s32 %s37, 2
        // Predicated region
        $region137: #{model_forward.1} parent=135 // pred_check
          %p2688 = pneg %p622
        $region138: #{model_forward.1} parent=135 // pred_check_branch
          %2690 = sbr.rel (%p2688) target = $region140
        $region139: #{model_forward.1} parent=135 // pred_region
          %s2691 = sand.u32 %s607, 1
          %s2692 = scalar_lea.sflag [#allocation3], %s2691
          %s2693 = sand.u32 %s607, 1
          %s2694 = scalar_lea.vmem [#allocation2], %s2693
          %2696 = dma.done %s2692, 16
        $region140: #{model_forward.1} parent=135 // pred_fallthru
          _
        // Predicated region
        $region141: #{model_forward.1} parent=135 // pred_check
          %p2697 = pneg %p648
        $region142: #{model_forward.1} parent=135 // pred_check_branch
          %2699 = sbr.rel (%p2697) target = $region144
        $region143: #{model_forward.1} parent=135 // pred_region
          %p2700 = scmp.lt.s32.totalorder %s43, 1
          %s2701 = scalar_select %p2700, %s43, 1
          %s2702 = scalar_lea.vmem %s27, %s2701
        $region144: #{model_forward.1} parent=135 // pred_fallthru
          _
      $region136: #{model_forward.1} parent=5 // pred_fallthru
        _
    $region6: #{model_forward.1} parent=1 // loop_footer
      %s41 = sadd.s32 1, %s37
    $region7: #{model_forward.1} parent=1 // loop_footer_branch
      %36 = sbr.rel target = $region3
    $region8: #{model_forward.1} parent=1 // loop_exit
      _
    %2703 = vsyncpa [#allocation3], 1
    %s2704 = scalar_lea.sflag [#allocation3], 1
    %2705 = vsyncpa %s2704, 1

</llo_original>
